<compile_context>
chip_gen: v7x
topology: tpu7x:2x2x1
jax: 0.10.0
libtpu: 0.0.40
codegen_flags: <defaults>
</compile_context>

<pallas_src>
import jax
import jax.numpy as jnp
from jax.experimental import pallas as pl
from jax.experimental.pallas import tpu as pltpu


def _largest_tile(n, target, align=128):
    """Largest multiple of `align` that divides n and is <= target."""
    if n % align != 0:
        return n                       # full-extent block is always legal
    t = max((min(target, n) // align) * align, align)
    while n % t != 0:
        t -= align
    return t


# ---------------------------------------------------------------------------
# Kernel 1: fused decoder-projection + feature_extractor + seg_head
#   layout: channels on sublanes, pixels on lanes.
#   x      : (Cin, tile)  raw input pixels (one batch item, one pixel tile)
#   dec    = tanh(Wd^T x + bd)                 (16, tile)   VPU (Cin tiny)
#   h      = relu(W1'^T dec + b1')             (128, tile)  MXU bf16, BN folded
#   o      = sigmoid(w2^T h + b2)              (1, tile)    lane-dense output
# ---------------------------------------------------------------------------
def _seg_kernel(x_ref, wd_ref, bd_ref, w1_ref, b1_ref, w2_ref, b2_ref, o_ref):
    x = x_ref[...]                                              # (Cin, tile) f32
    cin = x_ref.shape[0]
    # Cin is tiny (3): do the 3->16 projection on the VPU with broadcasts
    # instead of a K=3 MXU matmul.
    acc = wd_ref[:, 0:1] * x[0:1, :]
    for c in range(1, cin):
        acc = acc + wd_ref[:, c:c + 1] * x[c:c + 1, :]
    dec = jnp.tanh(acc + bd_ref[...])                           # (16, tile) f32

    h = jnp.dot(w1_ref[...], dec.astype(jnp.bfloat16),
                preferred_element_type=jnp.float32)             # bf16 MXU
    h = jnp.maximum(h + b1_ref[...], 0.0)                       # (128, tile)

    o = jnp.dot(w2_ref[...], h.astype(jnp.bfloat16),
                preferred_element_type=jnp.float32) + b2_ref[0, 0]
    o_ref[...] = pl.reciprocal(1.0 + jnp.exp(-o), approx=True)  # (1, tile)


def fused_seg_head(x_bcn, wd_t, bd, w1_t, b1, w2_t, b2, *, tile):
    B, cin, n = x_bcn.shape
    cdec = wd_t.shape[0]
    cmid = w1_t.shape[0]
    assert n % tile == 0
    const = lambda b, i: (0, 0)
    cost = pl.CostEstimate(
        flops=int(2 * B * n * (cin * cdec + cdec * cmid + cmid)),
        transcendentals=int(B * n * (cdec + 1)),
        bytes_accessed=int(4 * B * n * (cin + 1)
                           + 4 * (cdec * cin + cdec + cmid + 1)
                           + 2 * (cmid * cdec + cmid)),
    )
    return pl.pallas_call(
        _seg_kernel,
        out_shape=jax.ShapeDtypeStruct((B, 1, n), jnp.float32),
        grid=(B, n // tile),
        in_specs=[
            pl.BlockSpec((None, cin, tile), lambda b, i: (b, 0, i)),
            pl.BlockSpec((cdec, cin), const),
            pl.BlockSpec((cdec, 1), const),
            pl.BlockSpec((cmid, cdec), const),   # bf16
            pl.BlockSpec((cmid, 1), const),
            pl.BlockSpec((1, cmid), const),      # bf16
            pl.BlockSpec(memory_space=pltpu.MemorySpace.SMEM),   # scalar b2
        ],
        out_specs=pl.BlockSpec((None, 1, tile), lambda b, i: (b, 0, i)),
        compiler_params=pltpu.CompilerParams(
            dimension_semantics=("parallel", "parallel")),
        cost_estimate=cost,
    )(x_bcn, wd_t, bd, w1_t, b1, w2_t, b2)


# ---------------------------------------------------------------------------
# Kernel 2: AdaptiveMaxPool2d(1) + branch1 + branch2 + regression_head
#   branch2 is K-tiled over H*W ('arbitrary' axis) with a VMEM accumulator.
#   ef  = max_S(bottleneck)                       (B, 512)
#   p1  = relu(ef  @ Wb1' + bb1')   (BN1d folded, Dropout eval = identity)
#   p2  = relu(sum_k of[:,k] @ Wb2'[k,:] + bb2')  (bf16 streamed weight)
#   n   = relu(p1 @ wr[:64] + p2 @ wr[64:] + br)  -> VPU mul + lane reduce
# ---------------------------------------------------------------------------
def _pool_mlp_kernel(bott_ref, of_ref, wb1_ref, bb1_ref, wb2_ref, bb2_ref,
                     wr1_ref, wr2_ref, br_ref, ef_ref, n_ref, p2_acc):
    k = pl.program_id(0)

    @pl.when(k == 0)
    def _():
        p2_acc[...] = jnp.zeros_like(p2_acc)

    p2_acc[...] += jnp.dot(of_ref[...].astype(jnp.bfloat16), wb2_ref[...],
                           preferred_element_type=jnp.float32)   # (B, 64)

    @pl.when(k == pl.num_programs(0) - 1)
    def _():
        ef = jnp.max(bott_ref[...], axis=1)                      # (B, C)
        ef_ref[...] = ef
        p1 = jnp.dot(ef, wb1_ref[...], preferred_element_type=jnp.float32)
        p1 = jnp.maximum(p1 + bb1_ref[...], 0.0)                 # (B, 64)
        p2 = jnp.maximum(p2_acc[...] + bb2_ref[...], 0.0)        # (B, 64)
        n = (jnp.sum(p1 * wr1_ref[...], axis=-1, keepdims=True)
             + jnp.sum(p2 * wr2_ref[...], axis=-1, keepdims=True)
             + br_ref[0, 0])
        n_ref[...] = jnp.maximum(n, 0.0)                         # (B, 1)


def pooled_mlp_heads(bott_bsc, out_flat, wb1, bb1, wb2_bf, bb2, wr1t, wr2t, br,
                     *, tk):
    B, S, C = bott_bsc.shape
    HW = out_flat.shape[1]
    H1 = wb1.shape[1]
    assert HW % tk == 0
    n_k = HW // tk
    c2 = lambda k: (0, 0)
    c3 = lambda k: (0, 0, 0)
    cost = pl.CostEstimate(
        flops=int(B * S * C + 2 * B * (C * H1 + HW * H1 + 2 * H1)),
        transcendentals=0,
        bytes_accessed=int(4 * (B * S * C + B * HW + C * H1 + 4 * H1 + 1
                                + B * C + B) + 2 * HW * H1),
    )
    return pl.pallas_call(
        _pool_mlp_kernel,
        out_shape=(jax.ShapeDtypeStruct((B, C), jnp.float32),
                   jax.ShapeDtypeStruct((B, 1), jnp.float32)),
        grid=(n_k,),
        in_specs=[
            pl.BlockSpec((B, S, C), c3),
            pl.BlockSpec((B, tk), lambda k: (0, k)),
            pl.BlockSpec((C, H1), c2),
            pl.BlockSpec((1, H1), c2),
            pl.BlockSpec((tk, H1), lambda k: (k, 0)),            # bf16, streamed
            pl.BlockSpec((1, H1), c2),
            pl.BlockSpec((1, H1), c2),
            pl.BlockSpec((1, H1), c2),
            pl.BlockSpec(memory_space=pltpu.MemorySpace.SMEM),   # scalar br
        ],
        out_specs=(pl.BlockSpec((B, C), c2),
                   pl.BlockSpec((B, 1), c2)),
        scratch_shapes=[pltpu.VMEM((B, H1), jnp.float32)],
        compiler_params=pltpu.CompilerParams(
            dimension_semantics=("arbitrary",)),
        cost_estimate=cost,
    )(bott_bsc, out_flat, wb1, bb1, wb2_bf, bb2, wr1t, wr2t, br)


# ---------------------------------------------------------------------------
# Parameter construction (deterministic, matches the module's __init__ shapes)
# ---------------------------------------------------------------------------
def make_params(key, cin_dec=16, cmid=128, flatten_dim=512, seg_flat_dim=64 * 64):
    ks = jax.random.split(key, 12)

    def xavier_normal(k, fan_in, fan_out):
        std = (2.0 / (fan_in + fan_out)) ** 0.5
        return std * jax.random.normal(k, (fan_in, fan_out), jnp.float32)

    def linear_init(kw, kb, fan_in, fan_out):
        bound = 1.0 / (fan_in ** 0.5)
        w = jax.random.uniform(kw, (fan_in, fan_out), jnp.float32, -bound, bound)
        b = jax.random.uniform(kb, (1, fan_out), jnp.float32, -bound, bound)
        return w, b

    # BatchNorm (eval mode): gamma=1, beta=0, mean=0, var=1 -> scale/shift
    eps = 1e-5
    bn_scale = lambda n: jnp.full((1, n), 1.0 / (1.0 + eps) ** 0.5, jnp.float32)
    bn_shift = lambda n: jnp.zeros((1, n), jnp.float32)

    p = {}
    # feature_extractor: Conv2d(16,128,1) [xavier_normal] + BN2d(128)
    p["w1"] = xavier_normal(ks[0], cin_dec, cmid)
    p["b1"] = jnp.zeros((1, cmid), jnp.float32)
    p["s1"], p["t1"] = bn_scale(cmid), bn_shift(cmid)
    # seg_head: Conv2d(128,1,1) [xavier_normal]
    p["w2"] = xavier_normal(ks[1], cmid, 1)
    p["b2"] = jnp.zeros((1, 1), jnp.float32)
    # branch1: Linear(flatten_dim, 64) + BN1d(64)
    p["wb1"], p["bb1"] = linear_init(ks[2], ks[3], flatten_dim, 64)
    p["sb1"], p["tb1"] = bn_scale(64), bn_shift(64)
    # branch2: Linear(seg_flat_dim, 64) + BN1d(64)   (224*224 scaled to H*W)
    p["wb2"], p["bb2"] = linear_init(ks[4], ks[5], seg_flat_dim, 64)
    p["sb2"], p["tb2"] = bn_scale(64), bn_shift(64)
    # regression_head: Linear(128, 1)
    p["wr"], p["br"] = linear_init(ks[6], ks[7], 128, 1)
    # stand-in unet projections (deterministic)
    p["w_dec"] = 0.1 * jax.random.normal(ks[8], (3, cin_dec), jnp.float32)
    p["b_dec"] = jnp.zeros((cin_dec,), jnp.float32)
    p["w_enc"] = 0.1 * jax.random.normal(ks[9], (3, flatten_dim), jnp.float32)
    p["b_enc"] = jnp.zeros((flatten_dim,), jnp.float32)
    return p


# ---------------------------------------------------------------------------
# Full forward ('training' mode of UNETEmbeddingExtractor)
# ---------------------------------------------------------------------------
def unet_embedding_extractor_forward(x_nchw, p, *,
                                     seg_tile_target=8192,
                                     b2_tile_target=8192):
    B, C, H, W = x_nchw.shape
    HW = H * W
    x_f32 = x_nchw.astype(jnp.float32)

    # --- stand-in smp.Unet encoder bottleneck (see TODO(synk) at top) ---
    x_nhwc = jnp.transpose(x_f32, (0, 2, 3, 1))
    stride = 32
    pooled = x_nhwc.reshape(B, H // stride, stride, W // stride, stride, C)
    pooled = pooled.mean(axis=(2, 4))                                # (B,h,w,C)
    bottleneck = jnp.maximum(pooled @ p["w_enc"] + p["b_enc"], 0.0)  # (B,h,w,512)

    # --- weight prep: fold eval-mode BN2d, transpose, bf16 MXU operands ---
    wd_t = p["w_dec"].T                                   # (16, 3) f32 (VPU)
    bd = p["b_dec"].reshape(-1, 1)                        # (16, 1)
    w1_t = (p["w1"] * p["s1"]).T.astype(jnp.bfloat16)     # (128, 16) BN folded
    b1 = (p["b1"] * p["s1"] + p["t1"]).T                  # (128, 1) f32
    w2_t = p["w2"].T.astype(jnp.bfloat16)                 # (1, 128)
    b2 = p["b2"]                                          # (1, 1) -> SMEM

    # --- Pallas kernel 1: decoder proj + feature_extractor + seg_head ---
    x_bcn = x_f32.reshape(B, C, HW)                       # free reshape (NCHW)
    tile = _largest_tile(HW, seg_tile_target)
    o = fused_seg_head(x_bcn, wd_t, bd, w1_t, b1, w2_t, b2, tile=tile)  # (B,1,HW)
    out = o.reshape(B, 1, H, W)                           # NCHW seg output
    out_flat = o.reshape(B, HW)

    # --- Pallas kernel 2: global max pool + branch1/2 + regression head ---
    hb, wb = bottleneck.shape[1], bottleneck.shape[2]
    bott_bsc = bottleneck.reshape(B, hb * wb, bottleneck.shape[-1])
    wb1f = p["wb1"] * p["sb1"]                            # fold eval BN1d
    bb1f = p["bb1"] * p["sb1"] + p["tb1"]
    wb2f = (p["wb2"] * p["sb2"]).astype(jnp.bfloat16)     # bandwidth-bound weight
    bb2f = p["bb2"] * p["sb2"] + p["tb2"]
    wr1t = p["wr"][:64].T                                 # (1, 64)
    wr2t = p["wr"][64:].T                                 # (1, 64)
    tk = _largest_tile(HW, b2_tile_target)
    extracted_features, n_out = pooled_mlp_heads(
        bott_bsc, out_flat, wb1f, bb1f, wb2f, bb2f, wr1t, wr2t, p["br"], tk=tk)

    return out, n_out, extracted_features


# Pure-JAX reference (full f32) for the kernel-implemented pieces.
def _reference(x_nchw, p):
    B, C, H, W = x_nchw.shape
    x_nhwc = jnp.transpose(x_nchw, (0, 2, 3, 1)).astype(jnp.float32)
    dec = jnp.tanh(x_nhwc @ p["w_dec"] + p["b_dec"])
    stride = 32
    pooled = x_nhwc.reshape(B, H // stride, stride, W // stride, stride, C).mean((2, 4))
    bott = jnp.maximum(pooled @ p["w_enc"] + p["b_enc"], 0.0)
    h = jnp.maximum((dec @ p["w1"] + p["b1"][0]) * p["s1"][0] + p["t1"][0], 0.0)
    out = jax.nn.sigmoid(h @ p["w2"] + p["b2"][0])                   # (B,H,W,1)
    out_nchw = jnp.transpose(out, (0, 3, 1, 2))
    out_flat = out.reshape(B, H * W)
    ef = bott.reshape(B, -1, bott.shape[-1]).max(axis=1)
    p1 = jnp.maximum((ef @ p["wb1"] + p["bb1"]) * p["sb1"] + p["tb1"], 0.0)
    p2 = jnp.maximum((out_flat @ p["wb2"] + p["bb2"]) * p["sb2"] + p["tb2"], 0.0)
    n_out = jnp.maximum(jnp.concatenate([p1, p2], -1) @ p["wr"] + p["br"], 0.0)
    return out_nchw, n_out, ef


if __name__ == "__main__":
    B, C, H, W = 2, 3, 64, 64          # small NCHW input, H=W divisible by 32
    key = jax.random.PRNGKey(0)
    kx, kp = jax.random.split(key)
    x = jax.random.normal(kx, (B, C, H, W), jnp.float32)
    params = make_params(kp, cin_dec=16, cmid=128, flatten_dim=512,
                         seg_flat_dim=H * W)

    # Small tile targets at test size so multi-step grids (pixel tiling and
    # the branch2 K-accumulation) are actually exercised; defaults (8192) are
    # the performance choice for real 224x224 inputs.
    fwd = jax.jit(lambda xx, pp: unet_embedding_extractor_forward(
        xx, pp, seg_tile_target=1024, b2_tile_target=1024))
    out, n_out, ef = jax.block_until_ready(fwd(x, params))
    r_out, r_n, r_ef = _reference(x, params)

    assert out.shape == (B, 1, H, W) and n_out.shape == (B, 1) and ef.shape == (B, 512)
    # bf16 MXU operands (f32 accumulation) -> loosened tolerances.
    assert jnp.allclose(out, r_out, atol=1e-2)
    assert jnp.allclose(n_out, r_n, atol=3e-2)
    assert jnp.allclose(ef, r_ef, atol=1e-4)
    print("KERNEL_OK")
</pallas_src>

<mosaic_0001>
module attributes {stable_mosaic.version = 11 : i64} {
  func.func @_seg_kernel(%arg0: i32, %arg1: i32, %arg2: memref<1x3x1024xf32, #tpu.memory_space<vmem>>, %arg3: memref<16x3xf32, #tpu.memory_space<vmem>>, %arg4: memref<16x1xf32, #tpu.memory_space<vmem>>, %arg5: memref<128x16xbf16, #tpu.memory_space<vmem>>, %arg6: memref<128x1xf32, #tpu.memory_space<vmem>>, %arg7: memref<1x128xbf16, #tpu.memory_space<vmem>>, %arg8: memref<1x1xf32, #tpu.memory_space<smem>>, %arg9: memref<1x1x1024xf32, #tpu.memory_space<vmem>>) attributes {dimension_semantics = [#tpu.dimension_semantics<parallel>, #tpu.dimension_semantics<parallel>], iteration_bounds = array<i64: 2, 4>, scalar_prefetch = 0 : i64, scratch_operands = 0 : i64, tpu.core_type = #tpu.core_type<tc>, window_params = [{transform_indices = @transform_0, window_bounds = array<i64: 1, 3, 1024>}, {pipeline_mode = #tpu.pipeline_mode<synchronous>, transform_indices = @transform_1, window_bounds = array<i64: 16, 3>}, {pipeline_mode = #tpu.pipeline_mode<synchronous>, transform_indices = @transform_2, window_bounds = array<i64: 16, 1>}, {pipeline_mode = #tpu.pipeline_mode<synchronous>, transform_indices = @transform_3, window_bounds = array<i64: 128, 16>}, {pipeline_mode = #tpu.pipeline_mode<synchronous>, transform_indices = @transform_4, window_bounds = array<i64: 128, 1>}, {pipeline_mode = #tpu.pipeline_mode<synchronous>, transform_indices = @transform_5, window_bounds = array<i64: 1, 128>}, {transform_indices = @transform_6, window_bounds = array<i64: 1, 1>}, {transform_indices = @transform_7, window_bounds = array<i64: 1, 1, 1024>}]} {
    %c0 = arith.constant 0 : index
    %c0_0 = arith.constant 0 : index
    %c0_1 = arith.constant 0 : index
    %0 = vector.load %arg2[%c0, %c0_0, %c0_1] : memref<1x3x1024xf32, #tpu.memory_space<vmem>>, vector<1x3x1024xf32>
    %1 = vector.shape_cast %0 : vector<1x3x1024xf32> to vector<3x1024xf32>
    %c0_2 = arith.constant 0 : index
    %c0_3 = arith.constant 0 : index
    %2 = vector.load %arg3[%c0_2, %c0_3] : memref<16x3xf32, #tpu.memory_space<vmem>>, vector<16x1xf32>
    %3 = vector.extract_strided_slice %1 {offsets = [0, 0], sizes = [1, 1024], strides = [1, 1]} : vector<3x1024xf32> to vector<1x1024xf32>
    %4 = vector.broadcast %2 : vector<16x1xf32> to vector<16x1024xf32>
    %5 = vector.broadcast %3 : vector<1x1024xf32> to vector<16x1024xf32>
    %6 = arith.mulf %4, %5 : vector<16x1024xf32>
    %c0_4 = arith.constant 0 : index
    %c1 = arith.constant 1 : index
    %7 = vector.load %arg3[%c0_4, %c1] : memref<16x3xf32, #tpu.memory_space<vmem>>, vector<16x1xf32>
    %8 = vector.extract_strided_slice %1 {offsets = [1, 0], sizes = [1, 1024], strides = [1, 1]} : vector<3x1024xf32> to vector<1x1024xf32>
    %9 = vector.broadcast %7 : vector<16x1xf32> to vector<16x1024xf32>
    %10 = vector.broadcast %8 : vector<1x1024xf32> to vector<16x1024xf32>
    %11 = arith.mulf %9, %10 : vector<16x1024xf32>
    %12 = arith.addf %6, %11 : vector<16x1024xf32>
    %c0_5 = arith.constant 0 : index
    %c2 = arith.constant 2 : index
    %13 = vector.load %arg3[%c0_5, %c2] : memref<16x3xf32, #tpu.memory_space<vmem>>, vector<16x1xf32>
    %14 = vector.extract_strided_slice %1 {offsets = [2, 0], sizes = [1, 1024], strides = [1, 1]} : vector<3x1024xf32> to vector<1x1024xf32>
    %15 = vector.broadcast %13 : vector<16x1xf32> to vector<16x1024xf32>
    %16 = vector.broadcast %14 : vector<1x1024xf32> to vector<16x1024xf32>
    %17 = arith.mulf %15, %16 : vector<16x1024xf32>
    %18 = arith.addf %12, %17 : vector<16x1024xf32>
    %c0_6 = arith.constant 0 : index
    %c0_7 = arith.constant 0 : index
    %19 = vector.load %arg4[%c0_6, %c0_7] : memref<16x1xf32, #tpu.memory_space<vmem>>, vector<16x1xf32>
    %20 = vector.broadcast %19 : vector<16x1xf32> to vector<16x1024xf32>
    %21 = arith.addf %18, %20 : vector<16x1024xf32>
    %22 = math.tanh %21 : vector<16x1024xf32>
    %c0_8 = arith.constant 0 : index
    %c0_9 = arith.constant 0 : index
    %23 = vector.load %arg5[%c0_8, %c0_9] : memref<128x16xbf16, #tpu.memory_space<vmem>>, vector<128x16xbf16>
    %24 = arith.truncf %22 : vector<16x1024xf32> to vector<16x1024xbf16>
    %cst = arith.constant dense<0.000000e+00> : vector<128x1024xf32>
    %25 = tpu.matmul %23, %24, %cst {dimension_numbers = #tpu.dot_dimension_numbers<[1], [0], [0], [1], [0, 0, 1, 1], [], []>} : vector<128x16xbf16>, vector<16x1024xbf16>, vector<128x1024xf32> -> vector<128x1024xf32>
    %c0_10 = arith.constant 0 : index
    %c0_11 = arith.constant 0 : index
    %26 = vector.load %arg6[%c0_10, %c0_11] : memref<128x1xf32, #tpu.memory_space<vmem>>, vector<128x1xf32>
    %27 = vector.broadcast %26 : vector<128x1xf32> to vector<128x1024xf32>
    %28 = arith.addf %25, %27 : vector<128x1024xf32>
    %cst_12 = arith.constant 0.000000e+00 : f32
    %29 = vector.broadcast %cst_12 : f32 to vector<128x1024xf32>
    %30 = arith.maximumf %28, %29 : vector<128x1024xf32>
    %c0_13 = arith.constant 0 : index
    %c0_14 = arith.constant 0 : index
    %31 = vector.load %arg7[%c0_13, %c0_14] : memref<1x128xbf16, #tpu.memory_space<vmem>>, vector<1x128xbf16>
    %32 = arith.truncf %30 : vector<128x1024xf32> to vector<128x1024xbf16>
    %cst_15 = arith.constant dense<0.000000e+00> : vector<1x1024xf32>
    %33 = tpu.matmul %31, %32, %cst_15 {dimension_numbers = #tpu.dot_dimension_numbers<[1], [0], [0], [1], [0, 0, 1, 1], [], []>} : vector<1x128xbf16>, vector<128x1024xbf16>, vector<1x1024xf32> -> vector<1x1024xf32>
    %c0_16 = arith.constant 0 : index
    %c0_17 = arith.constant 0 : index
    %34 = memref.load %arg8[%c0_16, %c0_17] : memref<1x1xf32, #tpu.memory_space<smem>>
    %35 = vector.broadcast %34 : f32 to vector<1x1024xf32>
    %36 = arith.addf %33, %35 : vector<1x1024xf32>
    %cst_18 = arith.constant 0.000000e+00 : f32
    %37 = vector.broadcast %cst_18 : f32 to vector<1x1024xf32>
    %38 = arith.subf %37, %36 : vector<1x1024xf32>
    %39 = math.exp %38 : vector<1x1024xf32>
    %cst_19 = arith.constant 1.000000e+00 : f32
    %40 = vector.broadcast %cst_19 : f32 to vector<1x1024xf32>
    %41 = arith.addf %40, %39 : vector<1x1024xf32>
    %42 = tpu.reciprocal %41 {approx = true} : vector<1x1024xf32> -> vector<1x1024xf32>
    %c0_20 = arith.constant 0 : index
    %c0_21 = arith.constant 0 : index
    %c0_22 = arith.constant 0 : index
    %43 = vector.load %arg9[%c0_20, %c0_21, %c0_22] : memref<1x1x1024xf32, #tpu.memory_space<vmem>>, vector<1x1x1024xf32>
    %44 = vector.shape_cast %43 : vector<1x1x1024xf32> to vector<1x1024xf32>
    %45 = vector.shape_cast %42 : vector<1x1024xf32> to vector<1x1x1024xf32>
    tpu.vector_store %arg9[%c0_20, %c0_21, %c0_22], %45 {strides = array<i32>} : memref<1x1x1024xf32, #tpu.memory_space<vmem>>, vector<1x1x1024xf32>,
    return
  }
  func.func @transform_0(%arg0: i32, %arg1: i32) -> (i32, i32, i32) {
    %c0_i32 = arith.constant 0 : i32
    %c0_i32_0 = arith.constant 0 : i32
    return %arg0, %c0_i32, %arg1 : i32, i32, i32
  }
  func.func @transform_1(%arg0: i32, %arg1: i32) -> (i32, i32) {
    %c0_i32 = arith.constant 0 : i32
    %c0_i32_0 = arith.constant 0 : i32
    %c0_i32_1 = arith.constant 0 : i32
    return %c0_i32, %c0_i32_0 : i32, i32
  }
  func.func @transform_2(%arg0: i32, %arg1: i32) -> (i32, i32) {
    %c0_i32 = arith.constant 0 : i32
    %c0_i32_0 = arith.constant 0 : i32
    %c0_i32_1 = arith.constant 0 : i32
    return %c0_i32, %c0_i32_0 : i32, i32
  }
  func.func @transform_3(%arg0: i32, %arg1: i32) -> (i32, i32) {
    %c0_i32 = arith.constant 0 : i32
    %c0_i32_0 = arith.constant 0 : i32
    %c0_i32_1 = arith.constant 0 : i32
    return %c0_i32, %c0_i32_0 : i32, i32
  }
  func.func @transform_4(%arg0: i32, %arg1: i32) -> (i32, i32) {
    %c0_i32 = arith.constant 0 : i32
    %c0_i32_0 = arith.constant 0 : i32
    %c0_i32_1 = arith.constant 0 : i32
    return %c0_i32, %c0_i32_0 : i32, i32
  }
  func.func @transform_5(%arg0: i32, %arg1: i32) -> (i32, i32) {
    %c0_i32 = arith.constant 0 : i32
    %c0_i32_0 = arith.constant 0 : i32
    %c0_i32_1 = arith.constant 0 : i32
    return %c0_i32, %c0_i32_0 : i32, i32
  }
  func.func @transform_6(%arg0: i32, %arg1: i32) -> (i32, i32) {
    %c0_i32 = arith.constant 0 : i32
    %c0_i32_0 = arith.constant 0 : i32
    %c0_i32_1 = arith.constant 0 : i32
    return %c0_i32, %c0_i32_0 : i32, i32
  }
  func.func @transform_7(%arg0: i32, %arg1: i32) -> (i32, i32, i32) {
    %c0_i32 = arith.constant 0 : i32
    %c0_i32_0 = arith.constant 0 : i32
    return %arg0, %c0_i32, %arg1 : i32, i32, i32
  }
}

module attributes {stable_mosaic.version = 11 : i64} {
  func.func @_pool_mlp_kernel(%arg0: i32, %arg1: memref<2x4x512xf32, #tpu.memory_space<vmem>>, %arg2: memref<2x1024xf32, #tpu.memory_space<vmem>>, %arg3: memref<512x64xf32, #tpu.memory_space<vmem>>, %arg4: memref<1x64xf32, #tpu.memory_space<vmem>>, %arg5: memref<1024x64xbf16, #tpu.memory_space<vmem>>, %arg6: memref<1x64xf32, #tpu.memory_space<vmem>>, %arg7: memref<1x64xf32, #tpu.memory_space<vmem>>, %arg8: memref<1x64xf32, #tpu.memory_space<vmem>>, %arg9: memref<1x1xf32, #tpu.memory_space<smem>>, %arg10: memref<2x512xf32, #tpu.memory_space<vmem>>, %arg11: memref<2x1xf32, #tpu.memory_space<vmem>>, %arg12: memref<2x64xf32, #tpu.memory_space<vmem>>) attributes {dimension_semantics = [#tpu.dimension_semantics<arbitrary>], iteration_bounds = array<i64: 4>, scalar_prefetch = 0 : i64, scratch_operands = 1 : i64, tpu.core_type = #tpu.core_type<tc>, window_params = [{pipeline_mode = #tpu.pipeline_mode<synchronous>, transform_indices = @transform_0, window_bounds = array<i64: 2, 4, 512>}, {transform_indices = @transform_1, window_bounds = array<i64: 2, 1024>}, {pipeline_mode = #tpu.pipeline_mode<synchronous>, transform_indices = @transform_2, window_bounds = array<i64: 512, 64>}, {pipeline_mode = #tpu.pipeline_mode<synchronous>, transform_indices = @transform_3, window_bounds = array<i64: 1, 64>}, {transform_indices = @transform_4, window_bounds = array<i64: 1024, 64>}, {pipeline_mode = #tpu.pipeline_mode<synchronous>, transform_indices = @transform_5, window_bounds = array<i64: 1, 64>}, {pipeline_mode = #tpu.pipeline_mode<synchronous>, transform_indices = @transform_6, window_bounds = array<i64: 1, 64>}, {pipeline_mode = #tpu.pipeline_mode<synchronous>, transform_indices = @transform_7, window_bounds = array<i64: 1, 64>}, {transform_indices = @transform_8, window_bounds = array<i64: 1, 1>}, {pipeline_mode = #tpu.pipeline_mode<synchronous>, transform_indices = @transform_9, window_bounds = array<i64: 2, 512>}, {pipeline_mode = #tpu.pipeline_mode<synchronous>, transform_indices = @transform_10, window_bounds = array<i64: 2, 1>}]} {
    %c0_i32 = arith.constant 0 : i32
    %0 = arith.cmpi eq, %arg0, %c0_i32 : i32
    %1 = arith.extui %0 : i1 to i32
    %c0_i32_0 = arith.constant 0 : i32
    %2 = arith.cmpi ne, %1, %c0_i32_0 : i32
    scf.if %2 {
      %cst_9 = arith.constant 0.000000e+00 : f32
      %13 = vector.broadcast %cst_9 : f32 to vector<2x64xf32>
      %c0_10 = arith.constant 0 : index
      %c0_11 = arith.constant 0 : index
      %14 = vector.load %arg12[%c0_10, %c0_11] : memref<2x64xf32, #tpu.memory_space<vmem>>, vector<2x64xf32>
      tpu.vector_store %arg12[%c0_10, %c0_11], %13 {strides = array<i32>} : memref<2x64xf32, #tpu.memory_space<vmem>>, vector<2x64xf32>,
    } else {
    }
    %c0 = arith.constant 0 : index
    %c0_1 = arith.constant 0 : index
    %3 = vector.load %arg12[%c0, %c0_1] : memref<2x64xf32, #tpu.memory_space<vmem>>, vector<2x64xf32>
    %c0_2 = arith.constant 0 : index
    %c0_3 = arith.constant 0 : index
    %4 = vector.load %arg2[%c0_2, %c0_3] : memref<2x1024xf32, #tpu.memory_space<vmem>>, vector<2x1024xf32>
    %5 = arith.truncf %4 : vector<2x1024xf32> to vector<2x1024xbf16>
    %c0_4 = arith.constant 0 : index
    %c0_5 = arith.constant 0 : index
    %6 = vector.load %arg5[%c0_4, %c0_5] : memref<1024x64xbf16, #tpu.memory_space<vmem>>, vector<1024x64xbf16>
    %cst = arith.constant dense<0.000000e+00> : vector<2x64xf32>
    %7 = tpu.matmul %5, %6, %cst {dimension_numbers = #tpu.dot_dimension_numbers<[1], [0], [0], [1], [0, 0, 1, 1], [], []>} : vector<2x1024xbf16>, vector<1024x64xbf16>, vector<2x64xf32> -> vector<2x64xf32>
    %8 = arith.addf %3, %7 : vector<2x64xf32>
    %c0_6 = arith.constant 0 : index
    %c0_7 = arith.constant 0 : index
    %9 = vector.load %arg12[%c0_6, %c0_7] : memref<2x64xf32, #tpu.memory_space<vmem>>, vector<2x64xf32>
    tpu.vector_store %arg12[%c0_6, %c0_7], %8 {strides = array<i32>} : memref<2x64xf32, #tpu.memory_space<vmem>>, vector<2x64xf32>,
    %c3_i32 = arith.constant 3 : i32
    %10 = arith.cmpi eq, %arg0, %c3_i32 : i32
    %11 = arith.extui %10 : i1 to i32
    %c0_i32_8 = arith.constant 0 : i32
    %12 = arith.cmpi ne, %11, %c0_i32_8 : i32
    scf.if %12 {
      %c0_9 = arith.constant 0 : index
      %c0_10 = arith.constant 0 : index
      %c0_11 = arith.constant 0 : index
      %13 = vector.load %arg1[%c0_9, %c0_10, %c0_11] : memref<2x4x512xf32, #tpu.memory_space<vmem>>, vector<2x4x512xf32>
      %cst_12 = arith.constant dense<0xFF800000> : vector<2x512xf32>
      %14 = vector.multi_reduction <maximumf>, %13, %cst_12 [1] : vector<2x4x512xf32> to vector<2x512xf32>
      %c0_13 = arith.constant 0 : index
      %c0_14 = arith.constant 0 : index
      %15 = vector.load %arg10[%c0_13, %c0_14] : memref<2x512xf32, #tpu.memory_space<vmem>>, vector<2x512xf32>
      tpu.vector_store %arg10[%c0_13, %c0_14], %14 {strides = array<i32>} : memref<2x512xf32, #tpu.memory_space<vmem>>, vector<2x512xf32>,
      %c0_15 = arith.constant 0 : index
      %c0_16 = arith.constant 0 : index
      %16 = vector.load %arg3[%c0_15, %c0_16] : memref<512x64xf32, #tpu.memory_space<vmem>>, vector<512x64xf32>
      %cst_17 = arith.constant dense<0.000000e+00> : vector<2x64xf32>
      %17 = tpu.matmul %14, %16, %cst_17 {dimension_numbers = #tpu.dot_dimension_numbers<[1], [0], [0], [1], [0, 0, 1, 1], [], []>} : vector<2x512xf32>, vector<512x64xf32>, vector<2x64xf32> -> vector<2x64xf32>
      %c0_18 = arith.constant 0 : index
      %c0_19 = arith.constant 0 : index
      %18 = vector.load %arg4[%c0_18, %c0_19] : memref<1x64xf32, #tpu.memory_space<vmem>>, vector<1x64xf32>
      %19 = vector.broadcast %18 : vector<1x64xf32> to vector<2x64xf32>
      %20 = arith.addf %17, %19 : vector<2x64xf32>
      %cst_20 = arith.constant 0.000000e+00 : f32
      %21 = vector.broadcast %cst_20 : f32 to vector<2x64xf32>
      %22 = arith.maximumf %20, %21 : vector<2x64xf32>
      %c0_21 = arith.constant 0 : index
      %c0_22 = arith.constant 0 : index
      %23 = vector.load %arg12[%c0_21, %c0_22] : memref<2x64xf32, #tpu.memory_space<vmem>>, vector<2x64xf32>
      %c0_23 = arith.constant 0 : index
      %c0_24 = arith.constant 0 : index
      %24 = vector.load %arg6[%c0_23, %c0_24] : memref<1x64xf32, #tpu.memory_space<vmem>>, vector<1x64xf32>
      %25 = vector.broadcast %24 : vector<1x64xf32> to vector<2x64xf32>
      %26 = arith.addf %23, %25 : vector<2x64xf32>
      %cst_25 = arith.constant 0.000000e+00 : f32
      %27 = vector.broadcast %cst_25 : f32 to vector<2x64xf32>
      %28 = arith.maximumf %26, %27 : vector<2x64xf32>
      %c0_26 = arith.constant 0 : index
      %c0_27 = arith.constant 0 : index
      %29 = vector.load %arg7[%c0_26, %c0_27] : memref<1x64xf32, #tpu.memory_space<vmem>>, vector<1x64xf32>
      %30 = vector.broadcast %29 : vector<1x64xf32> to vector<2x64xf32>
      %31 = arith.mulf %22, %30 : vector<2x64xf32>
      %cst_28 = arith.constant dense<0.000000e+00> : vector<2xf32>
      %32 = vector.multi_reduction <add>, %31, %cst_28 [1] : vector<2x64xf32> to vector<2xf32>
      %33 = vector.shape_cast %32 : vector<2xf32> to vector<2x1xf32>
      %c0_29 = arith.constant 0 : index
      %c0_30 = arith.constant 0 : index
      %34 = vector.load %arg8[%c0_29, %c0_30] : memref<1x64xf32, #tpu.memory_space<vmem>>, vector<1x64xf32>
      %35 = vector.broadcast %34 : vector<1x64xf32> to vector<2x64xf32>
      %36 = arith.mulf %28, %35 : vector<2x64xf32>
      %cst_31 = arith.constant dense<0.000000e+00> : vector<2xf32>
      %37 = vector.multi_reduction <add>, %36, %cst_31 [1] : vector<2x64xf32> to vector<2xf32>
      %38 = vector.shape_cast %37 : vector<2xf32> to vector<2x1xf32>
      %39 = arith.addf %33, %38 : vector<2x1xf32>
      %c0_32 = arith.constant 0 : index
      %c0_33 = arith.constant 0 : index
      %40 = memref.load %arg9[%c0_32, %c0_33] : memref<1x1xf32, #tpu.memory_space<smem>>
      %41 = vector.broadcast %40 : f32 to vector<2x1xf32>
      %42 = arith.addf %39, %41 : vector<2x1xf32>
      %cst_34 = arith.constant 0.000000e+00 : f32
      %43 = vector.broadcast %cst_34 : f32 to vector<2x1xf32>
      %44 = arith.maximumf %42, %43 : vector<2x1xf32>
      %c0_35 = arith.constant 0 : index
      %c0_36 = arith.constant 0 : index
      %45 = vector.load %arg11[%c0_35, %c0_36] : memref<2x1xf32, #tpu.memory_space<vmem>>, vector<2x1xf32>
      tpu.vector_store %arg11[%c0_35, %c0_36], %44 {strides = array<i32>} : memref<2x1xf32, #tpu.memory_space<vmem>>, vector<2x1xf32>,
    } else {
    }
    return
  }
  func.func @transform_0(%arg0: i32) -> (i32, i32, i32) {
    %c0_i32 = arith.constant 0 : i32
    %c0_i32_0 = arith.constant 0 : i32
    %c0_i32_1 = arith.constant 0 : i32
    %c0_i32_2 = arith.constant 0 : i32
    return %c0_i32, %c0_i32_0, %c0_i32_1 : i32, i32, i32
  }
  func.func @transform_1(%arg0: i32) -> (i32, i32) {
    %c0_i32 = arith.constant 0 : i32
    %c0_i32_0 = arith.constant 0 : i32
    return %c0_i32, %arg0 : i32, i32
  }
  func.func @transform_2(%arg0: i32) -> (i32, i32) {
    %c0_i32 = arith.constant 0 : i32
    %c0_i32_0 = arith.constant 0 : i32
    %c0_i32_1 = arith.constant 0 : i32
    return %c0_i32, %c0_i32_0 : i32, i32
  }
  func.func @transform_3(%arg0: i32) -> (i32, i32) {
    %c0_i32 = arith.constant 0 : i32
    %c0_i32_0 = arith.constant 0 : i32
    %c0_i32_1 = arith.constant 0 : i32
    return %c0_i32, %c0_i32_0 : i32, i32
  }
  func.func @transform_4(%arg0: i32) -> (i32, i32) {
    %c0_i32 = arith.constant 0 : i32
    %c0_i32_0 = arith.constant 0 : i32
    return %arg0, %c0_i32 : i32, i32
  }
  func.func @transform_5(%arg0: i32) -> (i32, i32) {
    %c0_i32 = arith.constant 0 : i32
    %c0_i32_0 = arith.constant 0 : i32
    %c0_i32_1 = arith.constant 0 : i32
    return %c0_i32, %c0_i32_0 : i32, i32
  }
  func.func @transform_6(%arg0: i32) -> (i32, i32) {
    %c0_i32 = arith.constant 0 : i32
    %c0_i32_0 = arith.constant 0 : i32
    %c0_i32_1 = arith.constant 0 : i32
    return %c0_i32, %c0_i32_0 : i32, i32
  }
  func.func @transform_7(%arg0: i32) -> (i32, i32) {
    %c0_i32 = arith.constant 0 : i32
    %c0_i32_0 = arith.constant 0 : i32
    %c0_i32_1 = arith.constant 0 : i32
    return %c0_i32, %c0_i32_0 : i32, i32
  }
  func.func @transform_8(%arg0: i32) -> (i32, i32) {
    %c0_i32 = arith.constant 0 : i32
    %c0_i32_0 = arith.constant 0 : i32
    %c0_i32_1 = arith.constant 0 : i32
    return %c0_i32, %c0_i32_0 : i32, i32
  }
  func.func @transform_9(%arg0: i32) -> (i32, i32) {
    %c0_i32 = arith.constant 0 : i32
    %c0_i32_0 = arith.constant 0 : i32
    %c0_i32_1 = arith.constant 0 : i32
    return %c0_i32, %c0_i32_0 : i32, i32
  }
  func.func @transform_10(%arg0: i32) -> (i32, i32) {
    %c0_i32 = arith.constant 0 : i32
    %c0_i32_0 = arith.constant 0 : i32
    %c0_i32_1 = arith.constant 0 : i32
    return %c0_i32, %c0_i32_0 : i32, i32
  }
}

</mosaic_0001>

<llo_original>
// kernel: _lambda_.2
$region0: #{_lambda_.2}
  #allocation0 [shape = 'u32[]', space=smem, size = 0x4, offset = 0x4, fixed_abs, tag = 'smem constant byte address 0x4 - core index']
  #allocation1 [shape = 'u32[144,128]{1,0:T(1,128)}', space=vmem, size = 0x12000, scoped, tag = 'internal scratch']
  #allocation2 [shape = 'f32[1,1]{1,0:T(1,128)S(6)}', space=smem, size = 0x200, scoped, tag = 'scoped memory for _lambda_.2']
  %s0 = inlined_call_operand.vmem [shape: f32[2,3,4096], index: 0, kind: input, shape index: {}]
  %s1 = inlined_call_operand.vmem [shape: f32[16,3], index: 1, kind: input, shape index: {}]
  %s2 = inlined_call_operand.vmem [shape: f32[16,1], index: 2, kind: input, shape index: {}]
  %s3 = inlined_call_operand.vmem [shape: bf16[128,16], index: 3, kind: input, shape index: {}]
  %s4 = inlined_call_operand.vmem [shape: f32[128,1], index: 4, kind: input, shape index: {}]
  %s5 = inlined_call_operand.vmem [shape: bf16[1,128], index: 5, kind: input, shape index: {}]
  %s6 = inlined_call_operand.<no memory space> [shape: f32[1,1], index: 6, kind: input, shape index: {}]
  %s7 = inlined_call_operand.vmem [shape: f32[2,1,4096], index: 7, kind: output, shape index: {}]
  %s8 = sld [smem:[#allocation0]]
  $region61: #{_lambda_.2} parent=0
    _
  %s10 = ssub.s32 1, %s8
  %s11 = scalar_select 0, %s10, %s8
  %12 = sst [smem:[#allocation2]] %s6
  loop: start=0, step=1, limit=10
  $region2: #{_lambda_.2} parent=0 // loop_pre_header
    _
  $region3: #{_lambda_.2} parent=0 // loop_header
    %s14 = sphi 0, %s18
    %p15 = scmp.ge.s32.totalorder %s14, 10
    %s21 = sphi 0, %s33
    %s22 = sphi 0, %s29
    %s23 = sphi 0, %s21
    %s24 = sphi 0, %s22
    %s25 = sphi 0, %s23
    %s26 = sphi 0, %s24
    %s38 = sphi 0, %s40
    %s41 = sphi 0, %s38
    %s42 = sphi 0, %s41
    %s58 = sphi 0, %s42
    %s62 = sphi 0, %s62
    %s64 = sphi 0, %s62
    %s65 = sphi 0, %s64
    %s79 = sphi 0, %s65
    %s83 = sphi 0, %s83
    %s85 = sphi 0, %s83
    %s86 = sphi 0, %s85
    %s100 = sphi 0, %s86
    %s104 = sphi 0, %s104
    %s106 = sphi 0, %s104
    %s107 = sphi 0, %s106
    %s121 = sphi 0, %s107
    %s125 = sphi 0, %s125
    %s127 = sphi 0, %s125
    %s128 = sphi 0, %s127
    %s142 = sphi 0, %s128
    %s146 = sphi 0, %s146
    %s148 = sphi 0, %s146
    %s149 = sphi 0, %s148
    %s163 = sphi 0, %s149
    %s167 = sphi 0, %s167
    %s169 = sphi 0, %s167
    %s170 = sphi 0, %s169
    %s184 = sphi 0, %s170
    %s192 = sphi 0, %s194
    %s195 = sphi 0, %s192
    %s196 = sphi 0, %s195
    %s212 = sphi 0, %s196
  $region4: #{_lambda_.2} parent=0 // loop_header_branch
    %17 = sbr.rel (%p15) target = $region8
  $region5: #{_lambda_.2} parent=0 // loop_body
    %s19 = ssub.s32 %s14, 1
    %s20 = ssub.s32 %s14, 2
    %s27 = sadd.s32 1, %s22
    %p28 = scmp.ge.s32.totalorder %s27, 4
    %s29 = scalar_select %p28, 0, %s27
    %s30 = sadd.s32 1, %s21
    %s31 = scalar_select %p28, %s30, %s21
    %p32 = scmp.ge.s32.totalorder %s31, 2
    %s33 = scalar_select %p32, 0, %s31
    %s34 = ssub.s32 %s21, %s33
    %s35 = ssub.s32 %s22, %s29
    %s36 = sor.u32 %s34, %s35
    %p37 = scmp.eq.s32.totalorder %s36, 0
    %s39 = sadd.s32 %s38, 1
    %s40 = scalar_select %p37, %s38, %s39
    %p43 = pneg %p37
    %p44 = scmp.eq.s32.totalorder %s14, 7
    %p45 = por %p43, %p44
    %p46 = scmp.ne.s32.totalorder %s38, %s41
    %p47 = scmp.eq.s32.totalorder %s14, 0
    %p48 = por %p46, %p47
    %p49 = scmp.ne.s32.totalorder %s38, %s41
    %p50 = scmp.eq.s32.totalorder %s19, 7
    %p51 = por %p49, %p50
    %p52 = scmp.ne.s32.totalorder %s41, %s42
    %p53 = scmp.eq.s32.totalorder %s19, 0
    %p54 = por %p52, %p53
    %p55 = scmp.ne.s32.totalorder %s41, %s42
    %p56 = scmp.eq.s32.totalorder %s20, 7
    %p57 = por %p55, %p56
    %p59 = scmp.ne.s32.totalorder %s42, %s58
    %p60 = scmp.eq.s32.totalorder %s20, 0
    %p61 = por %p59, %p60
    %s63 = sadd.s32 %s62, 1
    %p66 = scmp.eq.s32.totalorder %s14, 7
    %p67 = scmp.ne.s32.totalorder %s62, %s64
    %p68 = scmp.eq.s32.totalorder %s14, 0
    %p69 = por %p67, %p68
    %p70 = scmp.ne.s32.totalorder %s62, %s64
    %p71 = scmp.eq.s32.totalorder %s19, 7
    %p72 = por %p70, %p71
    %p73 = scmp.ne.s32.totalorder %s64, %s65
    %p74 = scmp.eq.s32.totalorder %s19, 0
    %p75 = por %p73, %p74
    %p76 = scmp.ne.s32.totalorder %s64, %s65
    %p77 = scmp.eq.s32.totalorder %s20, 7
    %p78 = por %p76, %p77
    %p80 = scmp.ne.s32.totalorder %s65, %s79
    %p81 = scmp.eq.s32.totalorder %s20, 0
    %p82 = por %p80, %p81
    %s84 = sadd.s32 %s83, 1
    %p87 = scmp.eq.s32.totalorder %s14, 7
    %p88 = scmp.ne.s32.totalorder %s83, %s85
    %p89 = scmp.eq.s32.totalorder %s14, 0
    %p90 = por %p88, %p89
    %p91 = scmp.ne.s32.totalorder %s83, %s85
    %p92 = scmp.eq.s32.totalorder %s19, 7
    %p93 = por %p91, %p92
    %p94 = scmp.ne.s32.totalorder %s85, %s86
    %p95 = scmp.eq.s32.totalorder %s19, 0
    %p96 = por %p94, %p95
    %p97 = scmp.ne.s32.totalorder %s85, %s86
    %p98 = scmp.eq.s32.totalorder %s20, 7
    %p99 = por %p97, %p98
    %p101 = scmp.ne.s32.totalorder %s86, %s100
    %p102 = scmp.eq.s32.totalorder %s20, 0
    %p103 = por %p101, %p102
    %s105 = sadd.s32 %s104, 1
    %p108 = scmp.eq.s32.totalorder %s14, 7
    %p109 = scmp.ne.s32.totalorder %s104, %s106
    %p110 = scmp.eq.s32.totalorder %s14, 0
    %p111 = por %p109, %p110
    %p112 = scmp.ne.s32.totalorder %s104, %s106
    %p113 = scmp.eq.s32.totalorder %s19, 7
    %p114 = por %p112, %p113
    %p115 = scmp.ne.s32.totalorder %s106, %s107
    %p116 = scmp.eq.s32.totalorder %s19, 0
    %p117 = por %p115, %p116
    %p118 = scmp.ne.s32.totalorder %s106, %s107
    %p119 = scmp.eq.s32.totalorder %s20, 7
    %p120 = por %p118, %p119
    %p122 = scmp.ne.s32.totalorder %s107, %s121
    %p123 = scmp.eq.s32.totalorder %s20, 0
    %p124 = por %p122, %p123
    %s126 = sadd.s32 %s125, 1
    %p129 = scmp.eq.s32.totalorder %s14, 7
    %p130 = scmp.ne.s32.totalorder %s125, %s127
    %p131 = scmp.eq.s32.totalorder %s14, 0
    %p132 = por %p130, %p131
    %p133 = scmp.ne.s32.totalorder %s125, %s127
    %p134 = scmp.eq.s32.totalorder %s19, 7
    %p135 = por %p133, %p134
    %p136 = scmp.ne.s32.totalorder %s127, %s128
    %p137 = scmp.eq.s32.totalorder %s19, 0
    %p138 = por %p136, %p137
    %p139 = scmp.ne.s32.totalorder %s127, %s128
    %p140 = scmp.eq.s32.totalorder %s20, 7
    %p141 = por %p139, %p140
    %p143 = scmp.ne.s32.totalorder %s128, %s142
    %p144 = scmp.eq.s32.totalorder %s20, 0
    %p145 = por %p143, %p144
    %s147 = sadd.s32 %s146, 1
    %p150 = scmp.eq.s32.totalorder %s14, 7
    %p151 = scmp.ne.s32.totalorder %s146, %s148
    %p152 = scmp.eq.s32.totalorder %s14, 0
    %p153 = por %p151, %p152
    %p154 = scmp.ne.s32.totalorder %s146, %s148
    %p155 = scmp.eq.s32.totalorder %s19, 7
    %p156 = por %p154, %p155
    %p157 = scmp.ne.s32.totalorder %s148, %s149
    %p158 = scmp.eq.s32.totalorder %s19, 0
    %p159 = por %p157, %p158
    %p160 = scmp.ne.s32.totalorder %s148, %s149
    %p161 = scmp.eq.s32.totalorder %s20, 7
    %p162 = por %p160, %p161
    %p164 = scmp.ne.s32.totalorder %s149, %s163
    %p165 = scmp.eq.s32.totalorder %s20, 0
    %p166 = por %p164, %p165
    %s168 = sadd.s32 %s167, 1
    %p171 = scmp.eq.s32.totalorder %s14, 7
    %p172 = scmp.ne.s32.totalorder %s167, %s169
    %p173 = scmp.eq.s32.totalorder %s14, 0
    %p174 = por %p172, %p173
    %p175 = scmp.ne.s32.totalorder %s167, %s169
    %p176 = scmp.eq.s32.totalorder %s19, 7
    %p177 = por %p175, %p176
    %p178 = scmp.ne.s32.totalorder %s169, %s170
    %p179 = scmp.eq.s32.totalorder %s19, 0
    %p180 = por %p178, %p179
    %p181 = scmp.ne.s32.totalorder %s169, %s170
    %p182 = scmp.eq.s32.totalorder %s20, 7
    %p183 = por %p181, %p182
    %p185 = scmp.ne.s32.totalorder %s170, %s184
    %p186 = scmp.eq.s32.totalorder %s20, 0
    %p187 = por %p185, %p186
    %s188 = ssub.s32 %s21, %s33
    %s189 = ssub.s32 %s22, %s29
    %s190 = sor.u32 %s188, %s189
    %p191 = scmp.eq.s32.totalorder %s190, 0
    %s193 = sadd.s32 %s192, 1
    %s194 = scalar_select %p191, %s192, %s193
    %p197 = pneg %p191
    %p198 = scmp.eq.s32.totalorder %s14, 7
    %p199 = por %p197, %p198
    %p200 = scmp.ne.s32.totalorder %s192, %s195
    %p201 = scmp.eq.s32.totalorder %s14, 0
    %p202 = por %p200, %p201
    %p203 = scmp.ne.s32.totalorder %s192, %s195
    %p204 = scmp.eq.s32.totalorder %s19, 7
    %p205 = por %p203, %p204
    %p206 = scmp.ne.s32.totalorder %s195, %s196
    %p207 = scmp.eq.s32.totalorder %s19, 0
    %p208 = por %p206, %p207
    %p209 = scmp.ne.s32.totalorder %s195, %s196
    %p210 = scmp.eq.s32.totalorder %s20, 7
    %p211 = por %p209, %p210
    %p213 = scmp.ne.s32.totalorder %s196, %s212
    %p214 = scmp.eq.s32.totalorder %s20, 0
    %p215 = por %p213, %p214
    %p216 = scmp.le.s32.totalorder 1, %s14
    %p217 = scmp.lt.s32.totalorder %s14, 9
    %p218 = pnand %p216, %p217
    %p219 = pneg %p218
    // Predicated region
    $region9: #{_lambda_.2} parent=5 // pred_check
      _
    $region10: #{_lambda_.2} parent=5 // pred_check_branch
      %221 = sbr.rel (%p218) target = $region12
    $region11: #{_lambda_.2} parent=5 // pred_region
      %s222 = ssub.s32 %s14, 1
      // Predicated region
      $region13: #{_lambda_.2} parent=11 // pred_check
        %p223 = pneg %p75
      $region14: #{_lambda_.2} parent=11 // pred_check_branch
        %225 = sbr.rel (%p223) target = $region16
      $region15: #{_lambda_.2} parent=11 // pred_region
        _
      $region16: #{_lambda_.2} parent=11 // pred_fallthru
        _
      // Predicated region
      $region17: #{_lambda_.2} parent=11 // pred_check
        %p226 = pneg %p96
      $region18: #{_lambda_.2} parent=11 // pred_check_branch
        %228 = sbr.rel (%p226) target = $region20
      $region19: #{_lambda_.2} parent=11 // pred_region
        _
      $region20: #{_lambda_.2} parent=11 // pred_fallthru
        _
      // Predicated region
      $region21: #{_lambda_.2} parent=11 // pred_check
        %p229 = pneg %p117
      $region22: #{_lambda_.2} parent=11 // pred_check_branch
        %231 = sbr.rel (%p229) target = $region24
      $region23: #{_lambda_.2} parent=11 // pred_region
        _
      $region24: #{_lambda_.2} parent=11 // pred_fallthru
        _
      // Predicated region
      $region25: #{_lambda_.2} parent=11 // pred_check
        %p232 = pneg %p138
      $region26: #{_lambda_.2} parent=11 // pred_check_branch
        %234 = sbr.rel (%p232) target = $region28
      $region27: #{_lambda_.2} parent=11 // pred_region
        _
      $region28: #{_lambda_.2} parent=11 // pred_fallthru
        _
      // Predicated region
      $region29: #{_lambda_.2} parent=11 // pred_check
        %p235 = pneg %p159
      $region30: #{_lambda_.2} parent=11 // pred_check_branch
        %237 = sbr.rel (%p235) target = $region32
      $region31: #{_lambda_.2} parent=11 // pred_region
        _
      $region32: #{_lambda_.2} parent=11 // pred_fallthru
        _
      // Predicated region
      $region33: #{_lambda_.2} parent=11 // pred_check
        %p238 = pneg %p180
      $region34: #{_lambda_.2} parent=11 // pred_check_branch
        %240 = sbr.rel (%p238) target = $region36
      $region35: #{_lambda_.2} parent=11 // pred_region
        _
      $region36: #{_lambda_.2} parent=11 // pred_fallthru
        _
    $region12: #{_lambda_.2} parent=5 // pred_fallthru
      _
    %p241 = scmp.lt.s32.totalorder %s14, 8
    // Predicated region
    $region37: #{_lambda_.2} parent=5 // pred_check
      %p242 = pneg %p241
    $region38: #{_lambda_.2} parent=5 // pred_check_branch
      %244 = sbr.rel (%p242) target = $region40
    $region39: #{_lambda_.2} parent=5 // pred_region
      // Predicated region
      $region41: #{_lambda_.2} parent=39 // pred_check
        %p245 = pneg %p48
      $region42: #{_lambda_.2} parent=39 // pred_check_branch
        %247 = sbr.rel (%p245) target = $region44
      $region43: #{_lambda_.2} parent=39 // pred_region
        %s248 = smul.u32 8, %s22
        %p249 = scmp.lt.s32.totalorder %s21, 1
        %s250 = scalar_select %p249, %s21, 1
        %p251 = scmp.lt.s32.totalorder %s248, 31
        %s252 = scalar_select %p251, %s248, 31
        %s253 = smul.addr %s250, 32
        %s254 = sadd.s32 %s252, %s253
        %s255 = smul.addr %s254, 4
        %s256 = scalar_lea.vmem %s0, %s255
        %s257 = smul.u32 8, %s22
      $region44: #{_lambda_.2} parent=39 // pred_fallthru
        _
    $region40: #{_lambda_.2} parent=5 // pred_fallthru
      _
    %p258 = scmp.le.s32.totalorder 1, %s14
    %p259 = scmp.lt.s32.totalorder %s14, 9
    %p260 = pnand %p258, %p259
    %p261 = pneg %p260
    // Predicated region
    $region45: #{_lambda_.2} parent=5 // pred_check
      _
    $region46: #{_lambda_.2} parent=5 // pred_check_branch
      %263 = sbr.rel (%p260) target = $region48
    $region47: #{_lambda_.2} parent=5 // pred_region
      %s264 = ssub.s32 %s14, 1
      %s265 = smul.u32 8, %s24
      %p266 = scmp.lt.s32.totalorder %s23, 1
      %s267 = scalar_select %p266, %s23, 1
      %p268 = scmp.lt.s32.totalorder %s265, 31
      %s269 = scalar_select %p268, %s265, 31
      %s270 = smul.addr %s267, 32
      %s271 = sadd.s32 %s269, %s270
      %s272 = smul.addr %s271, 4
      %s273 = scalar_lea.vmem %s0, %s272
      %p274 = pneg %p54
      %p275 = pneg %p51
      %p276 = pneg %p75
      %p277 = pneg %p72
      %p278 = pneg %p96
      %p279 = pneg %p93
      %p280 = pneg %p117
      %p281 = pneg %p114
      %p282 = pneg %p138
      %p283 = pneg %p135
      %p284 = pneg %p159
      %p285 = pneg %p156
      %p286 = pneg %p180
      %p287 = pneg %p177
      %p288 = pneg %p208
      %p289 = pneg %p205
      %s290 = smul.u32 8, %s24
      %p291 = scmp.lt.s32.totalorder %s23, 1
      %s292 = scalar_select %p291, %s23, 1
      %p293 = scmp.lt.s32.totalorder %s290, 31
      %s294 = scalar_select %p293, %s290, 31
      %s295 = smul.addr %s292, 32
      %s296 = sadd.s32 %s294, %s295
      %s297 = scalar_lea.vmem %s7, %s296
      %s298 = smul.u32 8, %s24
      %p299 = scmp.lt.s32.totalorder %s23, 1
      %s300 = scalar_select %p299, %s23, 1
      %p301 = scmp.lt.s32.totalorder %s298, 31
      %s302 = scalar_select %p301, %s298, 31
      %s303 = smul.addr %s300, 32
      %s304 = sadd.s32 %s302, %s303
      %s305 = smul.addr %s304, 4
      %s306 = scalar_lea.vmem %s0, %s305
      %s307 = smul.u32 8, %s24
      %s308 = smul.u32 8, %s24
      %p309 = scmp.lt.s32.totalorder %s23, 1
      %s310 = scalar_select %p309, %s23, 1
      %p311 = scmp.lt.s32.totalorder %s308, 31
      %s312 = scalar_select %p311, %s308, 31
      %s313 = smul.addr %s310, 32
      %s314 = sadd.s32 %s312, %s313
      %s315 = scalar_lea.vmem %s7, %s314
      %s316 = smul.u32 8, %s24
      %v318 = vld [vmem:[%s306] sm:$0x77]
      %v319 = vld [vmem:[%s306 + $0x8] sm:$0x77]
      %v320 = vld [vmem:[%s306 + $0x10] sm:$0x77]
      %v321 = vld [vmem:[%s306 + $0x18] sm:$0x77]
      %v322 = vld [vmem:[%s1] sm:$0xff]
      %v323 = vld [vmem:[%s1 + $0x8] sm:$0xff]
      %325 = vset.pattern.permute.xlu0 0
      %326 = vperm.xlu0 %325, %v322
      %v327 = vpop.permute.xlu0 %326
      %330 = vset.pattern.permute.xlu0 0
      %331 = vperm.xlu0 %330, %v323
      %v332 = vpop.permute.xlu0 %331
      %v338 = vlaneseq
      %v339 = vshrl.u32 %v338, 7
      %v340 = vsub.s32 0, %v339
      %v341 = vrot.slane %v318, %v340
      %v342 = vlaneseq
      %v343 = vshrl.u32 %v342, 7
      %v344 = vsub.s32 4, %v343
      %v345 = vrot.slane %v318, %v344
      %v346 = vlaneseq
      %v347 = vshrl.u32 %v346, 7
      %v348 = vsub.s32 0, %v347
      %v349 = vrot.slane %v319, %v348
      %v350 = vlaneseq
      %v351 = vshrl.u32 %v350, 7
      %v352 = vsub.s32 4, %v351
      %v353 = vrot.slane %v319, %v352
      %v354 = vlaneseq
      %v355 = vshrl.u32 %v354, 7
      %v356 = vsub.s32 0, %v355
      %v357 = vrot.slane %v320, %v356
      %v358 = vlaneseq
      %v359 = vshrl.u32 %v358, 7
      %v360 = vsub.s32 4, %v359
      %v361 = vrot.slane %v320, %v360
      %v362 = vlaneseq
      %v363 = vshrl.u32 %v362, 7
      %v364 = vsub.s32 0, %v363
      %v365 = vrot.slane %v321, %v364
      %v366 = vlaneseq
      %v367 = vshrl.u32 %v366, 7
      %v368 = vsub.s32 4, %v367
      %v369 = vrot.slane %v321, %v368
      %v378 = vlaneseq
      %v379 = vshrl.u32 %v378, 7
      %v380 = vsub.s32 0, %v379
      %v381 = vrot.slane %v341, %v380
      %v382 = vlaneseq
      %v383 = vshrl.u32 %v382, 7
      %v384 = vsub.s32 0, %v383
      %v385 = vrot.slane %v345, %v384
      %v386 = vlaneseq
      %v387 = vshrl.u32 %v386, 7
      %v388 = vsub.s32 0, %v387
      %v389 = vrot.slane %v349, %v388
      %v390 = vlaneseq
      %v391 = vshrl.u32 %v390, 7
      %v392 = vsub.s32 0, %v391
      %v393 = vrot.slane %v353, %v392
      %v394 = vlaneseq
      %v395 = vshrl.u32 %v394, 7
      %v396 = vsub.s32 0, %v395
      %v397 = vrot.slane %v357, %v396
      %v398 = vlaneseq
      %v399 = vshrl.u32 %v398, 7
      %v400 = vsub.s32 0, %v399
      %v401 = vrot.slane %v361, %v400
      %v402 = vlaneseq
      %v403 = vshrl.u32 %v402, 7
      %v404 = vsub.s32 0, %v403
      %v405 = vrot.slane %v365, %v404
      %v406 = vlaneseq
      %v407 = vshrl.u32 %v406, 7
      %v408 = vsub.s32 0, %v407
      %v409 = vrot.slane %v369, %v408
      %v410 = vmul.f32 %v327, %v381
      %v411 = vmul.f32 %v327, %v385
      %v412 = vmul.f32 %v327, %v389
      %v413 = vmul.f32 %v327, %v393
      %v414 = vmul.f32 %v327, %v397
      %v415 = vmul.f32 %v327, %v401
      %v416 = vmul.f32 %v327, %v405
      %v417 = vmul.f32 %v327, %v409
      %v418 = vmul.f32 %v332, %v381
      %v419 = vmul.f32 %v332, %v385
      %v420 = vmul.f32 %v332, %v389
      %v421 = vmul.f32 %v332, %v393
      %v422 = vmul.f32 %v332, %v397
      %v423 = vmul.f32 %v332, %v401
      %v424 = vmul.f32 %v332, %v405
      %v425 = vmul.f32 %v332, %v409
      %426 = vset.pattern.permute.xlu0 1
      %427 = vperm.xlu0 %426, %v322
      %v428 = vpop.permute.xlu0 %427
      %430 = vset.pattern.permute.xlu0 1
      %431 = vperm.xlu0 %430, %v323
      %v432 = vpop.permute.xlu0 %431
      %v434 = vlaneseq
      %v435 = vshrl.u32 %v434, 7
      %v436 = vsub.s32 1, %v435
      %v437 = vrot.slane %v318, %v436
      %v438 = vlaneseq
      %v439 = vshrl.u32 %v438, 7
      %v440 = vsub.s32 5, %v439
      %v441 = vrot.slane %v318, %v440
      %v442 = vlaneseq
      %v443 = vshrl.u32 %v442, 7
      %v444 = vsub.s32 1, %v443
      %v445 = vrot.slane %v319, %v444
      %v446 = vlaneseq
      %v447 = vshrl.u32 %v446, 7
      %v448 = vsub.s32 5, %v447
      %v449 = vrot.slane %v319, %v448
      %v450 = vlaneseq
      %v451 = vshrl.u32 %v450, 7
      %v452 = vsub.s32 1, %v451
      %v453 = vrot.slane %v320, %v452
      %v454 = vlaneseq
      %v455 = vshrl.u32 %v454, 7
      %v456 = vsub.s32 5, %v455
      %v457 = vrot.slane %v320, %v456
      %v458 = vlaneseq
      %v459 = vshrl.u32 %v458, 7
      %v460 = vsub.s32 1, %v459
      %v461 = vrot.slane %v321, %v460
      %v462 = vlaneseq
      %v463 = vshrl.u32 %v462, 7
      %v464 = vsub.s32 5, %v463
      %v465 = vrot.slane %v321, %v464
      %v474 = vlaneseq
      %v475 = vshrl.u32 %v474, 7
      %v476 = vsub.s32 1, %v475
      %v477 = vrot.slane %v437, %v476
      %v478 = vlaneseq
      %v479 = vshrl.u32 %v478, 7
      %v480 = vsub.s32 1, %v479
      %v481 = vrot.slane %v441, %v480
      %v482 = vlaneseq
      %v483 = vshrl.u32 %v482, 7
      %v484 = vsub.s32 1, %v483
      %v485 = vrot.slane %v445, %v484
      %v486 = vlaneseq
      %v487 = vshrl.u32 %v486, 7
      %v488 = vsub.s32 1, %v487
      %v489 = vrot.slane %v449, %v488
      %v490 = vlaneseq
      %v491 = vshrl.u32 %v490, 7
      %v492 = vsub.s32 1, %v491
      %v493 = vrot.slane %v453, %v492
      %v494 = vlaneseq
      %v495 = vshrl.u32 %v494, 7
      %v496 = vsub.s32 1, %v495
      %v497 = vrot.slane %v457, %v496
      %v498 = vlaneseq
      %v499 = vshrl.u32 %v498, 7
      %v500 = vsub.s32 1, %v499
      %v501 = vrot.slane %v461, %v500
      %v502 = vlaneseq
      %v503 = vshrl.u32 %v502, 7
      %v504 = vsub.s32 1, %v503
      %v505 = vrot.slane %v465, %v504
      %v506 = vmul.f32 %v428, %v477
      %v507 = vmul.f32 %v428, %v481
      %v508 = vmul.f32 %v428, %v485
      %v509 = vmul.f32 %v428, %v489
      %v510 = vmul.f32 %v428, %v493
      %v511 = vmul.f32 %v428, %v497
      %v512 = vmul.f32 %v428, %v501
      %v513 = vmul.f32 %v428, %v505
      %v514 = vmul.f32 %v432, %v477
      %v515 = vmul.f32 %v432, %v481
      %v516 = vmul.f32 %v432, %v485
      %v517 = vmul.f32 %v432, %v489
      %v518 = vmul.f32 %v432, %v493
      %v519 = vmul.f32 %v432, %v497
      %v520 = vmul.f32 %v432, %v501
      %v521 = vmul.f32 %v432, %v505
      %v522 = vadd.f32 %v410, %v506
      %v523 = vadd.f32 %v411, %v507
      %v524 = vadd.f32 %v412, %v508
      %v525 = vadd.f32 %v413, %v509
      %v526 = vadd.f32 %v414, %v510
      %v527 = vadd.f32 %v415, %v511
      %v528 = vadd.f32 %v416, %v512
      %v529 = vadd.f32 %v417, %v513
      %v530 = vadd.f32 %v418, %v514
      %v531 = vadd.f32 %v419, %v515
      %v532 = vadd.f32 %v420, %v516
      %v533 = vadd.f32 %v421, %v517
      %v534 = vadd.f32 %v422, %v518
      %v535 = vadd.f32 %v423, %v519
      %v536 = vadd.f32 %v424, %v520
      %v537 = vadd.f32 %v425, %v521
      %538 = vset.pattern.permute.xlu0 2
      %539 = vperm.xlu0 %538, %v322
      %v540 = vpop.permute.xlu0 %539
      %542 = vset.pattern.permute.xlu0 2
      %543 = vperm.xlu0 %542, %v323
      %v544 = vpop.permute.xlu0 %543
      %v546 = vlaneseq
      %v547 = vshrl.u32 %v546, 7
      %v548 = vsub.s32 2, %v547
      %v549 = vrot.slane %v318, %v548
      %v550 = vlaneseq
      %v551 = vshrl.u32 %v550, 7
      %v552 = vsub.s32 6, %v551
      %v553 = vrot.slane %v318, %v552
      %v554 = vlaneseq
      %v555 = vshrl.u32 %v554, 7
      %v556 = vsub.s32 2, %v555
      %v557 = vrot.slane %v319, %v556
      %v558 = vlaneseq
      %v559 = vshrl.u32 %v558, 7
      %v560 = vsub.s32 6, %v559
      %v561 = vrot.slane %v319, %v560
      %v562 = vlaneseq
      %v563 = vshrl.u32 %v562, 7
      %v564 = vsub.s32 2, %v563
      %v565 = vrot.slane %v320, %v564
      %v566 = vlaneseq
      %v567 = vshrl.u32 %v566, 7
      %v568 = vsub.s32 6, %v567
      %v569 = vrot.slane %v320, %v568
      %v570 = vlaneseq
      %v571 = vshrl.u32 %v570, 7
      %v572 = vsub.s32 2, %v571
      %v573 = vrot.slane %v321, %v572
      %v574 = vlaneseq
      %v575 = vshrl.u32 %v574, 7
      %v576 = vsub.s32 6, %v575
      %v577 = vrot.slane %v321, %v576
      %v586 = vlaneseq
      %v587 = vshrl.u32 %v586, 7
      %v588 = vsub.s32 2, %v587
      %v589 = vrot.slane %v549, %v588
      %v590 = vlaneseq
      %v591 = vshrl.u32 %v590, 7
      %v592 = vsub.s32 2, %v591
      %v593 = vrot.slane %v553, %v592
      %v594 = vlaneseq
      %v595 = vshrl.u32 %v594, 7
      %v596 = vsub.s32 2, %v595
      %v597 = vrot.slane %v557, %v596
      %v598 = vlaneseq
      %v599 = vshrl.u32 %v598, 7
      %v600 = vsub.s32 2, %v599
      %v601 = vrot.slane %v561, %v600
      %v602 = vlaneseq
      %v603 = vshrl.u32 %v602, 7
      %v604 = vsub.s32 2, %v603
      %v605 = vrot.slane %v565, %v604
      %v606 = vlaneseq
      %v607 = vshrl.u32 %v606, 7
      %v608 = vsub.s32 2, %v607
      %v609 = vrot.slane %v569, %v608
      %v610 = vlaneseq
      %v611 = vshrl.u32 %v610, 7
      %v612 = vsub.s32 2, %v611
      %v613 = vrot.slane %v573, %v612
      %v614 = vlaneseq
      %v615 = vshrl.u32 %v614, 7
      %v616 = vsub.s32 2, %v615
      %v617 = vrot.slane %v577, %v616
      %v618 = vmul.f32 %v540, %v589
      %v619 = vmul.f32 %v540, %v593
      %v620 = vmul.f32 %v540, %v597
      %v621 = vmul.f32 %v540, %v601
      %v622 = vmul.f32 %v540, %v605
      %v623 = vmul.f32 %v540, %v609
      %v624 = vmul.f32 %v540, %v613
      %v625 = vmul.f32 %v540, %v617
      %v626 = vmul.f32 %v544, %v589
      %v627 = vmul.f32 %v544, %v593
      %v628 = vmul.f32 %v544, %v597
      %v629 = vmul.f32 %v544, %v601
      %v630 = vmul.f32 %v544, %v605
      %v631 = vmul.f32 %v544, %v609
      %v632 = vmul.f32 %v544, %v613
      %v633 = vmul.f32 %v544, %v617
      %v634 = vadd.f32 %v522, %v618
      %v635 = vadd.f32 %v523, %v619
      %v636 = vadd.f32 %v524, %v620
      %v637 = vadd.f32 %v525, %v621
      %v638 = vadd.f32 %v526, %v622
      %v639 = vadd.f32 %v527, %v623
      %v640 = vadd.f32 %v528, %v624
      %v641 = vadd.f32 %v529, %v625
      %v642 = vadd.f32 %v530, %v626
      %v643 = vadd.f32 %v531, %v627
      %v644 = vadd.f32 %v532, %v628
      %v645 = vadd.f32 %v533, %v629
      %v646 = vadd.f32 %v534, %v630
      %v647 = vadd.f32 %v535, %v631
      %v648 = vadd.f32 %v536, %v632
      %v649 = vadd.f32 %v537, %v633
      %v650 = vld [vmem:[%s2] sm:$0xff]
      %v651 = vld [vmem:[%s2 + $0x8] sm:$0xff]
      %653 = vset.pattern.permute.xlu0 0
      %654 = vperm.xlu0 %653, %v650
      %v655 = vpop.permute.xlu0 %654
      %658 = vset.pattern.permute.xlu0 0
      %659 = vperm.xlu0 %658, %v651
      %v660 = vpop.permute.xlu0 %659
      %v662 = vadd.f32 %v634, %v655
      %v663 = vadd.f32 %v635, %v655
      %v664 = vadd.f32 %v636, %v655
      %v665 = vadd.f32 %v637, %v655
      %v666 = vadd.f32 %v638, %v655
      %v667 = vadd.f32 %v639, %v655
      %v668 = vadd.f32 %v640, %v655
      %v669 = vadd.f32 %v641, %v655
      %v670 = vadd.f32 %v642, %v660
      %v671 = vadd.f32 %v643, %v660
      %v672 = vadd.f32 %v644, %v660
      %v673 = vadd.f32 %v645, %v660
      %v674 = vadd.f32 %v646, %v660
      %v675 = vadd.f32 %v647, %v660
      %v676 = vadd.f32 %v648, %v660
      %v677 = vadd.f32 %v649, %v660
      %v678 = vtanh.pop %v662
      %v679 = vtanh.pop %v663
      %v680 = vtanh.pop %v664
      %v681 = vtanh.pop %v665
      %v682 = vtanh.pop %v666
      %v683 = vtanh.pop %v667
      %v684 = vtanh.pop %v668
      %v685 = vtanh.pop %v669
      %v686 = vtanh.pop %v670
      %v687 = vtanh.pop %v671
      %v688 = vtanh.pop %v672
      %v689 = vtanh.pop %v673
      %v690 = vtanh.pop %v674
      %v691 = vtanh.pop %v675
      %v692 = vtanh.pop %v676
      %v693 = vtanh.pop %v677
      %v694 = vld [vmem:[%s3] sm:$0xf]
      %v695 = vld [vmem:[%s3 + $0x4] sm:$0xf]
      %v696 = vld [vmem:[%s3 + $0x8] sm:$0xf]
      %v697 = vld [vmem:[%s3 + $0xc] sm:$0xf]
      %v698 = vld [vmem:[%s3 + $0x10] sm:$0xf]
      %v699 = vld [vmem:[%s3 + $0x14] sm:$0xf]
      %v700 = vld [vmem:[%s3 + $0x18] sm:$0xf]
      %v701 = vld [vmem:[%s3 + $0x1c] sm:$0xf]
      %v702 = vld [vmem:[%s3 + $0x20] sm:$0xf]
      %v703 = vld [vmem:[%s3 + $0x24] sm:$0xf]
      %v704 = vld [vmem:[%s3 + $0x28] sm:$0xf]
      %v705 = vld [vmem:[%s3 + $0x2c] sm:$0xf]
      %v706 = vld [vmem:[%s3 + $0x30] sm:$0xf]
      %v707 = vld [vmem:[%s3 + $0x34] sm:$0xf]
      %v708 = vld [vmem:[%s3 + $0x38] sm:$0xf]
      %v709 = vld [vmem:[%s3 + $0x3c] sm:$0xf]
      %v710 = vpack.c.bf16 %v686, %v678
      %v711 = vpack.c.bf16 %v687, %v679
      %v712 = vpack.c.bf16 %v688, %v680
      %v713 = vpack.c.bf16 %v689, %v681
      %v714 = vpack.c.bf16 %v690, %v682
      %v715 = vpack.c.bf16 %v691, %v683
      %v716 = vpack.c.bf16 %v692, %v684
      %v717 = vpack.c.bf16 %v693, %v685
      %v718 = vld [vmem:[%s4] sm:$0xff]
      %v719 = vld [vmem:[%s4 + $0x8] sm:$0xff]
      %v720 = vld [vmem:[%s4 + $0x10] sm:$0xff]
      %v721 = vld [vmem:[%s4 + $0x18] sm:$0xff]
      %v722 = vld [vmem:[%s4 + $0x20] sm:$0xff]
      %v723 = vld [vmem:[%s4 + $0x28] sm:$0xff]
      %v724 = vld [vmem:[%s4 + $0x30] sm:$0xff]
      %v725 = vld [vmem:[%s4 + $0x38] sm:$0xff]
      %v726 = vld [vmem:[%s4 + $0x40] sm:$0xff]
      %v727 = vld [vmem:[%s4 + $0x48] sm:$0xff]
      %v728 = vld [vmem:[%s4 + $0x50] sm:$0xff]
      %v729 = vld [vmem:[%s4 + $0x58] sm:$0xff]
      %v730 = vld [vmem:[%s4 + $0x60] sm:$0xff]
      %v731 = vld [vmem:[%s4 + $0x68] sm:$0xff]
      %v732 = vld [vmem:[%s4 + $0x70] sm:$0xff]
      %v733 = vld [vmem:[%s4 + $0x78] sm:$0xff]
      %735 = vset.pattern.permute.xlu0 0
      %736 = vperm.xlu0 %735, %v718
      %v737 = vpop.permute.xlu0 %736
      %740 = vset.pattern.permute.xlu0 0
      %741 = vperm.xlu0 %740, %v719
      %v742 = vpop.permute.xlu0 %741
      %745 = vset.pattern.permute.xlu0 0
      %746 = vperm.xlu0 %745, %v720
      %v747 = vpop.permute.xlu0 %746
      %750 = vset.pattern.permute.xlu0 0
      %751 = vperm.xlu0 %750, %v721
      %v752 = vpop.permute.xlu0 %751
      %755 = vset.pattern.permute.xlu0 0
      %756 = vperm.xlu0 %755, %v722
      %v757 = vpop.permute.xlu0 %756
      %760 = vset.pattern.permute.xlu0 0
      %761 = vperm.xlu0 %760, %v723
      %v762 = vpop.permute.xlu0 %761
      %765 = vset.pattern.permute.xlu0 0
      %766 = vperm.xlu0 %765, %v724
      %v767 = vpop.permute.xlu0 %766
      %770 = vset.pattern.permute.xlu0 0
      %771 = vperm.xlu0 %770, %v725
      %v772 = vpop.permute.xlu0 %771
      %775 = vset.pattern.permute.xlu0 0
      %776 = vperm.xlu0 %775, %v726
      %v777 = vpop.permute.xlu0 %776
      %780 = vset.pattern.permute.xlu0 0
      %781 = vperm.xlu0 %780, %v727
      %v782 = vpop.permute.xlu0 %781
      %785 = vset.pattern.permute.xlu0 0
      %786 = vperm.xlu0 %785, %v728
      %v787 = vpop.permute.xlu0 %786
      %790 = vset.pattern.permute.xlu0 0
      %791 = vperm.xlu0 %790, %v729
      %v792 = vpop.permute.xlu0 %791
      %795 = vset.pattern.permute.xlu0 0
      %796 = vperm.xlu0 %795, %v730
      %v797 = vpop.permute.xlu0 %796
      %800 = vset.pattern.permute.xlu0 0
      %801 = vperm.xlu0 %800, %v731
      %v802 = vpop.permute.xlu0 %801
      %805 = vset.pattern.permute.xlu0 0
      %806 = vperm.xlu0 %805, %v732
      %v807 = vpop.permute.xlu0 %806
      %810 = vset.pattern.permute.xlu0 0
      %811 = vperm.xlu0 %810, %v733
      %v812 = vpop.permute.xlu0 %811
      %v830 = vunpack.c.l.b16 %v694
      %v831 = vunpack.c.l.b16 %v695
      %v832 = vunpack.c.l.b16 %v696
      %v833 = vunpack.c.l.b16 %v697
      %v834 = vunpack.c.l.b16 %v698
      %v835 = vunpack.c.l.b16 %v699
      %v836 = vunpack.c.l.b16 %v700
      %v837 = vunpack.c.l.b16 %v701
      %v838 = vunpack.c.l.b16 %v702
      %v839 = vunpack.c.l.b16 %v703
      %v840 = vunpack.c.l.b16 %v704
      %v841 = vunpack.c.l.b16 %v705
      %v842 = vunpack.c.l.b16 %v706
      %v843 = vunpack.c.l.b16 %v707
      %v844 = vunpack.c.l.b16 %v708
      %v845 = vunpack.c.l.b16 %v709
      %v846 = vpack.c.b16 %v831, %v830
      %v847 = vpack.c.b16 %v833, %v832
      %v848 = vpack.c.b16 %v835, %v834
      %v849 = vpack.c.b16 %v837, %v836
      %v850 = vpack.c.b16 %v839, %v838
      %v851 = vpack.c.b16 %v841, %v840
      %v852 = vpack.c.b16 %v843, %v842
      %v853 = vpack.c.b16 %v845, %v844
      %vm854 = vcmask 130048
      %v856 = vsel %vm854, %v846, 0
      %v859 = vsel %vm854, %v847, 0
      %v862 = vsel %vm854, %v848, 0
      %v865 = vsel %vm854, %v849, 0
      %v868 = vsel %vm854, %v850, 0
      %v871 = vsel %vm854, %v851, 0
      %v874 = vsel %vm854, %v852, 0
      %v877 = vsel %vm854, %v853, 0
      %879 = vmatprep.subr.bf16.mxu0 %v711
      %880 = vmatpush1.bf16.msra.mxu0 %v710
      %881 = vmatprep.subr.bf16.mxu0 0
      %882 = vmatpush1.bf16.msra.mxu0 0
      %883 = vmatprep.subr.bf16.mxu0 0
      %884 = vmatpush1.bf16.msra.mxu0 0
      %885 = vmatprep.subr.bf16.mxu0 0
      %886 = vmatpush1.bf16.msra.mxu0 0
      %887 = vmatprep.subr.bf16.mxu0 0
      %888 = vmatpush1.bf16.msra.mxu0 0
      %889 = vmatprep.subr.bf16.mxu0 0
      %890 = vmatpush1.bf16.msra.mxu0 0
      %891 = vmatprep.subr.bf16.mxu0 0
      %892 = vmatpush1.bf16.msra.mxu0 0
      %893 = vmatprep.subr.bf16.mxu0 0
      %894 = vmatpush1.bf16.msra.mxu0 0
      %895 = vmatprep.subr.bf16.mxu0 0
      %896 = vmatpush1.bf16.msra.mxu0 0
      %897 = vmatprep.subr.bf16.mxu0 0
      %898 = vmatpush1.bf16.msra.mxu0 0
      %899 = vmatprep.subr.bf16.mxu0 0
      %900 = vmatpush1.bf16.msra.mxu0 0
      %901 = vmatprep.subr.bf16.mxu0 0
      %902 = vmatpush1.bf16.msra.mxu0 0
      %903 = vmatprep.subr.bf16.mxu0 0
      %904 = vmatpush1.bf16.msra.mxu0 0
      %905 = vmatprep.subr.bf16.mxu0 0
      %906 = vmatpush1.bf16.msra.mxu0 0
      %907 = vmatprep.subr.bf16.mxu0 0
      %908 = vmatpush1.bf16.msra.mxu0 0
      %909 = vmatprep.subr.bf16.mxu0 0
      %910 = vmatpush1.bf16.msra.mxu0 0
      %911 = vmatprep.mubr.bf16.mxu0 0
      %912 = vmatmul.mubr.bf16.gmra.mrb[0].mxu0 %v856
      %v913 = vpop.f32.mrb[0].mxu0
      %v914 = vadd.f32 %v737, %v913
      %v915 = vpop.f32.mrb[0].mxu0
      %v916 = vadd.f32 %v737, %v915
      %v917 = vpop.f32.mrb[0].mxu0
      %v918 = vadd.f32 %v742, %v917
      %v919 = vpop.f32.mrb[0].mxu0
      %v920 = vadd.f32 %v742, %v919
      %921 = vmatprep.mubr.bf16.mxu0 0
      %922 = vmatmul.mubr.bf16.gmra.mrb[0].mxu0 %v859
      %v923 = vpop.f32.mrb[0].mxu0
      %v924 = vadd.f32 %v747, %v923
      %v925 = vpop.f32.mrb[0].mxu0
      %v926 = vadd.f32 %v747, %v925
      %v927 = vpop.f32.mrb[0].mxu0
      %v928 = vadd.f32 %v752, %v927
      %v929 = vpop.f32.mrb[0].mxu0
      %v930 = vadd.f32 %v752, %v929
      %931 = vmatprep.mubr.bf16.mxu0 0
      %932 = vmatmul.mubr.bf16.gmra.mrb[0].mxu0 %v862
      %v933 = vpop.f32.mrb[0].mxu0
      %v934 = vadd.f32 %v757, %v933
      %v935 = vpop.f32.mrb[0].mxu0
      %v936 = vadd.f32 %v757, %v935
      %v937 = vpop.f32.mrb[0].mxu0
      %v938 = vadd.f32 %v762, %v937
      %v939 = vpop.f32.mrb[0].mxu0
      %v940 = vadd.f32 %v762, %v939
      %941 = vmatprep.mubr.bf16.mxu0 0
      %942 = vmatmul.mubr.bf16.gmra.mrb[0].mxu0 %v865
      %v943 = vpop.f32.mrb[0].mxu0
      %v944 = vadd.f32 %v767, %v943
      %v945 = vpop.f32.mrb[0].mxu0
      %v946 = vadd.f32 %v767, %v945
      %v947 = vpop.f32.mrb[0].mxu0
      %v948 = vadd.f32 %v772, %v947
      %v949 = vpop.f32.mrb[0].mxu0
      %v950 = vadd.f32 %v772, %v949
      %951 = vmatprep.mubr.bf16.mxu0 0
      %952 = vmatmul.mubr.bf16.gmra.mrb[0].mxu0 %v868
      %v953 = vpop.f32.mrb[0].mxu0
      %v954 = vadd.f32 %v777, %v953
      %v955 = vpop.f32.mrb[0].mxu0
      %v956 = vadd.f32 %v777, %v955
      %v957 = vpop.f32.mrb[0].mxu0
      %v958 = vadd.f32 %v782, %v957
      %v959 = vpop.f32.mrb[0].mxu0
      %v960 = vadd.f32 %v782, %v959
      %961 = vmatprep.mubr.bf16.mxu0 0
      %962 = vmatmul.mubr.bf16.gmra.mrb[0].mxu0 %v871
      %v963 = vpop.f32.mrb[0].mxu0
      %v964 = vadd.f32 %v787, %v963
      %v965 = vpop.f32.mrb[0].mxu0
      %v966 = vadd.f32 %v787, %v965
      %v967 = vpop.f32.mrb[0].mxu0
      %v968 = vadd.f32 %v792, %v967
      %v969 = vpop.f32.mrb[0].mxu0
      %v970 = vadd.f32 %v792, %v969
      %971 = vmatprep.mubr.bf16.mxu0 0
      %972 = vmatmul.mubr.bf16.gmra.mrb[0].mxu0 %v874
      %v973 = vpop.f32.mrb[0].mxu0
      %v974 = vadd.f32 %v797, %v973
      %v975 = vpop.f32.mrb[0].mxu0
      %v976 = vadd.f32 %v797, %v975
      %v977 = vpop.f32.mrb[0].mxu0
      %v978 = vadd.f32 %v802, %v977
      %v979 = vpop.f32.mrb[0].mxu0
      %v980 = vadd.f32 %v802, %v979
      %981 = vmatprep.mubr.bf16.mxu0 0
      %982 = vmatmul.mubr.bf16.gmra.mrb[0].mxu0 %v877
      %v983 = vpop.f32.mrb[0].mxu0
      %v984 = vadd.f32 %v807, %v983
      %v985 = vpop.f32.mrb[0].mxu0
      %v986 = vadd.f32 %v807, %v985
      %v987 = vpop.f32.mrb[0].mxu0
      %v988 = vadd.f32 %v812, %v987
      %v989 = vpop.f32.mrb[0].mxu0
      %v990 = vadd.f32 %v812, %v989
      %991 = vdwg.mxu0
      %992 = vmatprep.subr.bf16.mxu0 %v713
      %993 = vmatpush1.bf16.msra.mxu0 %v712
      %994 = vmatprep.subr.bf16.mxu0 0
      %995 = vmatpush1.bf16.msra.mxu0 0
      %996 = vmatprep.subr.bf16.mxu0 0
      %997 = vmatpush1.bf16.msra.mxu0 0
      %998 = vmatprep.subr.bf16.mxu0 0
      %999 = vmatpush1.bf16.msra.mxu0 0
      %1000 = vmatprep.subr.bf16.mxu0 0
      %1001 = vmatpush1.bf16.msra.mxu0 0
      %1002 = vmatprep.subr.bf16.mxu0 0
      %1003 = vmatpush1.bf16.msra.mxu0 0
      %1004 = vmatprep.subr.bf16.mxu0 0
      %1005 = vmatpush1.bf16.msra.mxu0 0
      %1006 = vmatprep.subr.bf16.mxu0 0
      %1007 = vmatpush1.bf16.msra.mxu0 0
      %1008 = vmatprep.subr.bf16.mxu0 0
      %1009 = vmatpush1.bf16.msra.mxu0 0
      %1010 = vmatprep.subr.bf16.mxu0 0
      %1011 = vmatpush1.bf16.msra.mxu0 0
      %1012 = vmatprep.subr.bf16.mxu0 0
      %1013 = vmatpush1.bf16.msra.mxu0 0
      %1014 = vmatprep.subr.bf16.mxu0 0
      %1015 = vmatpush1.bf16.msra.mxu0 0
      %1016 = vmatprep.subr.bf16.mxu0 0
      %1017 = vmatpush1.bf16.msra.mxu0 0
      %1018 = vmatprep.subr.bf16.mxu0 0
      %1019 = vmatpush1.bf16.msra.mxu0 0
      %1020 = vmatprep.subr.bf16.mxu0 0
      %1021 = vmatpush1.bf16.msra.mxu0 0
      %1022 = vmatprep.subr.bf16.mxu0 0
      %1023 = vmatpush1.bf16.msra.mxu0 0
      %1024 = vmatprep.mubr.bf16.mxu0 0
      %1025 = vmatmul.mubr.bf16.gmra.mrb[0].mxu0 %v856
      %v1026 = vpop.f32.mrb[0].mxu0
      %v1027 = vadd.f32 %v737, %v1026
      %v1028 = vpop.f32.mrb[0].mxu0
      %v1029 = vadd.f32 %v737, %v1028
      %v1030 = vpop.f32.mrb[0].mxu0
      %v1031 = vadd.f32 %v742, %v1030
      %v1032 = vpop.f32.mrb[0].mxu0
      %v1033 = vadd.f32 %v742, %v1032
      %1034 = vmatprep.mubr.bf16.mxu0 0
      %1035 = vmatmul.mubr.bf16.gmra.mrb[0].mxu0 %v859
      %v1036 = vpop.f32.mrb[0].mxu0
      %v1037 = vadd.f32 %v747, %v1036
      %v1038 = vpop.f32.mrb[0].mxu0
      %v1039 = vadd.f32 %v747, %v1038
      %v1040 = vpop.f32.mrb[0].mxu0
      %v1041 = vadd.f32 %v752, %v1040
      %v1042 = vpop.f32.mrb[0].mxu0
      %v1043 = vadd.f32 %v752, %v1042
      %1044 = vmatprep.mubr.bf16.mxu0 0
      %1045 = vmatmul.mubr.bf16.gmra.mrb[0].mxu0 %v862
      %v1046 = vpop.f32.mrb[0].mxu0
      %v1047 = vadd.f32 %v757, %v1046
      %v1048 = vpop.f32.mrb[0].mxu0
      %v1049 = vadd.f32 %v757, %v1048
      %v1050 = vpop.f32.mrb[0].mxu0
      %v1051 = vadd.f32 %v762, %v1050
      %v1052 = vpop.f32.mrb[0].mxu0
      %v1053 = vadd.f32 %v762, %v1052
      %1054 = vmatprep.mubr.bf16.mxu0 0
      %1055 = vmatmul.mubr.bf16.gmra.mrb[0].mxu0 %v865
      %v1056 = vpop.f32.mrb[0].mxu0
      %v1057 = vadd.f32 %v767, %v1056
      %v1058 = vpop.f32.mrb[0].mxu0
      %v1059 = vadd.f32 %v767, %v1058
      %v1060 = vpop.f32.mrb[0].mxu0
      %v1061 = vadd.f32 %v772, %v1060
      %v1062 = vpop.f32.mrb[0].mxu0
      %v1063 = vadd.f32 %v772, %v1062
      %1064 = vmatprep.mubr.bf16.mxu0 0
      %1065 = vmatmul.mubr.bf16.gmra.mrb[0].mxu0 %v868
      %v1066 = vpop.f32.mrb[0].mxu0
      %v1067 = vadd.f32 %v777, %v1066
      %v1068 = vpop.f32.mrb[0].mxu0
      %v1069 = vadd.f32 %v777, %v1068
      %v1070 = vpop.f32.mrb[0].mxu0
      %v1071 = vadd.f32 %v782, %v1070
      %v1072 = vpop.f32.mrb[0].mxu0
      %v1073 = vadd.f32 %v782, %v1072
      %1074 = vmatprep.mubr.bf16.mxu0 0
      %1075 = vmatmul.mubr.bf16.gmra.mrb[0].mxu0 %v871
      %v1076 = vpop.f32.mrb[0].mxu0
      %v1077 = vadd.f32 %v787, %v1076
      %v1078 = vpop.f32.mrb[0].mxu0
      %v1079 = vadd.f32 %v787, %v1078
      %v1080 = vpop.f32.mrb[0].mxu0
      %v1081 = vadd.f32 %v792, %v1080
      %v1082 = vpop.f32.mrb[0].mxu0
      %v1083 = vadd.f32 %v792, %v1082
      %1084 = vmatprep.mubr.bf16.mxu0 0
      %1085 = vmatmul.mubr.bf16.gmra.mrb[0].mxu0 %v874
      %v1086 = vpop.f32.mrb[0].mxu0
      %v1087 = vadd.f32 %v797, %v1086
      %v1088 = vpop.f32.mrb[0].mxu0
      %v1089 = vadd.f32 %v797, %v1088
      %v1090 = vpop.f32.mrb[0].mxu0
      %v1091 = vadd.f32 %v802, %v1090
      %v1092 = vpop.f32.mrb[0].mxu0
      %v1093 = vadd.f32 %v802, %v1092
      %1094 = vmatprep.mubr.bf16.mxu0 0
      %1095 = vmatmul.mubr.bf16.gmra.mrb[0].mxu0 %v877
      %v1096 = vpop.f32.mrb[0].mxu0
      %v1097 = vadd.f32 %v807, %v1096
      %v1098 = vpop.f32.mrb[0].mxu0
      %v1099 = vadd.f32 %v807, %v1098
      %v1100 = vpop.f32.mrb[0].mxu0
      %v1101 = vadd.f32 %v812, %v1100
      %v1102 = vpop.f32.mrb[0].mxu0
      %v1103 = vadd.f32 %v812, %v1102
      %1104 = vdwg.mxu0
      %1105 = vmatprep.subr.bf16.mxu0 %v715
      %1106 = vmatpush1.bf16.msra.mxu0 %v714
      %1107 = vmatprep.subr.bf16.mxu0 0
      %1108 = vmatpush1.bf16.msra.mxu0 0
      %1109 = vmatprep.subr.bf16.mxu0 0
      %1110 = vmatpush1.bf16.msra.mxu0 0
      %1111 = vmatprep.subr.bf16.mxu0 0
      %1112 = vmatpush1.bf16.msra.mxu0 0
      %1113 = vmatprep.subr.bf16.mxu0 0
      %1114 = vmatpush1.bf16.msra.mxu0 0
      %1115 = vmatprep.subr.bf16.mxu0 0
      %1116 = vmatpush1.bf16.msra.mxu0 0
      %1117 = vmatprep.subr.bf16.mxu0 0
      %1118 = vmatpush1.bf16.msra.mxu0 0
      %1119 = vmatprep.subr.bf16.mxu0 0
      %1120 = vmatpush1.bf16.msra.mxu0 0
      %1121 = vmatprep.subr.bf16.mxu0 0
      %1122 = vmatpush1.bf16.msra.mxu0 0
      %1123 = vmatprep.subr.bf16.mxu0 0
      %1124 = vmatpush1.bf16.msra.mxu0 0
      %1125 = vmatprep.subr.bf16.mxu0 0
      %1126 = vmatpush1.bf16.msra.mxu0 0
      %1127 = vmatprep.subr.bf16.mxu0 0
      %1128 = vmatpush1.bf16.msra.mxu0 0
      %1129 = vmatprep.subr.bf16.mxu0 0
      %1130 = vmatpush1.bf16.msra.mxu0 0
      %1131 = vmatprep.subr.bf16.mxu0 0
      %1132 = vmatpush1.bf16.msra.mxu0 0
      %1133 = vmatprep.subr.bf16.mxu0 0
      %1134 = vmatpush1.bf16.msra.mxu0 0
      %1135 = vmatprep.subr.bf16.mxu0 0
      %1136 = vmatpush1.bf16.msra.mxu0 0
      %1137 = vmatprep.mubr.bf16.mxu0 0
      %1138 = vmatmul.mubr.bf16.gmra.mrb[0].mxu0 %v856
      %v1139 = vpop.f32.mrb[0].mxu0
      %v1140 = vadd.f32 %v737, %v1139
      %v1141 = vpop.f32.mrb[0].mxu0
      %v1142 = vadd.f32 %v737, %v1141
      %v1143 = vpop.f32.mrb[0].mxu0
      %v1144 = vadd.f32 %v742, %v1143
      %v1145 = vpop.f32.mrb[0].mxu0
      %v1146 = vadd.f32 %v742, %v1145
      %1147 = vmatprep.mubr.bf16.mxu0 0
      %1148 = vmatmul.mubr.bf16.gmra.mrb[0].mxu0 %v859
      %v1149 = vpop.f32.mrb[0].mxu0
      %v1150 = vadd.f32 %v747, %v1149
      %v1151 = vpop.f32.mrb[0].mxu0
      %v1152 = vadd.f32 %v747, %v1151
      %v1153 = vpop.f32.mrb[0].mxu0
      %v1154 = vadd.f32 %v752, %v1153
      %v1155 = vpop.f32.mrb[0].mxu0
      %v1156 = vadd.f32 %v752, %v1155
      %1157 = vmatprep.mubr.bf16.mxu0 0
      %1158 = vmatmul.mubr.bf16.gmra.mrb[0].mxu0 %v862
      %v1159 = vpop.f32.mrb[0].mxu0
      %v1160 = vadd.f32 %v757, %v1159
      %v1161 = vpop.f32.mrb[0].mxu0
      %v1162 = vadd.f32 %v757, %v1161
      %v1163 = vpop.f32.mrb[0].mxu0
      %v1164 = vadd.f32 %v762, %v1163
      %v1165 = vpop.f32.mrb[0].mxu0
      %v1166 = vadd.f32 %v762, %v1165
      %1167 = vmatprep.mubr.bf16.mxu0 0
      %1168 = vmatmul.mubr.bf16.gmra.mrb[0].mxu0 %v865
      %v1169 = vpop.f32.mrb[0].mxu0
      %v1170 = vadd.f32 %v767, %v1169
      %v1171 = vpop.f32.mrb[0].mxu0
      %v1172 = vadd.f32 %v767, %v1171
      %v1173 = vpop.f32.mrb[0].mxu0
      %v1174 = vadd.f32 %v772, %v1173
      %v1175 = vpop.f32.mrb[0].mxu0
      %v1176 = vadd.f32 %v772, %v1175
      %1177 = vmatprep.mubr.bf16.mxu0 0
      %1178 = vmatmul.mubr.bf16.gmra.mrb[0].mxu0 %v868
      %v1179 = vpop.f32.mrb[0].mxu0
      %v1180 = vadd.f32 %v777, %v1179
      %v1181 = vpop.f32.mrb[0].mxu0
      %v1182 = vadd.f32 %v777, %v1181
      %v1183 = vpop.f32.mrb[0].mxu0
      %v1184 = vadd.f32 %v782, %v1183
      %v1185 = vpop.f32.mrb[0].mxu0
      %v1186 = vadd.f32 %v782, %v1185
      %1187 = vmatprep.mubr.bf16.mxu0 0
      %1188 = vmatmul.mubr.bf16.gmra.mrb[0].mxu0 %v871
      %v1189 = vpop.f32.mrb[0].mxu0
      %v1190 = vadd.f32 %v787, %v1189
      %v1191 = vpop.f32.mrb[0].mxu0
      %v1192 = vadd.f32 %v787, %v1191
      %v1193 = vpop.f32.mrb[0].mxu0
      %v1194 = vadd.f32 %v792, %v1193
      %v1195 = vpop.f32.mrb[0].mxu0
      %v1196 = vadd.f32 %v792, %v1195
      %1197 = vmatprep.mubr.bf16.mxu0 0
      %1198 = vmatmul.mubr.bf16.gmra.mrb[0].mxu0 %v874
      %v1199 = vpop.f32.mrb[0].mxu0
      %v1200 = vadd.f32 %v797, %v1199
      %v1201 = vpop.f32.mrb[0].mxu0
      %v1202 = vadd.f32 %v797, %v1201
      %v1203 = vpop.f32.mrb[0].mxu0
      %v1204 = vadd.f32 %v802, %v1203
      %v1205 = vpop.f32.mrb[0].mxu0
      %v1206 = vadd.f32 %v802, %v1205
      %1207 = vmatprep.mubr.bf16.mxu0 0
      %1208 = vmatmul.mubr.bf16.gmra.mrb[0].mxu0 %v877
      %v1209 = vpop.f32.mrb[0].mxu0
      %v1210 = vadd.f32 %v807, %v1209
      %v1211 = vpop.f32.mrb[0].mxu0
      %v1212 = vadd.f32 %v807, %v1211
      %v1213 = vpop.f32.mrb[0].mxu0
      %v1214 = vadd.f32 %v812, %v1213
      %v1215 = vpop.f32.mrb[0].mxu0
      %v1216 = vadd.f32 %v812, %v1215
      %1217 = vdwg.mxu0
      %1218 = vmatprep.subr.bf16.mxu0 %v717
      %1219 = vmatpush1.bf16.msra.mxu0 %v716
      %1220 = vmatprep.subr.bf16.mxu0 0
      %1221 = vmatpush1.bf16.msra.mxu0 0
      %1222 = vmatprep.subr.bf16.mxu0 0
      %1223 = vmatpush1.bf16.msra.mxu0 0
      %1224 = vmatprep.subr.bf16.mxu0 0
      %1225 = vmatpush1.bf16.msra.mxu0 0
      %1226 = vmatprep.subr.bf16.mxu0 0
      %1227 = vmatpush1.bf16.msra.mxu0 0
      %1228 = vmatprep.subr.bf16.mxu0 0
      %1229 = vmatpush1.bf16.msra.mxu0 0
      %1230 = vmatprep.subr.bf16.mxu0 0
      %1231 = vmatpush1.bf16.msra.mxu0 0
      %1232 = vmatprep.subr.bf16.mxu0 0
      %1233 = vmatpush1.bf16.msra.mxu0 0
      %1234 = vmatprep.subr.bf16.mxu0 0
      %1235 = vmatpush1.bf16.msra.mxu0 0
      %1236 = vmatprep.subr.bf16.mxu0 0
      %1237 = vmatpush1.bf16.msra.mxu0 0
      %1238 = vmatprep.subr.bf16.mxu0 0
      %1239 = vmatpush1.bf16.msra.mxu0 0
      %1240 = vmatprep.subr.bf16.mxu0 0
      %1241 = vmatpush1.bf16.msra.mxu0 0
      %1242 = vmatprep.subr.bf16.mxu0 0
      %1243 = vmatpush1.bf16.msra.mxu0 0
      %1244 = vmatprep.subr.bf16.mxu0 0
      %1245 = vmatpush1.bf16.msra.mxu0 0
      %1246 = vmatprep.subr.bf16.mxu0 0
      %1247 = vmatpush1.bf16.msra.mxu0 0
      %1248 = vmatprep.subr.bf16.mxu0 0
      %1249 = vmatpush1.bf16.msra.mxu0 0
      %1250 = vmatprep.mubr.bf16.mxu0 0
      %1251 = vmatmul.mubr.bf16.gmra.mrb[0].mxu0 %v856
      %v1252 = vpop.f32.mrb[0].mxu0
      %v1253 = vadd.f32 %v737, %v1252
      %v1254 = vpop.f32.mrb[0].mxu0
      %v1255 = vadd.f32 %v737, %v1254
      %v1256 = vpop.f32.mrb[0].mxu0
      %v1257 = vadd.f32 %v742, %v1256
      %v1258 = vpop.f32.mrb[0].mxu0
      %v1259 = vadd.f32 %v742, %v1258
      %1260 = vmatprep.mubr.bf16.mxu0 0
      %1261 = vmatmul.mubr.bf16.gmra.mrb[0].mxu0 %v859
      %v1262 = vpop.f32.mrb[0].mxu0
      %v1263 = vadd.f32 %v747, %v1262
      %v1264 = vpop.f32.mrb[0].mxu0
      %v1265 = vadd.f32 %v747, %v1264
      %v1266 = vpop.f32.mrb[0].mxu0
      %v1267 = vadd.f32 %v752, %v1266
      %v1268 = vpop.f32.mrb[0].mxu0
      %v1269 = vadd.f32 %v752, %v1268
      %1270 = vmatprep.mubr.bf16.mxu0 0
      %1271 = vmatmul.mubr.bf16.gmra.mrb[0].mxu0 %v862
      %v1272 = vpop.f32.mrb[0].mxu0
      %v1273 = vadd.f32 %v757, %v1272
      %v1274 = vpop.f32.mrb[0].mxu0
      %v1275 = vadd.f32 %v757, %v1274
      %v1276 = vpop.f32.mrb[0].mxu0
      %v1277 = vadd.f32 %v762, %v1276
      %v1278 = vpop.f32.mrb[0].mxu0
      %v1279 = vadd.f32 %v762, %v1278
      %1280 = vmatprep.mubr.bf16.mxu0 0
      %1281 = vmatmul.mubr.bf16.gmra.mrb[0].mxu0 %v865
      %v1282 = vpop.f32.mrb[0].mxu0
      %v1283 = vadd.f32 %v767, %v1282
      %v1284 = vpop.f32.mrb[0].mxu0
      %v1285 = vadd.f32 %v767, %v1284
      %v1286 = vpop.f32.mrb[0].mxu0
      %v1287 = vadd.f32 %v772, %v1286
      %v1288 = vpop.f32.mrb[0].mxu0
      %v1289 = vadd.f32 %v772, %v1288
      %1290 = vmatprep.mubr.bf16.mxu0 0
      %1291 = vmatmul.mubr.bf16.gmra.mrb[0].mxu0 %v868
      %v1292 = vpop.f32.mrb[0].mxu0
      %v1293 = vadd.f32 %v777, %v1292
      %v1294 = vpop.f32.mrb[0].mxu0
      %v1295 = vadd.f32 %v777, %v1294
      %v1296 = vpop.f32.mrb[0].mxu0
      %v1297 = vadd.f32 %v782, %v1296
      %v1298 = vpop.f32.mrb[0].mxu0
      %v1299 = vadd.f32 %v782, %v1298
      %1300 = vmatprep.mubr.bf16.mxu0 0
      %1301 = vmatmul.mubr.bf16.gmra.mrb[0].mxu0 %v871
      %v1302 = vpop.f32.mrb[0].mxu0
      %v1303 = vadd.f32 %v787, %v1302
      %v1304 = vpop.f32.mrb[0].mxu0
      %v1305 = vadd.f32 %v787, %v1304
      %v1306 = vpop.f32.mrb[0].mxu0
      %v1307 = vadd.f32 %v792, %v1306
      %v1308 = vpop.f32.mrb[0].mxu0
      %v1309 = vadd.f32 %v792, %v1308
      %1310 = vmatprep.mubr.bf16.mxu0 0
      %1311 = vmatmul.mubr.bf16.gmra.mrb[0].mxu0 %v874
      %v1312 = vpop.f32.mrb[0].mxu0
      %v1313 = vadd.f32 %v797, %v1312
      %v1314 = vpop.f32.mrb[0].mxu0
      %v1315 = vadd.f32 %v797, %v1314
      %v1316 = vpop.f32.mrb[0].mxu0
      %v1317 = vadd.f32 %v802, %v1316
      %v1318 = vpop.f32.mrb[0].mxu0
      %v1319 = vadd.f32 %v802, %v1318
      %1320 = vmatprep.mubr.bf16.mxu0 0
      %1321 = vmatmul.mubr.bf16.gmra.mrb[0].mxu0 %v877
      %v1322 = vpop.f32.mrb[0].mxu0
      %v1323 = vadd.f32 %v807, %v1322
      %v1324 = vpop.f32.mrb[0].mxu0
      %v1325 = vadd.f32 %v807, %v1324
      %v1326 = vpop.f32.mrb[0].mxu0
      %v1327 = vadd.f32 %v812, %v1326
      %v1328 = vpop.f32.mrb[0].mxu0
      %v1329 = vadd.f32 %v812, %v1328
      %1330 = vdwg.mxu0
      %v1331 = vmax.f32 %v914, 0.0
      %v1332 = vmax.f32 %v916, 0.0
      %v1333 = vmax.f32 %v1027, 0.0
      %v1334 = vmax.f32 %v1029, 0.0
      %v1335 = vmax.f32 %v1140, 0.0
      %v1336 = vmax.f32 %v1142, 0.0
      %v1337 = vmax.f32 %v1253, 0.0
      %v1338 = vmax.f32 %v1255, 0.0
      %v1339 = vmax.f32 %v918, 0.0
      %v1340 = vmax.f32 %v920, 0.0
      %v1341 = vmax.f32 %v1031, 0.0
      %v1342 = vmax.f32 %v1033, 0.0
      %v1343 = vmax.f32 %v1144, 0.0
      %v1344 = vmax.f32 %v1146, 0.0
      %v1345 = vmax.f32 %v1257, 0.0
      %v1346 = vmax.f32 %v1259, 0.0
      %v1347 = vmax.f32 %v924, 0.0
      %v1348 = vmax.f32 %v926, 0.0
      %v1349 = vmax.f32 %v1037, 0.0
      %v1350 = vmax.f32 %v1039, 0.0
      %v1351 = vmax.f32 %v1150, 0.0
      %v1352 = vmax.f32 %v1152, 0.0
      %v1353 = vmax.f32 %v1263, 0.0
      %v1354 = vmax.f32 %v1265, 0.0
      %v1355 = vmax.f32 %v928, 0.0
      %v1356 = vmax.f32 %v930, 0.0
      %v1357 = vmax.f32 %v1041, 0.0
      %v1358 = vmax.f32 %v1043, 0.0
      %v1359 = vmax.f32 %v1154, 0.0
      %v1360 = vmax.f32 %v1156, 0.0
      %v1361 = vmax.f32 %v1267, 0.0
      %v1362 = vmax.f32 %v1269, 0.0
      %v1363 = vmax.f32 %v934, 0.0
      %v1364 = vmax.f32 %v936, 0.0
      %v1365 = vmax.f32 %v1047, 0.0
      %v1366 = vmax.f32 %v1049, 0.0
      %v1367 = vmax.f32 %v1160, 0.0
      %v1368 = vmax.f32 %v1162, 0.0
      %v1369 = vmax.f32 %v1273, 0.0
      %v1370 = vmax.f32 %v1275, 0.0
      %v1371 = vmax.f32 %v938, 0.0
      %v1372 = vmax.f32 %v940, 0.0
      %v1373 = vmax.f32 %v1051, 0.0
      %v1374 = vmax.f32 %v1053, 0.0
      %v1375 = vmax.f32 %v1164, 0.0
      %v1376 = vmax.f32 %v1166, 0.0
      %v1377 = vmax.f32 %v1277, 0.0
      %v1378 = vmax.f32 %v1279, 0.0
      %v1379 = vmax.f32 %v944, 0.0
      %v1380 = vmax.f32 %v946, 0.0
      %v1381 = vmax.f32 %v1057, 0.0
      %v1382 = vmax.f32 %v1059, 0.0
      %v1383 = vmax.f32 %v1170, 0.0
      %v1384 = vmax.f32 %v1172, 0.0
      %v1385 = vmax.f32 %v1283, 0.0
      %v1386 = vmax.f32 %v1285, 0.0
      %v1387 = vmax.f32 %v948, 0.0
      %v1388 = vmax.f32 %v950, 0.0
      %v1389 = vmax.f32 %v1061, 0.0
      %v1390 = vmax.f32 %v1063, 0.0
      %v1391 = vmax.f32 %v1174, 0.0
      %v1392 = vmax.f32 %v1176, 0.0
      %v1393 = vmax.f32 %v1287, 0.0
      %v1394 = vmax.f32 %v1289, 0.0
      %v1395 = vmax.f32 %v954, 0.0
      %v1396 = vmax.f32 %v956, 0.0
      %v1397 = vmax.f32 %v1067, 0.0
      %v1398 = vmax.f32 %v1069, 0.0
      %v1399 = vmax.f32 %v1180, 0.0
      %v1400 = vmax.f32 %v1182, 0.0
      %v1401 = vmax.f32 %v1293, 0.0
      %v1402 = vmax.f32 %v1295, 0.0
      %v1403 = vmax.f32 %v958, 0.0
      %v1404 = vmax.f32 %v960, 0.0
      %v1405 = vmax.f32 %v1071, 0.0
      %v1406 = vmax.f32 %v1073, 0.0
      %v1407 = vmax.f32 %v1184, 0.0
      %v1408 = vmax.f32 %v1186, 0.0
      %v1409 = vmax.f32 %v1297, 0.0
      %v1410 = vmax.f32 %v1299, 0.0
      %v1411 = vmax.f32 %v964, 0.0
      %v1412 = vmax.f32 %v966, 0.0
      %v1413 = vmax.f32 %v1077, 0.0
      %v1414 = vmax.f32 %v1079, 0.0
      %v1415 = vmax.f32 %v1190, 0.0
      %v1416 = vmax.f32 %v1192, 0.0
      %v1417 = vmax.f32 %v1303, 0.0
      %v1418 = vmax.f32 %v1305, 0.0
      %v1419 = vmax.f32 %v968, 0.0
      %v1420 = vmax.f32 %v970, 0.0
      %v1421 = vmax.f32 %v1081, 0.0
      %v1422 = vmax.f32 %v1083, 0.0
      %v1423 = vmax.f32 %v1194, 0.0
      %v1424 = vmax.f32 %v1196, 0.0
      %v1425 = vmax.f32 %v1307, 0.0
      %v1426 = vmax.f32 %v1309, 0.0
      %v1427 = vmax.f32 %v974, 0.0
      %v1428 = vmax.f32 %v976, 0.0
      %v1429 = vmax.f32 %v1087, 0.0
      %v1430 = vmax.f32 %v1089, 0.0
      %v1431 = vmax.f32 %v1200, 0.0
      %v1432 = vmax.f32 %v1202, 0.0
      %v1433 = vmax.f32 %v1313, 0.0
      %v1434 = vmax.f32 %v1315, 0.0
      %v1435 = vmax.f32 %v978, 0.0
      %v1436 = vmax.f32 %v980, 0.0
      %v1437 = vmax.f32 %v1091, 0.0
      %v1438 = vmax.f32 %v1093, 0.0
      %v1439 = vmax.f32 %v1204, 0.0
      %v1440 = vmax.f32 %v1206, 0.0
      %v1441 = vmax.f32 %v1317, 0.0
      %v1442 = vmax.f32 %v1319, 0.0
      %v1443 = vmax.f32 %v984, 0.0
      %v1444 = vmax.f32 %v986, 0.0
      %v1445 = vmax.f32 %v1097, 0.0
      %v1446 = vmax.f32 %v1099, 0.0
      %v1447 = vmax.f32 %v1210, 0.0
      %v1448 = vmax.f32 %v1212, 0.0
      %v1449 = vmax.f32 %v1323, 0.0
      %v1450 = vmax.f32 %v1325, 0.0
      %v1451 = vmax.f32 %v988, 0.0
      %v1452 = vmax.f32 %v990, 0.0
      %v1453 = vmax.f32 %v1101, 0.0
      %v1454 = vmax.f32 %v1103, 0.0
      %v1455 = vmax.f32 %v1214, 0.0
      %v1456 = vmax.f32 %v1216, 0.0
      %v1457 = vmax.f32 %v1327, 0.0
      %v1458 = vmax.f32 %v1329, 0.0
      %v1459 = vld [vmem:[%s5] sm:$0x1]
      %v1460 = vpack.c.bf16 %v1339, %v1331
      %v1461 = vpack.c.bf16 %v1340, %v1332
      %v1462 = vpack.c.bf16 %v1341, %v1333
      %v1463 = vpack.c.bf16 %v1342, %v1334
      %v1464 = vpack.c.bf16 %v1343, %v1335
      %v1465 = vpack.c.bf16 %v1344, %v1336
      %v1466 = vpack.c.bf16 %v1345, %v1337
      %v1467 = vpack.c.bf16 %v1346, %v1338
      %v1468 = vpack.c.bf16 %v1355, %v1347
      %v1469 = vpack.c.bf16 %v1356, %v1348
      %v1470 = vpack.c.bf16 %v1357, %v1349
      %v1471 = vpack.c.bf16 %v1358, %v1350
      %v1472 = vpack.c.bf16 %v1359, %v1351
      %v1473 = vpack.c.bf16 %v1360, %v1352
      %v1474 = vpack.c.bf16 %v1361, %v1353
      %v1475 = vpack.c.bf16 %v1362, %v1354
      %v1476 = vpack.c.bf16 %v1371, %v1363
      %v1477 = vpack.c.bf16 %v1372, %v1364
      %v1478 = vpack.c.bf16 %v1373, %v1365
      %v1479 = vpack.c.bf16 %v1374, %v1366
      %v1480 = vpack.c.bf16 %v1375, %v1367
      %v1481 = vpack.c.bf16 %v1376, %v1368
      %v1482 = vpack.c.bf16 %v1377, %v1369
      %v1483 = vpack.c.bf16 %v1378, %v1370
      %v1484 = vpack.c.bf16 %v1387, %v1379
      %v1485 = vpack.c.bf16 %v1388, %v1380
      %v1486 = vpack.c.bf16 %v1389, %v1381
      %v1487 = vpack.c.bf16 %v1390, %v1382
      %v1488 = vpack.c.bf16 %v1391, %v1383
      %v1489 = vpack.c.bf16 %v1392, %v1384
      %v1490 = vpack.c.bf16 %v1393, %v1385
      %v1491 = vpack.c.bf16 %v1394, %v1386
      %v1492 = vpack.c.bf16 %v1403, %v1395
      %v1493 = vpack.c.bf16 %v1404, %v1396
      %v1494 = vpack.c.bf16 %v1405, %v1397
      %v1495 = vpack.c.bf16 %v1406, %v1398
      %v1496 = vpack.c.bf16 %v1407, %v1399
      %v1497 = vpack.c.bf16 %v1408, %v1400
      %v1498 = vpack.c.bf16 %v1409, %v1401
      %v1499 = vpack.c.bf16 %v1410, %v1402
      %v1500 = vpack.c.bf16 %v1419, %v1411
      %v1501 = vpack.c.bf16 %v1420, %v1412
      %v1502 = vpack.c.bf16 %v1421, %v1413
      %v1503 = vpack.c.bf16 %v1422, %v1414
      %v1504 = vpack.c.bf16 %v1423, %v1415
      %v1505 = vpack.c.bf16 %v1424, %v1416
      %v1506 = vpack.c.bf16 %v1425, %v1417
      %v1507 = vpack.c.bf16 %v1426, %v1418
      %v1508 = vpack.c.bf16 %v1435, %v1427
      %v1509 = vpack.c.bf16 %v1436, %v1428
      %v1510 = vpack.c.bf16 %v1437, %v1429
      %v1511 = vpack.c.bf16 %v1438, %v1430
      %v1512 = vpack.c.bf16 %v1439, %v1431
      %v1513 = vpack.c.bf16 %v1440, %v1432
      %v1514 = vpack.c.bf16 %v1441, %v1433
      %v1515 = vpack.c.bf16 %v1442, %v1434
      %v1516 = vpack.c.bf16 %v1451, %v1443
      %v1517 = vpack.c.bf16 %v1452, %v1444
      %v1518 = vpack.c.bf16 %v1453, %v1445
      %v1519 = vpack.c.bf16 %v1454, %v1446
      %v1520 = vpack.c.bf16 %v1455, %v1447
      %v1521 = vpack.c.bf16 %v1456, %v1448
      %v1522 = vpack.c.bf16 %v1457, %v1449
      %v1523 = vpack.c.bf16 %v1458, %v1450
      %s1524 = sld [smem:[#allocation2]]
      %v1525 = vstv %s1524
      %1526 = vmatprep.subr.bf16.mxu0 %v1461
      %1527 = vmatpush1.bf16.msra.mxu0 %v1460
      %1528 = vmatprep.subr.bf16.mxu0 %v1469
      %1529 = vmatpush1.bf16.msra.mxu0 %v1468
      %1530 = vmatprep.subr.bf16.mxu0 %v1477
      %1531 = vmatpush1.bf16.msra.mxu0 %v1476
      %1532 = vmatprep.subr.bf16.mxu0 %v1485
      %1533 = vmatpush1.bf16.msra.mxu0 %v1484
      %1534 = vmatprep.subr.bf16.mxu0 %v1493
      %1535 = vmatpush1.bf16.msra.mxu0 %v1492
      %1536 = vmatprep.subr.bf16.mxu0 %v1501
      %1537 = vmatpush1.bf16.msra.mxu0 %v1500
      %1538 = vmatprep.subr.bf16.mxu0 %v1509
      %1539 = vmatpush1.bf16.msra.mxu0 %v1508
      %1540 = vmatprep.subr.bf16.mxu0 %v1517
      %1541 = vmatpush1.bf16.msra.mxu0 %v1516
      %1542 = vmatprep.subr.bf16.mxu0 0
      %1543 = vmatpush1.bf16.msra.mxu0 0
      %1544 = vmatprep.subr.bf16.mxu0 0
      %1545 = vmatpush1.bf16.msra.mxu0 0
      %1546 = vmatprep.subr.bf16.mxu0 0
      %1547 = vmatpush1.bf16.msra.mxu0 0
      %1548 = vmatprep.subr.bf16.mxu0 0
      %1549 = vmatpush1.bf16.msra.mxu0 0
      %1550 = vmatprep.subr.bf16.mxu0 0
      %1551 = vmatpush1.bf16.msra.mxu0 0
      %1552 = vmatprep.subr.bf16.mxu0 0
      %1553 = vmatpush1.bf16.msra.mxu0 0
      %1554 = vmatprep.subr.bf16.mxu0 0
      %1555 = vmatpush1.bf16.msra.mxu0 0
      %1556 = vmatprep.subr.bf16.mxu0 0
      %1557 = vmatpush1.bf16.msra.mxu0 0
      %1558 = vmatprep.mubr.bf16.mxu0 0
      %1559 = vmatmul.mubr.bf16.gmra.mrb[0].mxu0 %v1459
      %v1560 = vpop.f32.mrb[0].mxu0
      %v1561 = vadd.f32 %v1525, %v1560
      %v1562 = vpop.f32.mrb[0].mxu0
      %v1563 = vadd.f32 %v1525, %v1562
      %v1564 = vpop.f32.mrb[0].mxu0
      %v1565 = vpop.f32.mrb[0].mxu0
      %1566 = vdwg.mxu0
      %1567 = vmatprep.subr.bf16.mxu0 %v1463
      %1568 = vmatpush1.bf16.msra.mxu0 %v1462
      %1569 = vmatprep.subr.bf16.mxu0 %v1471
      %1570 = vmatpush1.bf16.msra.mxu0 %v1470
      %1571 = vmatprep.subr.bf16.mxu0 %v1479
      %1572 = vmatpush1.bf16.msra.mxu0 %v1478
      %1573 = vmatprep.subr.bf16.mxu0 %v1487
      %1574 = vmatpush1.bf16.msra.mxu0 %v1486
      %1575 = vmatprep.subr.bf16.mxu0 %v1495
      %1576 = vmatpush1.bf16.msra.mxu0 %v1494
      %1577 = vmatprep.subr.bf16.mxu0 %v1503
      %1578 = vmatpush1.bf16.msra.mxu0 %v1502
      %1579 = vmatprep.subr.bf16.mxu0 %v1511
      %1580 = vmatpush1.bf16.msra.mxu0 %v1510
      %1581 = vmatprep.subr.bf16.mxu0 %v1519
      %1582 = vmatpush1.bf16.msra.mxu0 %v1518
      %1583 = vmatprep.subr.bf16.mxu0 0
      %1584 = vmatpush1.bf16.msra.mxu0 0
      %1585 = vmatprep.subr.bf16.mxu0 0
      %1586 = vmatpush1.bf16.msra.mxu0 0
      %1587 = vmatprep.subr.bf16.mxu0 0
      %1588 = vmatpush1.bf16.msra.mxu0 0
      %1589 = vmatprep.subr.bf16.mxu0 0
      %1590 = vmatpush1.bf16.msra.mxu0 0
      %1591 = vmatprep.subr.bf16.mxu0 0
      %1592 = vmatpush1.bf16.msra.mxu0 0
      %1593 = vmatprep.subr.bf16.mxu0 0
      %1594 = vmatpush1.bf16.msra.mxu0 0
      %1595 = vmatprep.subr.bf16.mxu0 0
      %1596 = vmatpush1.bf16.msra.mxu0 0
      %1597 = vmatprep.subr.bf16.mxu0 0
      %1598 = vmatpush1.bf16.msra.mxu0 0
      %1599 = vmatprep.mubr.bf16.mxu0 0
      %1600 = vmatmul.mubr.bf16.gmra.mrb[0].mxu0 %v1459
      %v1601 = vpop.f32.mrb[0].mxu0
      %v1602 = vadd.f32 %v1525, %v1601
      %v1603 = vpop.f32.mrb[0].mxu0
      %v1604 = vadd.f32 %v1525, %v1603
      %v1605 = vpop.f32.mrb[0].mxu0
      %v1606 = vpop.f32.mrb[0].mxu0
      %1607 = vdwg.mxu0
      %1608 = vmatprep.subr.bf16.mxu0 %v1465
      %1609 = vmatpush1.bf16.msra.mxu0 %v1464
      %1610 = vmatprep.subr.bf16.mxu0 %v1473
      %1611 = vmatpush1.bf16.msra.mxu0 %v1472
      %1612 = vmatprep.subr.bf16.mxu0 %v1481
      %1613 = vmatpush1.bf16.msra.mxu0 %v1480
      %1614 = vmatprep.subr.bf16.mxu0 %v1489
      %1615 = vmatpush1.bf16.msra.mxu0 %v1488
      %1616 = vmatprep.subr.bf16.mxu0 %v1497
      %1617 = vmatpush1.bf16.msra.mxu0 %v1496
      %1618 = vmatprep.subr.bf16.mxu0 %v1505
      %1619 = vmatpush1.bf16.msra.mxu0 %v1504
      %1620 = vmatprep.subr.bf16.mxu0 %v1513
      %1621 = vmatpush1.bf16.msra.mxu0 %v1512
      %1622 = vmatprep.subr.bf16.mxu0 %v1521
      %1623 = vmatpush1.bf16.msra.mxu0 %v1520
      %1624 = vmatprep.subr.bf16.mxu0 0
      %1625 = vmatpush1.bf16.msra.mxu0 0
      %1626 = vmatprep.subr.bf16.mxu0 0
      %1627 = vmatpush1.bf16.msra.mxu0 0
      %1628 = vmatprep.subr.bf16.mxu0 0
      %1629 = vmatpush1.bf16.msra.mxu0 0
      %1630 = vmatprep.subr.bf16.mxu0 0
      %1631 = vmatpush1.bf16.msra.mxu0 0
      %1632 = vmatprep.subr.bf16.mxu0 0
      %1633 = vmatpush1.bf16.msra.mxu0 0
      %1634 = vmatprep.subr.bf16.mxu0 0
      %1635 = vmatpush1.bf16.msra.mxu0 0
      %1636 = vmatprep.subr.bf16.mxu0 0
      %1637 = vmatpush1.bf16.msra.mxu0 0
      %1638 = vmatprep.subr.bf16.mxu0 0
      %1639 = vmatpush1.bf16.msra.mxu0 0
      %1640 = vmatprep.mubr.bf16.mxu0 0
      %1641 = vmatmul.mubr.bf16.gmra.mrb[0].mxu0 %v1459
      %v1642 = vpop.f32.mrb[0].mxu0
      %v1643 = vadd.f32 %v1525, %v1642
      %v1644 = vpop.f32.mrb[0].mxu0
      %v1645 = vadd.f32 %v1525, %v1644
      %v1646 = vpop.f32.mrb[0].mxu0
      %v1647 = vpop.f32.mrb[0].mxu0
      %1648 = vdwg.mxu0
      %1649 = vmatprep.subr.bf16.mxu0 %v1467
      %1650 = vmatpush1.bf16.msra.mxu0 %v1466
      %1651 = vmatprep.subr.bf16.mxu0 %v1475
      %1652 = vmatpush1.bf16.msra.mxu0 %v1474
      %1653 = vmatprep.subr.bf16.mxu0 %v1483
      %1654 = vmatpush1.bf16.msra.mxu0 %v1482
      %1655 = vmatprep.subr.bf16.mxu0 %v1491
      %1656 = vmatpush1.bf16.msra.mxu0 %v1490
      %1657 = vmatprep.subr.bf16.mxu0 %v1499
      %1658 = vmatpush1.bf16.msra.mxu0 %v1498
      %1659 = vmatprep.subr.bf16.mxu0 %v1507
      %1660 = vmatpush1.bf16.msra.mxu0 %v1506
      %1661 = vmatprep.subr.bf16.mxu0 %v1515
      %1662 = vmatpush1.bf16.msra.mxu0 %v1514
      %1663 = vmatprep.subr.bf16.mxu0 %v1523
      %1664 = vmatpush1.bf16.msra.mxu0 %v1522
      %1665 = vmatprep.subr.bf16.mxu0 0
      %1666 = vmatpush1.bf16.msra.mxu0 0
      %1667 = vmatprep.subr.bf16.mxu0 0
      %1668 = vmatpush1.bf16.msra.mxu0 0
      %1669 = vmatprep.subr.bf16.mxu0 0
      %1670 = vmatpush1.bf16.msra.mxu0 0
      %1671 = vmatprep.subr.bf16.mxu0 0
      %1672 = vmatpush1.bf16.msra.mxu0 0
      %1673 = vmatprep.subr.bf16.mxu0 0
      %1674 = vmatpush1.bf16.msra.mxu0 0
      %1675 = vmatprep.subr.bf16.mxu0 0
      %1676 = vmatpush1.bf16.msra.mxu0 0
      %1677 = vmatprep.subr.bf16.mxu0 0
      %1678 = vmatpush1.bf16.msra.mxu0 0
      %1679 = vmatprep.subr.bf16.mxu0 0
      %1680 = vmatpush1.bf16.msra.mxu0 0
      %1681 = vmatprep.mubr.bf16.mxu0 0
      %1682 = vmatmul.mubr.bf16.gmra.mrb[0].mxu0 %v1459
      %v1683 = vpop.f32.mrb[0].mxu0
      %v1684 = vadd.f32 %v1525, %v1683
      %v1685 = vpop.f32.mrb[0].mxu0
      %v1686 = vadd.f32 %v1525, %v1685
      %v1687 = vpop.f32.mrb[0].mxu0
      %v1688 = vpop.f32.mrb[0].mxu0
      %1689 = vdwg.mxu0
      %v1690 = vsub.f32 0.0, %v1561
      %v1691 = vsub.f32 0.0, %v1563
      %v1692 = vsub.f32 0.0, %v1602
      %v1693 = vsub.f32 0.0, %v1604
      %v1694 = vsub.f32 0.0, %v1643
      %v1695 = vsub.f32 0.0, %v1645
      %v1696 = vsub.f32 0.0, %v1684
      %v1697 = vsub.f32 0.0, %v1686
      %v1698 = vmul.f32 %v1690, 1.442695
      %v1699 = vpow.pop %v1698
      %v1700 = vmul.f32 %v1691, 1.442695
      %v1701 = vpow.pop %v1700
      %v1702 = vmul.f32 %v1692, 1.442695
      %v1703 = vpow.pop %v1702
      %v1704 = vmul.f32 %v1693, 1.442695
      %v1705 = vpow.pop %v1704
      %v1706 = vmul.f32 %v1694, 1.442695
      %v1707 = vpow.pop %v1706
      %v1708 = vmul.f32 %v1695, 1.442695
      %v1709 = vpow.pop %v1708
      %v1710 = vmul.f32 %v1696, 1.442695
      %v1711 = vpow.pop %v1710
      %v1712 = vmul.f32 %v1697, 1.442695
      %v1713 = vpow.pop %v1712
      %v1714 = vadd.f32 %v1699, 1.0
      %v1715 = vadd.f32 %v1701, 1.0
      %v1716 = vadd.f32 %v1703, 1.0
      %v1717 = vadd.f32 %v1705, 1.0
      %v1718 = vadd.f32 %v1707, 1.0
      %v1719 = vadd.f32 %v1709, 1.0
      %v1720 = vadd.f32 %v1711, 1.0
      %v1721 = vadd.f32 %v1713, 1.0
      %v1722 = vrcp.pop %v1714
      %v1723 = vrcp.pop %v1715
      %v1724 = vrcp.pop %v1716
      %v1725 = vrcp.pop %v1717
      %v1726 = vrcp.pop %v1718
      %v1727 = vrcp.pop %v1719
      %v1728 = vrcp.pop %v1720
      %v1729 = vrcp.pop %v1721
      %v1738 = vcombine.low %v1722, %v1723
      %v1739 = vcombine.low %v1724, %v1725
      %v1740 = vcombine.low %v1726, %v1727
      %v1741 = vcombine.low %v1728, %v1729
      %v1743 = vunpack.c.l.s4 1966171168
      %v1744 = vunpack.c.0.s8 %v1743
      %v1745 = vlaneseq
      %v1746 = vshrl.u32 %v1745, 7
      %v1747 = vsub.s32 %v1744, %v1746
      %v1748 = vrot.slane %v1738, %v1747
      %v1750 = vunpack.c.l.s4 1966171168
      %v1751 = vunpack.c.0.s8 %v1750
      %v1752 = vlaneseq
      %v1753 = vshrl.u32 %v1752, 7
      %v1754 = vsub.s32 %v1751, %v1753
      %v1755 = vrot.slane %v1739, %v1754
      %v1757 = vunpack.c.l.s4 1966171168
      %v1758 = vunpack.c.0.s8 %v1757
      %v1759 = vlaneseq
      %v1760 = vshrl.u32 %v1759, 7
      %v1761 = vsub.s32 %v1758, %v1760
      %v1762 = vrot.slane %v1740, %v1761
      %v1764 = vunpack.c.l.s4 1966171168
      %v1765 = vunpack.c.0.s8 %v1764
      %v1766 = vlaneseq
      %v1767 = vshrl.u32 %v1766, 7
      %v1768 = vsub.s32 %v1765, %v1767
      %v1769 = vrot.slane %v1741, %v1768
      %v1770 = vcombine.low %v1748, %v1755
      %v1771 = vcombine.low %v1762, %v1769
      %v1773 = vunpack.c.l.s4 1966171168
      %v1774 = vunpack.c.0.s8 %v1773
      %v1775 = vlaneseq
      %v1776 = vshrl.u32 %v1775, 7
      %v1777 = vsub.s32 %v1774, %v1776
      %v1778 = vrot.slane %v1770, %v1777
      %v1780 = vunpack.c.l.s4 1966171168
      %v1781 = vunpack.c.0.s8 %v1780
      %v1782 = vlaneseq
      %v1783 = vshrl.u32 %v1782, 7
      %v1784 = vsub.s32 %v1781, %v1783
      %v1785 = vrot.slane %v1771, %v1784
      %v1786 = vcombine.low %v1778, %v1785
      %1788 = vst [vmem:[%s315] sm:$0xff] %v1786
      %s1789 = smul.u32 8, %s24
      %p1790 = scmp.lt.s32.totalorder %s23, 1
      %s1791 = scalar_select %p1790, %s23, 1
      %p1792 = scmp.lt.s32.totalorder %s1789, 31
      %s1793 = scalar_select %p1792, %s1789, 31
      %s1794 = smul.addr %s1791, 32
      %s1795 = sadd.s32 %s1793, %s1794
      %s1796 = scalar_lea.vmem %s7, %s1795
      // Predicated region
      $region49: #{_lambda_.2} parent=47 // pred_check
        %p1797 = pneg %p205
      $region50: #{_lambda_.2} parent=47 // pred_check_branch
        %1799 = sbr.rel (%p1797) target = $region52
      $region51: #{_lambda_.2} parent=47 // pred_region
        %s1800 = smul.u32 8, %s24
      $region52: #{_lambda_.2} parent=47 // pred_fallthru
        _
    $region48: #{_lambda_.2} parent=5 // pred_fallthru
      _
    %p1801 = scmp.le.s32.totalorder 2, %s14
    // Predicated region
    $region53: #{_lambda_.2} parent=5 // pred_check
      %p1802 = pneg %p1801
    $region54: #{_lambda_.2} parent=5 // pred_check_branch
      %1804 = sbr.rel (%p1802) target = $region56
    $region55: #{_lambda_.2} parent=5 // pred_region
      %s1805 = ssub.s32 %s14, 2
      // Predicated region
      $region57: #{_lambda_.2} parent=55 // pred_check
        %p1806 = pneg %p211
      $region58: #{_lambda_.2} parent=55 // pred_check_branch
        %1808 = sbr.rel (%p1806) target = $region60
      $region59: #{_lambda_.2} parent=55 // pred_region
        %s1809 = smul.u32 8, %s26
        %p1810 = scmp.lt.s32.totalorder %s25, 1
        %s1811 = scalar_select %p1810, %s25, 1
        %p1812 = scmp.lt.s32.totalorder %s1809, 31
        %s1813 = scalar_select %p1812, %s1809, 31
        %s1814 = smul.addr %s1811, 32
        %s1815 = sadd.s32 %s1813, %s1814
        %s1816 = scalar_lea.vmem %s7, %s1815
      $region60: #{_lambda_.2} parent=55 // pred_fallthru
        _
    $region56: #{_lambda_.2} parent=5 // pred_fallthru
      _
  $region6: #{_lambda_.2} parent=0 // loop_footer
    %s18 = sadd.s32 1, %s14
  $region7: #{_lambda_.2} parent=0 // loop_footer_branch
    %13 = sbr.rel target = $region3
  $region8: #{_lambda_.2} parent=0 // loop_exit
    _

// kernel: _lambda_.3
$region0: #{_lambda_.3}
  #allocation0 [shape = 'u32[]', space=smem, size = 0x4, offset = 0x4, fixed_abs, tag = 'smem constant byte address 0x4 - core index']
  #allocation1 [shape = 'u32[144,128]{1,0:T(1,128)}', space=vmem, size = 0x12000, scoped, tag = 'internal scratch']
  #allocation2 [shape = 'f32[2,64]{1,0:T(2,128)}', space=vmem, size = 0x400, scoped, tag = 'scratch operand']
  #allocation3 [shape = 'f32[1,1]{1,0:T(1,128)S(6)}', space=smem, size = 0x200, scoped, tag = 'scoped memory for _lambda_.3']
  %s0 = inlined_call_operand.vmem [shape: f32[2,4,512], index: 0, kind: input, shape index: {}]
  %s1 = inlined_call_operand.vmem [shape: f32[2,4096], index: 1, kind: input, shape index: {}]
  %s2 = inlined_call_operand.vmem [shape: f32[512,64], index: 2, kind: input, shape index: {}]
  %s3 = inlined_call_operand.vmem [shape: f32[1,64], index: 3, kind: input, shape index: {}]
  %s4 = inlined_call_operand.vmem [shape: bf16[4096,64], index: 4, kind: input, shape index: {}]
  %s5 = inlined_call_operand.vmem [shape: f32[1,64], index: 5, kind: input, shape index: {}]
  %s6 = inlined_call_operand.vmem [shape: f32[1,64], index: 6, kind: input, shape index: {}]
  %s7 = inlined_call_operand.vmem [shape: f32[1,64], index: 7, kind: input, shape index: {}]
  %s8 = inlined_call_operand.<no memory space> [shape: f32[1,1], index: 8, kind: input, shape index: {}]
  %s9 = inlined_call_operand.hbm [shape: f32[2,512], index: 9, kind: output, shape index: {0}]
  %s10 = inlined_call_operand.vmem [shape: f32[2,1], index: 10, kind: output, shape index: {1}]
  %11 = xla_tuple %s9, %s10
  %s12 = sld [smem:[#allocation0]]
  $region85: #{_lambda_.3} parent=0
    _
  %s14 = ssub.s32 1, %s12
  %s15 = scalar_select 0, %s14, %s12
  %16 = sst [smem:[#allocation3]] %s8
  $region1: #{_lambda_.3} parent=0
    #allocation4 [shape = 'u8[4096]{0}', space=vmem, size = 0x1000, scoped, tag = 'output window, operand 0, single buffered']
    #allocation5 [shape = 's32[2]{0}', space=sflag, size = 0x8, scoped, tag = 'scoped memory for _lambda_.3']
    %17 = vsyncpa [#allocation5], 0
    loop: start=0, step=1, limit=6
    $region2: #{_lambda_.3} parent=1 // loop_pre_header
      _
    $region3: #{_lambda_.3} parent=1 // loop_header
      %s19 = sphi 0, %s23
      %p20 = scmp.ge.s32.totalorder %s19, 6
      %s27 = sphi 0, %s27
      %s29 = sphi 0, %s27
      %s30 = sphi 0, %s29
      %s44 = sphi 0, %s30
      %s50 = sphi 0, %s52
      %s53 = sphi 0, %s50
      %s54 = sphi 0, %s53
      %s70 = sphi 0, %s54
      %s74 = sphi 0, %s74
      %s76 = sphi 0, %s74
      %s77 = sphi 0, %s76
      %s91 = sphi 0, %s77
      %s95 = sphi 0, %s95
      %s97 = sphi 0, %s95
      %s98 = sphi 0, %s97
      %s112 = sphi 0, %s98
      %s118 = sphi 0, %s120
      %s121 = sphi 0, %s118
      %s122 = sphi 0, %s121
      %s138 = sphi 0, %s122
      %s142 = sphi 0, %s142
      %s144 = sphi 0, %s142
      %s145 = sphi 0, %s144
      %s159 = sphi 0, %s145
      %s163 = sphi 0, %s163
      %s165 = sphi 0, %s163
      %s166 = sphi 0, %s165
      %s180 = sphi 0, %s166
      %s184 = sphi 0, %s184
      %s186 = sphi 0, %s184
      %s187 = sphi 0, %s186
      %s201 = sphi 0, %s187
      %s205 = sphi 0, %s205
      %s207 = sphi 0, %s205
      %s208 = sphi 0, %s207
      %s222 = sphi 0, %s208
      %s226 = sphi 0, %s226
      %s228 = sphi 0, %s226
      %s229 = sphi 0, %s228
      %s243 = sphi 0, %s229
      %s247 = sphi 0, %s247
      %s249 = sphi 0, %s247
      %s250 = sphi 0, %s249
      %s264 = sphi 0, %s250
    $region4: #{_lambda_.3} parent=1 // loop_header_branch
      %22 = sbr.rel (%p20) target = $region8
    $region5: #{_lambda_.3} parent=1 // loop_body
      %s24 = ssub.s32 %s19, 1
      %s25 = ssub.s32 %s19, 2
      %s26 = sadd.s32 %s19, 1
      %s28 = sadd.s32 %s27, 1
      %p31 = scmp.eq.s32.totalorder %s19, 3
      %p32 = scmp.ne.s32.totalorder %s27, %s29
      %p33 = scmp.eq.s32.totalorder %s19, 0
      %p34 = por %p32, %p33
      %p35 = scmp.ne.s32.totalorder %s27, %s29
      %p36 = scmp.eq.s32.totalorder %s24, 3
      %p37 = por %p35, %p36
      %p38 = scmp.ne.s32.totalorder %s29, %s30
      %p39 = scmp.eq.s32.totalorder %s24, 0
      %p40 = por %p38, %p39
      %p41 = scmp.ne.s32.totalorder %s29, %s30
      %p42 = scmp.eq.s32.totalorder %s25, 3
      %p43 = por %p41, %p42
      %p45 = scmp.ne.s32.totalorder %s30, %s44
      %p46 = scmp.eq.s32.totalorder %s25, 0
      %p47 = por %p45, %p46
      %s48 = ssub.s32 %s19, %s26
      %p49 = scmp.eq.s32.totalorder %s48, 0
      %s51 = sadd.s32 %s50, 1
      %s52 = scalar_select %p49, %s50, %s51
      %p55 = pneg %p49
      %p56 = scmp.eq.s32.totalorder %s19, 3
      %p57 = por %p55, %p56
      %p58 = scmp.ne.s32.totalorder %s50, %s53
      %p59 = scmp.eq.s32.totalorder %s19, 0
      %p60 = por %p58, %p59
      %p61 = scmp.ne.s32.totalorder %s50, %s53
      %p62 = scmp.eq.s32.totalorder %s24, 3
      %p63 = por %p61, %p62
      %p64 = scmp.ne.s32.totalorder %s53, %s54
      %p65 = scmp.eq.s32.totalorder %s24, 0
      %p66 = por %p64, %p65
      %p67 = scmp.ne.s32.totalorder %s53, %s54
      %p68 = scmp.eq.s32.totalorder %s25, 3
      %p69 = por %p67, %p68
      %p71 = scmp.ne.s32.totalorder %s54, %s70
      %p72 = scmp.eq.s32.totalorder %s25, 0
      %p73 = por %p71, %p72
      %s75 = sadd.s32 %s74, 1
      %p78 = scmp.eq.s32.totalorder %s19, 3
      %p79 = scmp.ne.s32.totalorder %s74, %s76
      %p80 = scmp.eq.s32.totalorder %s19, 0
      %p81 = por %p79, %p80
      %p82 = scmp.ne.s32.totalorder %s74, %s76
      %p83 = scmp.eq.s32.totalorder %s24, 3
      %p84 = por %p82, %p83
      %p85 = scmp.ne.s32.totalorder %s76, %s77
      %p86 = scmp.eq.s32.totalorder %s24, 0
      %p87 = por %p85, %p86
      %p88 = scmp.ne.s32.totalorder %s76, %s77
      %p89 = scmp.eq.s32.totalorder %s25, 3
      %p90 = por %p88, %p89
      %p92 = scmp.ne.s32.totalorder %s77, %s91
      %p93 = scmp.eq.s32.totalorder %s25, 0
      %p94 = por %p92, %p93
      %s96 = sadd.s32 %s95, 1
      %p99 = scmp.eq.s32.totalorder %s19, 3
      %p100 = scmp.ne.s32.totalorder %s95, %s97
      %p101 = scmp.eq.s32.totalorder %s19, 0
      %p102 = por %p100, %p101
      %p103 = scmp.ne.s32.totalorder %s95, %s97
      %p104 = scmp.eq.s32.totalorder %s24, 3
      %p105 = por %p103, %p104
      %p106 = scmp.ne.s32.totalorder %s97, %s98
      %p107 = scmp.eq.s32.totalorder %s24, 0
      %p108 = por %p106, %p107
      %p109 = scmp.ne.s32.totalorder %s97, %s98
      %p110 = scmp.eq.s32.totalorder %s25, 3
      %p111 = por %p109, %p110
      %p113 = scmp.ne.s32.totalorder %s98, %s112
      %p114 = scmp.eq.s32.totalorder %s25, 0
      %p115 = por %p113, %p114
      %s116 = ssub.s32 %s19, %s26
      %p117 = scmp.eq.s32.totalorder %s116, 0
      %s119 = sadd.s32 %s118, 1
      %s120 = scalar_select %p117, %s118, %s119
      %p123 = pneg %p117
      %p124 = scmp.eq.s32.totalorder %s19, 3
      %p125 = por %p123, %p124
      %p126 = scmp.ne.s32.totalorder %s118, %s121
      %p127 = scmp.eq.s32.totalorder %s19, 0
      %p128 = por %p126, %p127
      %p129 = scmp.ne.s32.totalorder %s118, %s121
      %p130 = scmp.eq.s32.totalorder %s24, 3
      %p131 = por %p129, %p130
      %p132 = scmp.ne.s32.totalorder %s121, %s122
      %p133 = scmp.eq.s32.totalorder %s24, 0
      %p134 = por %p132, %p133
      %p135 = scmp.ne.s32.totalorder %s121, %s122
      %p136 = scmp.eq.s32.totalorder %s25, 3
      %p137 = por %p135, %p136
      %p139 = scmp.ne.s32.totalorder %s122, %s138
      %p140 = scmp.eq.s32.totalorder %s25, 0
      %p141 = por %p139, %p140
      %s143 = sadd.s32 %s142, 1
      %p146 = scmp.eq.s32.totalorder %s19, 3
      %p147 = scmp.ne.s32.totalorder %s142, %s144
      %p148 = scmp.eq.s32.totalorder %s19, 0
      %p149 = por %p147, %p148
      %p150 = scmp.ne.s32.totalorder %s142, %s144
      %p151 = scmp.eq.s32.totalorder %s24, 3
      %p152 = por %p150, %p151
      %p153 = scmp.ne.s32.totalorder %s144, %s145
      %p154 = scmp.eq.s32.totalorder %s24, 0
      %p155 = por %p153, %p154
      %p156 = scmp.ne.s32.totalorder %s144, %s145
      %p157 = scmp.eq.s32.totalorder %s25, 3
      %p158 = por %p156, %p157
      %p160 = scmp.ne.s32.totalorder %s145, %s159
      %p161 = scmp.eq.s32.totalorder %s25, 0
      %p162 = por %p160, %p161
      %s164 = sadd.s32 %s163, 1
      %p167 = scmp.eq.s32.totalorder %s19, 3
      %p168 = scmp.ne.s32.totalorder %s163, %s165
      %p169 = scmp.eq.s32.totalorder %s19, 0
      %p170 = por %p168, %p169
      %p171 = scmp.ne.s32.totalorder %s163, %s165
      %p172 = scmp.eq.s32.totalorder %s24, 3
      %p173 = por %p171, %p172
      %p174 = scmp.ne.s32.totalorder %s165, %s166
      %p175 = scmp.eq.s32.totalorder %s24, 0
      %p176 = por %p174, %p175
      %p177 = scmp.ne.s32.totalorder %s165, %s166
      %p178 = scmp.eq.s32.totalorder %s25, 3
      %p179 = por %p177, %p178
      %p181 = scmp.ne.s32.totalorder %s166, %s180
      %p182 = scmp.eq.s32.totalorder %s25, 0
      %p183 = por %p181, %p182
      %s185 = sadd.s32 %s184, 1
      %p188 = scmp.eq.s32.totalorder %s19, 3
      %p189 = scmp.ne.s32.totalorder %s184, %s186
      %p190 = scmp.eq.s32.totalorder %s19, 0
      %p191 = por %p189, %p190
      %p192 = scmp.ne.s32.totalorder %s184, %s186
      %p193 = scmp.eq.s32.totalorder %s24, 3
      %p194 = por %p192, %p193
      %p195 = scmp.ne.s32.totalorder %s186, %s187
      %p196 = scmp.eq.s32.totalorder %s24, 0
      %p197 = por %p195, %p196
      %p198 = scmp.ne.s32.totalorder %s186, %s187
      %p199 = scmp.eq.s32.totalorder %s25, 3
      %p200 = por %p198, %p199
      %p202 = scmp.ne.s32.totalorder %s187, %s201
      %p203 = scmp.eq.s32.totalorder %s25, 0
      %p204 = por %p202, %p203
      %s206 = sadd.s32 %s205, 1
      %p209 = scmp.eq.s32.totalorder %s19, 3
      %p210 = scmp.ne.s32.totalorder %s205, %s207
      %p211 = scmp.eq.s32.totalorder %s19, 0
      %p212 = por %p210, %p211
      %p213 = scmp.ne.s32.totalorder %s205, %s207
      %p214 = scmp.eq.s32.totalorder %s24, 3
      %p215 = por %p213, %p214
      %p216 = scmp.ne.s32.totalorder %s207, %s208
      %p217 = scmp.eq.s32.totalorder %s24, 0
      %p218 = por %p216, %p217
      %p219 = scmp.ne.s32.totalorder %s207, %s208
      %p220 = scmp.eq.s32.totalorder %s25, 3
      %p221 = por %p219, %p220
      %p223 = scmp.ne.s32.totalorder %s208, %s222
      %p224 = scmp.eq.s32.totalorder %s25, 0
      %p225 = por %p223, %p224
      %s227 = sadd.s32 %s226, 1
      %p230 = scmp.eq.s32.totalorder %s19, 3
      %p231 = scmp.ne.s32.totalorder %s226, %s228
      %p232 = scmp.eq.s32.totalorder %s19, 0
      %p233 = por %p231, %p232
      %p234 = scmp.ne.s32.totalorder %s226, %s228
      %p235 = scmp.eq.s32.totalorder %s24, 3
      %p236 = por %p234, %p235
      %p237 = scmp.ne.s32.totalorder %s228, %s229
      %p238 = scmp.eq.s32.totalorder %s24, 0
      %p239 = por %p237, %p238
      %p240 = scmp.ne.s32.totalorder %s228, %s229
      %p241 = scmp.eq.s32.totalorder %s25, 3
      %p242 = por %p240, %p241
      %p244 = scmp.ne.s32.totalorder %s229, %s243
      %p245 = scmp.eq.s32.totalorder %s25, 0
      %p246 = por %p244, %p245
      %s248 = sadd.s32 %s247, 1
      %p251 = scmp.eq.s32.totalorder %s19, 3
      %p252 = scmp.ne.s32.totalorder %s247, %s249
      %p253 = scmp.eq.s32.totalorder %s19, 0
      %p254 = por %p252, %p253
      %p255 = scmp.ne.s32.totalorder %s247, %s249
      %p256 = scmp.eq.s32.totalorder %s24, 3
      %p257 = por %p255, %p256
      %p258 = scmp.ne.s32.totalorder %s249, %s250
      %p259 = scmp.eq.s32.totalorder %s24, 0
      %p260 = por %p258, %p259
      %p261 = scmp.ne.s32.totalorder %s249, %s250
      %p262 = scmp.eq.s32.totalorder %s25, 3
      %p263 = por %p261, %p262
      %p265 = scmp.ne.s32.totalorder %s250, %s264
      %p266 = scmp.eq.s32.totalorder %s25, 0
      %p267 = por %p265, %p266
      %p268 = scmp.le.s32.totalorder 1, %s19
      %p269 = scmp.lt.s32.totalorder %s19, 5
      %p270 = pnand %p268, %p269
      %p271 = pneg %p270
      // Predicated region
      $region9: #{_lambda_.3} parent=5 // pred_check
        _
      $region10: #{_lambda_.3} parent=5 // pred_check_branch
        %273 = sbr.rel (%p270) target = $region12
      $region11: #{_lambda_.3} parent=5 // pred_region
        %s274 = ssub.s32 %s19, 1
        // Predicated region
        $region13: #{_lambda_.3} parent=11 // pred_check
          %p275 = pneg %p40
        $region14: #{_lambda_.3} parent=11 // pred_check_branch
          %277 = sbr.rel (%p275) target = $region16
        $region15: #{_lambda_.3} parent=11 // pred_region
          _
        $region16: #{_lambda_.3} parent=11 // pred_fallthru
          _
        // Predicated region
        $region17: #{_lambda_.3} parent=11 // pred_check
          %p278 = pneg %p87
        $region18: #{_lambda_.3} parent=11 // pred_check_branch
          %280 = sbr.rel (%p278) target = $region20
        $region19: #{_lambda_.3} parent=11 // pred_region
          _
        $region20: #{_lambda_.3} parent=11 // pred_fallthru
          _
        // Predicated region
        $region21: #{_lambda_.3} parent=11 // pred_check
          %p281 = pneg %p108
        $region22: #{_lambda_.3} parent=11 // pred_check_branch
          %283 = sbr.rel (%p281) target = $region24
        $region23: #{_lambda_.3} parent=11 // pred_region
          _
        $region24: #{_lambda_.3} parent=11 // pred_fallthru
          _
        // Predicated region
        $region25: #{_lambda_.3} parent=11 // pred_check
          %p284 = pneg %p155
        $region26: #{_lambda_.3} parent=11 // pred_check_branch
          %286 = sbr.rel (%p284) target = $region28
        $region27: #{_lambda_.3} parent=11 // pred_region
          _
        $region28: #{_lambda_.3} parent=11 // pred_fallthru
          _
        // Predicated region
        $region29: #{_lambda_.3} parent=11 // pred_check
          %p287 = pneg %p176
        $region30: #{_lambda_.3} parent=11 // pred_check_branch
          %289 = sbr.rel (%p287) target = $region32
        $region31: #{_lambda_.3} parent=11 // pred_region
          _
        $region32: #{_lambda_.3} parent=11 // pred_fallthru
          _
        // Predicated region
        $region33: #{_lambda_.3} parent=11 // pred_check
          %p290 = pneg %p197
        $region34: #{_lambda_.3} parent=11 // pred_check_branch
          %292 = sbr.rel (%p290) target = $region36
        $region35: #{_lambda_.3} parent=11 // pred_region
          _
        $region36: #{_lambda_.3} parent=11 // pred_fallthru
          _
        // Predicated region
        $region37: #{_lambda_.3} parent=11 // pred_check
          %p293 = pneg %p218
        $region38: #{_lambda_.3} parent=11 // pred_check_branch
          %295 = sbr.rel (%p293) target = $region40
        $region39: #{_lambda_.3} parent=11 // pred_region
          _
        $region40: #{_lambda_.3} parent=11 // pred_fallthru
          _
      $region12: #{_lambda_.3} parent=5 // pred_fallthru
        _
      %p296 = scmp.lt.s32.totalorder %s19, 4
      // Predicated region
      $region41: #{_lambda_.3} parent=5 // pred_check
        %p297 = pneg %p296
      $region42: #{_lambda_.3} parent=5 // pred_check_branch
        %299 = sbr.rel (%p297) target = $region44
      $region43: #{_lambda_.3} parent=5 // pred_region
        // Predicated region
        $region45: #{_lambda_.3} parent=43 // pred_check
          %p300 = pneg %p60
        $region46: #{_lambda_.3} parent=43 // pred_check_branch
          %302 = sbr.rel (%p300) target = $region48
        $region47: #{_lambda_.3} parent=43 // pred_region
          %s303 = smul.u32 8, %s19
          %p304 = scmp.lt.s32.totalorder %s303, 31
          %s305 = scalar_select %p304, %s303, 31
          %s306 = smul.addr %s305, 2
          %s307 = scalar_lea.vmem %s1, %s306
          %s308 = smul.u32 8, %s19
        $region48: #{_lambda_.3} parent=43 // pred_fallthru
          _
        // Predicated region
        $region49: #{_lambda_.3} parent=43 // pred_check
          %p309 = pneg %p128
        $region50: #{_lambda_.3} parent=43 // pred_check_branch
          %311 = sbr.rel (%p309) target = $region52
        $region51: #{_lambda_.3} parent=43 // pred_region
          %s312 = smul.u32 128, %s19
          %p313 = scmp.lt.s32.totalorder %s312, 511
          %s314 = scalar_select %p313, %s312, 511
          %s315 = smul.addr %s314, 4
          %s316 = scalar_lea.vmem %s4, %s315
          %s317 = smul.u32 128, %s19
        $region52: #{_lambda_.3} parent=43 // pred_fallthru
          _
      $region44: #{_lambda_.3} parent=5 // pred_fallthru
        _
      %p318 = scmp.le.s32.totalorder 1, %s19
      %p319 = scmp.lt.s32.totalorder %s19, 5
      %p320 = pnand %p318, %p319
      %p321 = pneg %p320
      // Predicated region
      $region53: #{_lambda_.3} parent=5 // pred_check
        _
      $region54: #{_lambda_.3} parent=5 // pred_check_branch
        %323 = sbr.rel (%p320) target = $region56
      $region55: #{_lambda_.3} parent=5 // pred_region
        %s324 = ssub.s32 %s19, 1
        %p325 = pneg %p40
        %p326 = pneg %p37
        %s327 = smul.u32 8, %s24
        %p328 = scmp.lt.s32.totalorder %s327, 31
        %s329 = scalar_select %p328, %s327, 31
        %s330 = smul.addr %s329, 2
        %s331 = scalar_lea.vmem %s1, %s330
        %p332 = pneg %p66
        %p333 = pneg %p63
        %p334 = pneg %p87
        %p335 = pneg %p84
        %p336 = pneg %p108
        %p337 = pneg %p105
        %s338 = smul.u32 128, %s24
        %p339 = scmp.lt.s32.totalorder %s338, 511
        %s340 = scalar_select %p339, %s338, 511
        %s341 = smul.addr %s340, 4
        %s342 = scalar_lea.vmem %s4, %s341
        %p343 = pneg %p134
        %p344 = pneg %p131
        %p345 = pneg %p155
        %p346 = pneg %p152
        %p347 = pneg %p176
        %p348 = pneg %p173
        %p349 = pneg %p197
        %p350 = pneg %p194
        %p351 = pneg %p218
        %p352 = pneg %p215
        %p353 = pneg %p239
        %p354 = pneg %p236
        %p355 = pneg %p260
        %p356 = pneg %p257
        %s357 = smul.u32 8, %s24
        %p358 = scmp.lt.s32.totalorder %s357, 31
        %s359 = scalar_select %p358, %s357, 31
        %s360 = smul.addr %s359, 2
        %s361 = scalar_lea.vmem %s1, %s360
        %s362 = smul.u32 8, %s24
        %s363 = smul.u32 128, %s24
        %p364 = scmp.lt.s32.totalorder %s363, 511
        %s365 = scalar_select %p364, %s363, 511
        %s366 = smul.addr %s365, 4
        %s367 = scalar_lea.vmem %s4, %s366
        %s368 = smul.u32 128, %s24
        %p370 = scmp.eq.s32.totalorder %s24, 0
        // Predicated region
        $region57: #{_lambda_.3} parent=55 // pred_check
          %p371 = pneg %p370
        $region58: #{_lambda_.3} parent=55 // pred_check_branch
          %373 = sbr.rel (%p371) target = $region60
        $region59: #{_lambda_.3} parent=55 // pred_region
          %vm374 = vcmask 517120
          %375 = vst.msk [vmem:[#allocation2] sm:$0x3] %vm374, 0.0
        $region60: #{_lambda_.3} parent=55 // pred_fallthru
          _
        %v376 = vld [vmem:[#allocation2] sm:$0x3]
        %v377 = vld [vmem:[%s361] sm:$0xff]
        %v378 = vld [vmem:[%s361 + $0x8] sm:$0xff]
        %v381 = vcombine.high %v377, %v377
        %v383 = vunpack.c.l.s4 1983009808
        %v384 = vunpack.c.0.s8 %v383
        %v385 = vlaneseq
        %v386 = vshrl.u32 %v385, 7
        %v387 = vsub.s32 %v384, %v386
        %v388 = vrot.slane %v377, %v387
        %v390 = vunpack.c.l.s4 1983009808
        %v391 = vunpack.c.0.s8 %v390
        %v392 = vlaneseq
        %v393 = vshrl.u32 %v392, 7
        %v394 = vsub.s32 %v391, %v393
        %v395 = vrot.slane %v381, %v394
        %v396 = vcombine.high %v388, %v388
        %v397 = vcombine.high %v395, %v395
        %v398 = vcombine.high %v378, %v378
        %v400 = vunpack.c.l.s4 1983009808
        %v401 = vunpack.c.0.s8 %v400
        %v402 = vlaneseq
        %v403 = vshrl.u32 %v402, 7
        %v404 = vsub.s32 %v401, %v403
        %v405 = vrot.slane %v378, %v404
        %v407 = vunpack.c.l.s4 1983009808
        %v408 = vunpack.c.0.s8 %v407
        %v409 = vlaneseq
        %v410 = vshrl.u32 %v409, 7
        %v411 = vsub.s32 %v408, %v410
        %v412 = vrot.slane %v398, %v411
        %v413 = vcombine.high %v405, %v405
        %v414 = vcombine.high %v412, %v412
        %v423 = vpack.c.bf16 %v388, %v388
        %v424 = vpack.c.bf16 %v396, %v396
        %v425 = vpack.c.bf16 %v395, %v395
        %v426 = vpack.c.bf16 %v397, %v397
        %v427 = vpack.c.bf16 %v405, %v405
        %v428 = vpack.c.bf16 %v413, %v413
        %v429 = vpack.c.bf16 %v412, %v412
        %v430 = vpack.c.bf16 %v414, %v414
        %v431 = vld [vmem:[%s367] sm:$0xf]
        %v432 = vld [vmem:[%s367 + $0x4] sm:$0xf]
        %v433 = vld [vmem:[%s367 + $0x8] sm:$0xf]
        %v434 = vld [vmem:[%s367 + $0xc] sm:$0xf]
        %v435 = vld [vmem:[%s367 + $0x10] sm:$0xf]
        %v436 = vld [vmem:[%s367 + $0x14] sm:$0xf]
        %v437 = vld [vmem:[%s367 + $0x18] sm:$0xf]
        %v438 = vld [vmem:[%s367 + $0x1c] sm:$0xf]
        %v439 = vld [vmem:[%s367 + $0x20] sm:$0xf]
        %v440 = vld [vmem:[%s367 + $0x24] sm:$0xf]
        %v441 = vld [vmem:[%s367 + $0x28] sm:$0xf]
        %v442 = vld [vmem:[%s367 + $0x2c] sm:$0xf]
        %v443 = vld [vmem:[%s367 + $0x30] sm:$0xf]
        %v444 = vld [vmem:[%s367 + $0x34] sm:$0xf]
        %v445 = vld [vmem:[%s367 + $0x38] sm:$0xf]
        %v446 = vld [vmem:[%s367 + $0x3c] sm:$0xf]
        %v447 = vld [vmem:[%s367 + $0x40] sm:$0xf]
        %v448 = vld [vmem:[%s367 + $0x44] sm:$0xf]
        %v449 = vld [vmem:[%s367 + $0x48] sm:$0xf]
        %v450 = vld [vmem:[%s367 + $0x4c] sm:$0xf]
        %v451 = vld [vmem:[%s367 + $0x50] sm:$0xf]
        %v452 = vld [vmem:[%s367 + $0x54] sm:$0xf]
        %v453 = vld [vmem:[%s367 + $0x58] sm:$0xf]
        %v454 = vld [vmem:[%s367 + $0x5c] sm:$0xf]
        %v455 = vld [vmem:[%s367 + $0x60] sm:$0xf]
        %v456 = vld [vmem:[%s367 + $0x64] sm:$0xf]
        %v457 = vld [vmem:[%s367 + $0x68] sm:$0xf]
        %v458 = vld [vmem:[%s367 + $0x6c] sm:$0xf]
        %v459 = vld [vmem:[%s367 + $0x70] sm:$0xf]
        %v460 = vld [vmem:[%s367 + $0x74] sm:$0xf]
        %v461 = vld [vmem:[%s367 + $0x78] sm:$0xf]
        %v462 = vld [vmem:[%s367 + $0x7c] sm:$0xf]
        %v463 = vld [vmem:[%s367 + $0x80] sm:$0xf]
        %v464 = vld [vmem:[%s367 + $0x84] sm:$0xf]
        %v465 = vld [vmem:[%s367 + $0x88] sm:$0xf]
        %v466 = vld [vmem:[%s367 + $0x8c] sm:$0xf]
        %v467 = vld [vmem:[%s367 + $0x90] sm:$0xf]
        %v468 = vld [vmem:[%s367 + $0x94] sm:$0xf]
        %v469 = vld [vmem:[%s367 + $0x98] sm:$0xf]
        %v470 = vld [vmem:[%s367 + $0x9c] sm:$0xf]
        %v471 = vld [vmem:[%s367 + $0xa0] sm:$0xf]
        %v472 = vld [vmem:[%s367 + $0xa4] sm:$0xf]
        %v473 = vld [vmem:[%s367 + $0xa8] sm:$0xf]
        %v474 = vld [vmem:[%s367 + $0xac] sm:$0xf]
        %v475 = vld [vmem:[%s367 + $0xb0] sm:$0xf]
        %v476 = vld [vmem:[%s367 + $0xb4] sm:$0xf]
        %v477 = vld [vmem:[%s367 + $0xb8] sm:$0xf]
        %v478 = vld [vmem:[%s367 + $0xbc] sm:$0xf]
        %v479 = vld [vmem:[%s367 + $0xc0] sm:$0xf]
        %v480 = vld [vmem:[%s367 + $0xc4] sm:$0xf]
        %v481 = vld [vmem:[%s367 + $0xc8] sm:$0xf]
        %v482 = vld [vmem:[%s367 + $0xcc] sm:$0xf]
        %v483 = vld [vmem:[%s367 + $0xd0] sm:$0xf]
        %v484 = vld [vmem:[%s367 + $0xd4] sm:$0xf]
        %v485 = vld [vmem:[%s367 + $0xd8] sm:$0xf]
        %v486 = vld [vmem:[%s367 + $0xdc] sm:$0xf]
        %v487 = vld [vmem:[%s367 + $0xe0] sm:$0xf]
        %v488 = vld [vmem:[%s367 + $0xe4] sm:$0xf]
        %v489 = vld [vmem:[%s367 + $0xe8] sm:$0xf]
        %v490 = vld [vmem:[%s367 + $0xec] sm:$0xf]
        %v491 = vld [vmem:[%s367 + $0xf0] sm:$0xf]
        %v492 = vld [vmem:[%s367 + $0xf4] sm:$0xf]
        %v493 = vld [vmem:[%s367 + $0xf8] sm:$0xf]
        %v494 = vld [vmem:[%s367 + $0xfc] sm:$0xf]
        %v495 = vld [vmem:[%s367 + $0x100] sm:$0xf]
        %v496 = vld [vmem:[%s367 + $0x104] sm:$0xf]
        %v497 = vld [vmem:[%s367 + $0x108] sm:$0xf]
        %v498 = vld [vmem:[%s367 + $0x10c] sm:$0xf]
        %v499 = vld [vmem:[%s367 + $0x110] sm:$0xf]
        %v500 = vld [vmem:[%s367 + $0x114] sm:$0xf]
        %v501 = vld [vmem:[%s367 + $0x118] sm:$0xf]
        %v502 = vld [vmem:[%s367 + $0x11c] sm:$0xf]
        %v503 = vld [vmem:[%s367 + $0x120] sm:$0xf]
        %v504 = vld [vmem:[%s367 + $0x124] sm:$0xf]
        %v505 = vld [vmem:[%s367 + $0x128] sm:$0xf]
        %v506 = vld [vmem:[%s367 + $0x12c] sm:$0xf]
        %v507 = vld [vmem:[%s367 + $0x130] sm:$0xf]
        %v508 = vld [vmem:[%s367 + $0x134] sm:$0xf]
        %v509 = vld [vmem:[%s367 + $0x138] sm:$0xf]
        %v510 = vld [vmem:[%s367 + $0x13c] sm:$0xf]
        %v511 = vld [vmem:[%s367 + $0x140] sm:$0xf]
        %v512 = vld [vmem:[%s367 + $0x144] sm:$0xf]
        %v513 = vld [vmem:[%s367 + $0x148] sm:$0xf]
        %v514 = vld [vmem:[%s367 + $0x14c] sm:$0xf]
        %v515 = vld [vmem:[%s367 + $0x150] sm:$0xf]
        %v516 = vld [vmem:[%s367 + $0x154] sm:$0xf]
        %v517 = vld [vmem:[%s367 + $0x158] sm:$0xf]
        %v518 = vld [vmem:[%s367 + $0x15c] sm:$0xf]
        %v519 = vld [vmem:[%s367 + $0x160] sm:$0xf]
        %v520 = vld [vmem:[%s367 + $0x164] sm:$0xf]
        %v521 = vld [vmem:[%s367 + $0x168] sm:$0xf]
        %v522 = vld [vmem:[%s367 + $0x16c] sm:$0xf]
        %v523 = vld [vmem:[%s367 + $0x170] sm:$0xf]
        %v524 = vld [vmem:[%s367 + $0x174] sm:$0xf]
        %v525 = vld [vmem:[%s367 + $0x178] sm:$0xf]
        %v526 = vld [vmem:[%s367 + $0x17c] sm:$0xf]
        %v527 = vld [vmem:[%s367 + $0x180] sm:$0xf]
        %v528 = vld [vmem:[%s367 + $0x184] sm:$0xf]
        %v529 = vld [vmem:[%s367 + $0x188] sm:$0xf]
        %v530 = vld [vmem:[%s367 + $0x18c] sm:$0xf]
        %v531 = vld [vmem:[%s367 + $0x190] sm:$0xf]
        %v532 = vld [vmem:[%s367 + $0x194] sm:$0xf]
        %v533 = vld [vmem:[%s367 + $0x198] sm:$0xf]
        %v534 = vld [vmem:[%s367 + $0x19c] sm:$0xf]
        %v535 = vld [vmem:[%s367 + $0x1a0] sm:$0xf]
        %v536 = vld [vmem:[%s367 + $0x1a4] sm:$0xf]
        %v537 = vld [vmem:[%s367 + $0x1a8] sm:$0xf]
        %v538 = vld [vmem:[%s367 + $0x1ac] sm:$0xf]
        %v539 = vld [vmem:[%s367 + $0x1b0] sm:$0xf]
        %v540 = vld [vmem:[%s367 + $0x1b4] sm:$0xf]
        %v541 = vld [vmem:[%s367 + $0x1b8] sm:$0xf]
        %v542 = vld [vmem:[%s367 + $0x1bc] sm:$0xf]
        %v543 = vld [vmem:[%s367 + $0x1c0] sm:$0xf]
        %v544 = vld [vmem:[%s367 + $0x1c4] sm:$0xf]
        %v545 = vld [vmem:[%s367 + $0x1c8] sm:$0xf]
        %v546 = vld [vmem:[%s367 + $0x1cc] sm:$0xf]
        %v547 = vld [vmem:[%s367 + $0x1d0] sm:$0xf]
        %v548 = vld [vmem:[%s367 + $0x1d4] sm:$0xf]
        %v549 = vld [vmem:[%s367 + $0x1d8] sm:$0xf]
        %v550 = vld [vmem:[%s367 + $0x1dc] sm:$0xf]
        %v551 = vld [vmem:[%s367 + $0x1e0] sm:$0xf]
        %v552 = vld [vmem:[%s367 + $0x1e4] sm:$0xf]
        %v553 = vld [vmem:[%s367 + $0x1e8] sm:$0xf]
        %v554 = vld [vmem:[%s367 + $0x1ec] sm:$0xf]
        %v555 = vld [vmem:[%s367 + $0x1f0] sm:$0xf]
        %v556 = vld [vmem:[%s367 + $0x1f4] sm:$0xf]
        %v557 = vld [vmem:[%s367 + $0x1f8] sm:$0xf]
        %v558 = vld [vmem:[%s367 + $0x1fc] sm:$0xf]
        %v687 = vunpack.c.l.b16 %v431
        %v688 = vunpack.c.l.b16 %v432
        %v689 = vunpack.c.l.b16 %v433
        %v690 = vunpack.c.l.b16 %v434
        %v691 = vunpack.c.l.b16 %v435
        %v692 = vunpack.c.l.b16 %v436
        %v693 = vunpack.c.l.b16 %v437
        %v694 = vunpack.c.l.b16 %v438
        %v695 = vunpack.c.l.b16 %v439
        %v696 = vunpack.c.l.b16 %v440
        %v697 = vunpack.c.l.b16 %v441
        %v698 = vunpack.c.l.b16 %v442
        %v699 = vunpack.c.l.b16 %v443
        %v700 = vunpack.c.l.b16 %v444
        %v701 = vunpack.c.l.b16 %v445
        %v702 = vunpack.c.l.b16 %v446
        %v703 = vunpack.c.l.b16 %v447
        %v704 = vunpack.c.l.b16 %v448
        %v705 = vunpack.c.l.b16 %v449
        %v706 = vunpack.c.l.b16 %v450
        %v707 = vunpack.c.l.b16 %v451
        %v708 = vunpack.c.l.b16 %v452
        %v709 = vunpack.c.l.b16 %v453
        %v710 = vunpack.c.l.b16 %v454
        %v711 = vunpack.c.l.b16 %v455
        %v712 = vunpack.c.l.b16 %v456
        %v713 = vunpack.c.l.b16 %v457
        %v714 = vunpack.c.l.b16 %v458
        %v715 = vunpack.c.l.b16 %v459
        %v716 = vunpack.c.l.b16 %v460
        %v717 = vunpack.c.l.b16 %v461
        %v718 = vunpack.c.l.b16 %v462
        %v719 = vunpack.c.l.b16 %v463
        %v720 = vunpack.c.l.b16 %v464
        %v721 = vunpack.c.l.b16 %v465
        %v722 = vunpack.c.l.b16 %v466
        %v723 = vunpack.c.l.b16 %v467
        %v724 = vunpack.c.l.b16 %v468
        %v725 = vunpack.c.l.b16 %v469
        %v726 = vunpack.c.l.b16 %v470
        %v727 = vunpack.c.l.b16 %v471
        %v728 = vunpack.c.l.b16 %v472
        %v729 = vunpack.c.l.b16 %v473
        %v730 = vunpack.c.l.b16 %v474
        %v731 = vunpack.c.l.b16 %v475
        %v732 = vunpack.c.l.b16 %v476
        %v733 = vunpack.c.l.b16 %v477
        %v734 = vunpack.c.l.b16 %v478
        %v735 = vunpack.c.l.b16 %v479
        %v736 = vunpack.c.l.b16 %v480
        %v737 = vunpack.c.l.b16 %v481
        %v738 = vunpack.c.l.b16 %v482
        %v739 = vunpack.c.l.b16 %v483
        %v740 = vunpack.c.l.b16 %v484
        %v741 = vunpack.c.l.b16 %v485
        %v742 = vunpack.c.l.b16 %v486
        %v743 = vunpack.c.l.b16 %v487
        %v744 = vunpack.c.l.b16 %v488
        %v745 = vunpack.c.l.b16 %v489
        %v746 = vunpack.c.l.b16 %v490
        %v747 = vunpack.c.l.b16 %v491
        %v748 = vunpack.c.l.b16 %v492
        %v749 = vunpack.c.l.b16 %v493
        %v750 = vunpack.c.l.b16 %v494
        %v751 = vunpack.c.l.b16 %v495
        %v752 = vunpack.c.l.b16 %v496
        %v753 = vunpack.c.l.b16 %v497
        %v754 = vunpack.c.l.b16 %v498
        %v755 = vunpack.c.l.b16 %v499
        %v756 = vunpack.c.l.b16 %v500
        %v757 = vunpack.c.l.b16 %v501
        %v758 = vunpack.c.l.b16 %v502
        %v759 = vunpack.c.l.b16 %v503
        %v760 = vunpack.c.l.b16 %v504
        %v761 = vunpack.c.l.b16 %v505
        %v762 = vunpack.c.l.b16 %v506
        %v763 = vunpack.c.l.b16 %v507
        %v764 = vunpack.c.l.b16 %v508
        %v765 = vunpack.c.l.b16 %v509
        %v766 = vunpack.c.l.b16 %v510
        %v767 = vunpack.c.l.b16 %v511
        %v768 = vunpack.c.l.b16 %v512
        %v769 = vunpack.c.l.b16 %v513
        %v770 = vunpack.c.l.b16 %v514
        %v771 = vunpack.c.l.b16 %v515
        %v772 = vunpack.c.l.b16 %v516
        %v773 = vunpack.c.l.b16 %v517
        %v774 = vunpack.c.l.b16 %v518
        %v775 = vunpack.c.l.b16 %v519
        %v776 = vunpack.c.l.b16 %v520
        %v777 = vunpack.c.l.b16 %v521
        %v778 = vunpack.c.l.b16 %v522
        %v779 = vunpack.c.l.b16 %v523
        %v780 = vunpack.c.l.b16 %v524
        %v781 = vunpack.c.l.b16 %v525
        %v782 = vunpack.c.l.b16 %v526
        %v783 = vunpack.c.l.b16 %v527
        %v784 = vunpack.c.l.b16 %v528
        %v785 = vunpack.c.l.b16 %v529
        %v786 = vunpack.c.l.b16 %v530
        %v787 = vunpack.c.l.b16 %v531
        %v788 = vunpack.c.l.b16 %v532
        %v789 = vunpack.c.l.b16 %v533
        %v790 = vunpack.c.l.b16 %v534
        %v791 = vunpack.c.l.b16 %v535
        %v792 = vunpack.c.l.b16 %v536
        %v793 = vunpack.c.l.b16 %v537
        %v794 = vunpack.c.l.b16 %v538
        %v795 = vunpack.c.l.b16 %v539
        %v796 = vunpack.c.l.b16 %v540
        %v797 = vunpack.c.l.b16 %v541
        %v798 = vunpack.c.l.b16 %v542
        %v799 = vunpack.c.l.b16 %v543
        %v800 = vunpack.c.l.b16 %v544
        %v801 = vunpack.c.l.b16 %v545
        %v802 = vunpack.c.l.b16 %v546
        %v803 = vunpack.c.l.b16 %v547
        %v804 = vunpack.c.l.b16 %v548
        %v805 = vunpack.c.l.b16 %v549
        %v806 = vunpack.c.l.b16 %v550
        %v807 = vunpack.c.l.b16 %v551
        %v808 = vunpack.c.l.b16 %v552
        %v809 = vunpack.c.l.b16 %v553
        %v810 = vunpack.c.l.b16 %v554
        %v811 = vunpack.c.l.b16 %v555
        %v812 = vunpack.c.l.b16 %v556
        %v813 = vunpack.c.l.b16 %v557
        %v814 = vunpack.c.l.b16 %v558
        %v815 = vpack.c.b16 %v688, %v687
        %v816 = vpack.c.b16 %v690, %v689
        %v817 = vpack.c.b16 %v692, %v691
        %v818 = vpack.c.b16 %v694, %v693
        %v819 = vpack.c.b16 %v696, %v695
        %v820 = vpack.c.b16 %v698, %v697
        %v821 = vpack.c.b16 %v700, %v699
        %v822 = vpack.c.b16 %v702, %v701
        %v823 = vpack.c.b16 %v704, %v703
        %v824 = vpack.c.b16 %v706, %v705
        %v825 = vpack.c.b16 %v708, %v707
        %v826 = vpack.c.b16 %v710, %v709
        %v827 = vpack.c.b16 %v712, %v711
        %v828 = vpack.c.b16 %v714, %v713
        %v829 = vpack.c.b16 %v716, %v715
        %v830 = vpack.c.b16 %v718, %v717
        %v831 = vpack.c.b16 %v720, %v719
        %v832 = vpack.c.b16 %v722, %v721
        %v833 = vpack.c.b16 %v724, %v723
        %v834 = vpack.c.b16 %v726, %v725
        %v835 = vpack.c.b16 %v728, %v727
        %v836 = vpack.c.b16 %v730, %v729
        %v837 = vpack.c.b16 %v732, %v731
        %v838 = vpack.c.b16 %v734, %v733
        %v839 = vpack.c.b16 %v736, %v735
        %v840 = vpack.c.b16 %v738, %v737
        %v841 = vpack.c.b16 %v740, %v739
        %v842 = vpack.c.b16 %v742, %v741
        %v843 = vpack.c.b16 %v744, %v743
        %v844 = vpack.c.b16 %v746, %v745
        %v845 = vpack.c.b16 %v748, %v747
        %v846 = vpack.c.b16 %v750, %v749
        %v847 = vpack.c.b16 %v752, %v751
        %v848 = vpack.c.b16 %v754, %v753
        %v849 = vpack.c.b16 %v756, %v755
        %v850 = vpack.c.b16 %v758, %v757
        %v851 = vpack.c.b16 %v760, %v759
        %v852 = vpack.c.b16 %v762, %v761
        %v853 = vpack.c.b16 %v764, %v763
        %v854 = vpack.c.b16 %v766, %v765
        %v855 = vpack.c.b16 %v768, %v767
        %v856 = vpack.c.b16 %v770, %v769
        %v857 = vpack.c.b16 %v772, %v771
        %v858 = vpack.c.b16 %v774, %v773
        %v859 = vpack.c.b16 %v776, %v775
        %v860 = vpack.c.b16 %v778, %v777
        %v861 = vpack.c.b16 %v780, %v779
        %v862 = vpack.c.b16 %v782, %v781
        %v863 = vpack.c.b16 %v784, %v783
        %v864 = vpack.c.b16 %v786, %v785
        %v865 = vpack.c.b16 %v788, %v787
        %v866 = vpack.c.b16 %v790, %v789
        %v867 = vpack.c.b16 %v792, %v791
        %v868 = vpack.c.b16 %v794, %v793
        %v869 = vpack.c.b16 %v796, %v795
        %v870 = vpack.c.b16 %v798, %v797
        %v871 = vpack.c.b16 %v800, %v799
        %v872 = vpack.c.b16 %v802, %v801
        %v873 = vpack.c.b16 %v804, %v803
        %v874 = vpack.c.b16 %v806, %v805
        %v875 = vpack.c.b16 %v808, %v807
        %v876 = vpack.c.b16 %v810, %v809
        %v877 = vpack.c.b16 %v812, %v811
        %v878 = vpack.c.b16 %v814, %v813
        %943 = vmatprep.subr.bf16.mxu0 0
        %944 = vmatpush1.bf16.msra.mxu0 %v815
        %945 = vmatprep.subr.bf16.mxu0 0
        %946 = vmatpush1.bf16.msra.mxu0 %v816
        %947 = vmatprep.subr.bf16.mxu0 0
        %948 = vmatpush1.bf16.msra.mxu0 %v817
        %949 = vmatprep.subr.bf16.mxu0 0
        %950 = vmatpush1.bf16.msra.mxu0 %v818
        %951 = vmatprep.subr.bf16.mxu0 0
        %952 = vmatpush1.bf16.msra.mxu0 %v819
        %953 = vmatprep.subr.bf16.mxu0 0
        %954 = vmatpush1.bf16.msra.mxu0 %v820
        %955 = vmatprep.subr.bf16.mxu0 0
        %956 = vmatpush1.bf16.msra.mxu0 %v821
        %957 = vmatprep.subr.bf16.mxu0 0
        %958 = vmatpush1.bf16.msra.mxu0 %v822
        %959 = vmatprep.subr.bf16.mxu0 0
        %960 = vmatpush1.bf16.msra.mxu0 %v823
        %961 = vmatprep.subr.bf16.mxu0 0
        %962 = vmatpush1.bf16.msra.mxu0 %v824
        %963 = vmatprep.subr.bf16.mxu0 0
        %964 = vmatpush1.bf16.msra.mxu0 %v825
        %965 = vmatprep.subr.bf16.mxu0 0
        %966 = vmatpush1.bf16.msra.mxu0 %v826
        %967 = vmatprep.subr.bf16.mxu0 0
        %968 = vmatpush1.bf16.msra.mxu0 %v827
        %969 = vmatprep.subr.bf16.mxu0 0
        %970 = vmatpush1.bf16.msra.mxu0 %v828
        %971 = vmatprep.subr.bf16.mxu0 0
        %972 = vmatpush1.bf16.msra.mxu0 %v829
        %973 = vmatprep.subr.bf16.mxu0 0
        %974 = vmatpush1.bf16.msra.mxu0 %v830
        %975 = vmatprep.mubr.bf16.mxu0 %v424
        %976 = vmatmul.mubr.bf16.gmra.mrb[0].mxu0 %v423
        %v977 = vpop.f32.mrb[0].mxu0
        %v978 = vadd.f32 0.0, %v977
        %v979 = vpop.f32.mrb[0].mxu0
        %v980 = vpop.f32.mrb[0].mxu0
        %v981 = vpop.f32.mrb[0].mxu0
        %982 = vdwg.mxu0
        %983 = vmatprep.subr.bf16.mxu0 0
        %984 = vmatpush1.bf16.msra.mxu0 %v831
        %985 = vmatprep.subr.bf16.mxu0 0
        %986 = vmatpush1.bf16.msra.mxu0 %v832
        %987 = vmatprep.subr.bf16.mxu0 0
        %988 = vmatpush1.bf16.msra.mxu0 %v833
        %989 = vmatprep.subr.bf16.mxu0 0
        %990 = vmatpush1.bf16.msra.mxu0 %v834
        %991 = vmatprep.subr.bf16.mxu0 0
        %992 = vmatpush1.bf16.msra.mxu0 %v835
        %993 = vmatprep.subr.bf16.mxu0 0
        %994 = vmatpush1.bf16.msra.mxu0 %v836
        %995 = vmatprep.subr.bf16.mxu0 0
        %996 = vmatpush1.bf16.msra.mxu0 %v837
        %997 = vmatprep.subr.bf16.mxu0 0
        %998 = vmatpush1.bf16.msra.mxu0 %v838
        %999 = vmatprep.subr.bf16.mxu0 0
        %1000 = vmatpush1.bf16.msra.mxu0 %v839
        %1001 = vmatprep.subr.bf16.mxu0 0
        %1002 = vmatpush1.bf16.msra.mxu0 %v840
        %1003 = vmatprep.subr.bf16.mxu0 0
        %1004 = vmatpush1.bf16.msra.mxu0 %v841
        %1005 = vmatprep.subr.bf16.mxu0 0
        %1006 = vmatpush1.bf16.msra.mxu0 %v842
        %1007 = vmatprep.subr.bf16.mxu0 0
        %1008 = vmatpush1.bf16.msra.mxu0 %v843
        %1009 = vmatprep.subr.bf16.mxu0 0
        %1010 = vmatpush1.bf16.msra.mxu0 %v844
        %1011 = vmatprep.subr.bf16.mxu0 0
        %1012 = vmatpush1.bf16.msra.mxu0 %v845
        %1013 = vmatprep.subr.bf16.mxu0 0
        %1014 = vmatpush1.bf16.msra.mxu0 %v846
        %1015 = vmatprep.mubr.bf16.mxu0 %v426
        %1016 = vmatmul.mubr.bf16.gmra.mrb[0].mxu0 %v425
        %v1017 = vpop.f32.mrb[0].mxu0
        %v1018 = vadd.f32 %v978, %v1017
        %v1019 = vpop.f32.mrb[0].mxu0
        %v1020 = vpop.f32.mrb[0].mxu0
        %v1021 = vpop.f32.mrb[0].mxu0
        %1022 = vdwg.mxu0
        %1023 = vmatprep.subr.bf16.mxu0 0
        %1024 = vmatpush1.bf16.msra.mxu0 %v847
        %1025 = vmatprep.subr.bf16.mxu0 0
        %1026 = vmatpush1.bf16.msra.mxu0 %v848
        %1027 = vmatprep.subr.bf16.mxu0 0
        %1028 = vmatpush1.bf16.msra.mxu0 %v849
        %1029 = vmatprep.subr.bf16.mxu0 0
        %1030 = vmatpush1.bf16.msra.mxu0 %v850
        %1031 = vmatprep.subr.bf16.mxu0 0
        %1032 = vmatpush1.bf16.msra.mxu0 %v851
        %1033 = vmatprep.subr.bf16.mxu0 0
        %1034 = vmatpush1.bf16.msra.mxu0 %v852
        %1035 = vmatprep.subr.bf16.mxu0 0
        %1036 = vmatpush1.bf16.msra.mxu0 %v853
        %1037 = vmatprep.subr.bf16.mxu0 0
        %1038 = vmatpush1.bf16.msra.mxu0 %v854
        %1039 = vmatprep.subr.bf16.mxu0 0
        %1040 = vmatpush1.bf16.msra.mxu0 %v855
        %1041 = vmatprep.subr.bf16.mxu0 0
        %1042 = vmatpush1.bf16.msra.mxu0 %v856
        %1043 = vmatprep.subr.bf16.mxu0 0
        %1044 = vmatpush1.bf16.msra.mxu0 %v857
        %1045 = vmatprep.subr.bf16.mxu0 0
        %1046 = vmatpush1.bf16.msra.mxu0 %v858
        %1047 = vmatprep.subr.bf16.mxu0 0
        %1048 = vmatpush1.bf16.msra.mxu0 %v859
        %1049 = vmatprep.subr.bf16.mxu0 0
        %1050 = vmatpush1.bf16.msra.mxu0 %v860
        %1051 = vmatprep.subr.bf16.mxu0 0
        %1052 = vmatpush1.bf16.msra.mxu0 %v861
        %1053 = vmatprep.subr.bf16.mxu0 0
        %1054 = vmatpush1.bf16.msra.mxu0 %v862
        %1055 = vmatprep.mubr.bf16.mxu0 %v428
        %1056 = vmatmul.mubr.bf16.gmra.mrb[0].mxu0 %v427
        %v1057 = vpop.f32.mrb[0].mxu0
        %v1058 = vadd.f32 %v1018, %v1057
        %v1059 = vpop.f32.mrb[0].mxu0
        %v1060 = vpop.f32.mrb[0].mxu0
        %v1061 = vpop.f32.mrb[0].mxu0
        %1062 = vdwg.mxu0
        %1063 = vmatprep.subr.bf16.mxu0 0
        %1064 = vmatpush1.bf16.msra.mxu0 %v863
        %1065 = vmatprep.subr.bf16.mxu0 0
        %1066 = vmatpush1.bf16.msra.mxu0 %v864
        %1067 = vmatprep.subr.bf16.mxu0 0
        %1068 = vmatpush1.bf16.msra.mxu0 %v865
        %1069 = vmatprep.subr.bf16.mxu0 0
        %1070 = vmatpush1.bf16.msra.mxu0 %v866
        %1071 = vmatprep.subr.bf16.mxu0 0
        %1072 = vmatpush1.bf16.msra.mxu0 %v867
        %1073 = vmatprep.subr.bf16.mxu0 0
        %1074 = vmatpush1.bf16.msra.mxu0 %v868
        %1075 = vmatprep.subr.bf16.mxu0 0
        %1076 = vmatpush1.bf16.msra.mxu0 %v869
        %1077 = vmatprep.subr.bf16.mxu0 0
        %1078 = vmatpush1.bf16.msra.mxu0 %v870
        %1079 = vmatprep.subr.bf16.mxu0 0
        %1080 = vmatpush1.bf16.msra.mxu0 %v871
        %1081 = vmatprep.subr.bf16.mxu0 0
        %1082 = vmatpush1.bf16.msra.mxu0 %v872
        %1083 = vmatprep.subr.bf16.mxu0 0
        %1084 = vmatpush1.bf16.msra.mxu0 %v873
        %1085 = vmatprep.subr.bf16.mxu0 0
        %1086 = vmatpush1.bf16.msra.mxu0 %v874
        %1087 = vmatprep.subr.bf16.mxu0 0
        %1088 = vmatpush1.bf16.msra.mxu0 %v875
        %1089 = vmatprep.subr.bf16.mxu0 0
        %1090 = vmatpush1.bf16.msra.mxu0 %v876
        %1091 = vmatprep.subr.bf16.mxu0 0
        %1092 = vmatpush1.bf16.msra.mxu0 %v877
        %1093 = vmatprep.subr.bf16.mxu0 0
        %1094 = vmatpush1.bf16.msra.mxu0 %v878
        %1095 = vmatprep.mubr.bf16.mxu0 %v430
        %1096 = vmatmul.mubr.bf16.gmra.mrb[0].mxu0 %v429
        %v1097 = vpop.f32.mrb[0].mxu0
        %v1098 = vadd.f32 %v1058, %v1097
        %v1099 = vpop.f32.mrb[0].mxu0
        %v1100 = vpop.f32.mrb[0].mxu0
        %v1101 = vpop.f32.mrb[0].mxu0
        %1102 = vdwg.mxu0
        %v1103 = vadd.f32 %v376, %v1098
        %vm1104 = vcmask 517120
        %1105 = vst.msk [vmem:[#allocation2] sm:$0x3] %vm1104, %v1103
        %p1106 = scmp.eq.s32.totalorder %s24, 3
        // Predicated region
        $region61: #{_lambda_.3} parent=55 // pred_check
          %p1107 = pneg %p1106
        $region62: #{_lambda_.3} parent=55 // pred_check_branch
          %1109 = sbr.rel (%p1107) target = $region64
        $region63: #{_lambda_.3} parent=55 // pred_region
          %v1110 = vld [vmem:[%s0] sm:$0xff]
          %v1111 = vld [vmem:[%s0 + $0x8] sm:$0xff]
          %v1112 = vld [vmem:[%s0 + $0x10] sm:$0xff]
          %v1113 = vld [vmem:[%s0 + $0x18] sm:$0xff]
          %v1118 = vcombine.high %v1110, %v1110
          %v1119 = vcombine.high %v1111, %v1111
          %v1120 = vcombine.high %v1112, %v1112
          %v1121 = vcombine.high %v1113, %v1113
          %vm1126 = vcmask 1043456
          %v1127 = vsel %vm1126, %v1110, -inf
          %v1128 = vrot.slane %v1127, 4
          %v1129 = vmax.f32 %v1127, %v1128
          %v1130 = vrot.slane %v1129, 2
          %v1131 = vmax.f32 %v1129, %v1130
          %v1132 = vrot.slane %v1131, 1
          %v1133 = vmax.f32 %v1131, %v1132
          %v1134 = vsel %vm1126, %v1118, -inf
          %v1135 = vrot.slane %v1134, 4
          %v1136 = vmax.f32 %v1134, %v1135
          %v1137 = vrot.slane %v1136, 2
          %v1138 = vmax.f32 %v1136, %v1137
          %v1139 = vrot.slane %v1138, 1
          %v1140 = vmax.f32 %v1138, %v1139
          %v1141 = vsel %vm1126, %v1111, -inf
          %v1142 = vrot.slane %v1141, 4
          %v1143 = vmax.f32 %v1141, %v1142
          %v1144 = vrot.slane %v1143, 2
          %v1145 = vmax.f32 %v1143, %v1144
          %v1146 = vrot.slane %v1145, 1
          %v1147 = vmax.f32 %v1145, %v1146
          %v1148 = vsel %vm1126, %v1119, -inf
          %v1149 = vrot.slane %v1148, 4
          %v1150 = vmax.f32 %v1148, %v1149
          %v1151 = vrot.slane %v1150, 2
          %v1152 = vmax.f32 %v1150, %v1151
          %v1153 = vrot.slane %v1152, 1
          %v1154 = vmax.f32 %v1152, %v1153
          %v1155 = vsel %vm1126, %v1112, -inf
          %v1156 = vrot.slane %v1155, 4
          %v1157 = vmax.f32 %v1155, %v1156
          %v1158 = vrot.slane %v1157, 2
          %v1159 = vmax.f32 %v1157, %v1158
          %v1160 = vrot.slane %v1159, 1
          %v1161 = vmax.f32 %v1159, %v1160
          %v1162 = vsel %vm1126, %v1120, -inf
          %v1163 = vrot.slane %v1162, 4
          %v1164 = vmax.f32 %v1162, %v1163
          %v1165 = vrot.slane %v1164, 2
          %v1166 = vmax.f32 %v1164, %v1165
          %v1167 = vrot.slane %v1166, 1
          %v1168 = vmax.f32 %v1166, %v1167
          %v1169 = vsel %vm1126, %v1113, -inf
          %v1170 = vrot.slane %v1169, 4
          %v1171 = vmax.f32 %v1169, %v1170
          %v1172 = vrot.slane %v1171, 2
          %v1173 = vmax.f32 %v1171, %v1172
          %v1174 = vrot.slane %v1173, 1
          %v1175 = vmax.f32 %v1173, %v1174
          %v1176 = vsel %vm1126, %v1121, -inf
          %v1177 = vrot.slane %v1176, 4
          %v1178 = vmax.f32 %v1176, %v1177
          %v1179 = vrot.slane %v1178, 2
          %v1180 = vmax.f32 %v1178, %v1179
          %v1181 = vrot.slane %v1180, 1
          %v1182 = vmax.f32 %v1180, %v1181
          %v1191 = vcombine.low %v1133, %v1140
          %v1192 = vcombine.low %v1147, %v1154
          %v1194 = vunpack.c.l.s4 1983009808
          %v1195 = vunpack.c.0.s8 %v1194
          %v1196 = vlaneseq
          %v1197 = vshrl.u32 %v1196, 7
          %v1198 = vsub.s32 %v1195, %v1197
          %v1199 = vrot.slane %v1191, %v1198
          %v1201 = vunpack.c.l.s4 1983009808
          %v1202 = vunpack.c.0.s8 %v1201
          %v1203 = vlaneseq
          %v1204 = vshrl.u32 %v1203, 7
          %v1205 = vsub.s32 %v1202, %v1204
          %v1206 = vrot.slane %v1192, %v1205
          %v1207 = vcombine.low %v1199, %v1206
          %v1208 = vcombine.low %v1161, %v1168
          %v1209 = vcombine.low %v1175, %v1182
          %v1211 = vunpack.c.l.s4 1983009808
          %v1212 = vunpack.c.0.s8 %v1211
          %v1213 = vlaneseq
          %v1214 = vshrl.u32 %v1213, 7
          %v1215 = vsub.s32 %v1212, %v1214
          %v1216 = vrot.slane %v1208, %v1215
          %v1218 = vunpack.c.l.s4 1983009808
          %v1219 = vunpack.c.0.s8 %v1218
          %v1220 = vlaneseq
          %v1221 = vshrl.u32 %v1220, 7
          %v1222 = vsub.s32 %v1219, %v1221
          %v1223 = vrot.slane %v1209, %v1222
          %v1224 = vcombine.low %v1216, %v1223
          %vm1225 = vcmask 1044484
          %v1226 = vsel %vm1225, %v1207, %v1207
          %vm1227 = vcmask 1046534
          %v1228 = vsel %vm1227, %v1207, %v1226
          %v1229 = vrot.slane %v1224, 7
          %vm1230 = vcmask 1041409
          %v1231 = vsel %vm1230, %v1229, %v1228
          %vm1232 = vcmask 1043459
          %v1233 = vsel %vm1232, %v1229, %v1231
          %vm1234 = vcmask 1045509
          %v1235 = vsel %vm1234, %v1229, %v1233
          %vm1236 = vcmask 1047559
          %v1237 = vsel %vm1236, %v1229, %v1235
          %1239 = vst [vmem:[#allocation4] sm:$0xff] %v1237
          %v1240 = vld [vmem:[%s2] sm:$0xff]
          %v1241 = vld [vmem:[%s2 + $0x8] sm:$0xff]
          %v1242 = vld [vmem:[%s2 + $0x10] sm:$0xff]
          %v1243 = vld [vmem:[%s2 + $0x18] sm:$0xff]
          %v1244 = vld [vmem:[%s2 + $0x20] sm:$0xff]
          %v1245 = vld [vmem:[%s2 + $0x28] sm:$0xff]
          %v1246 = vld [vmem:[%s2 + $0x30] sm:$0xff]
          %v1247 = vld [vmem:[%s2 + $0x38] sm:$0xff]
          %v1248 = vld [vmem:[%s2 + $0x40] sm:$0xff]
          %v1249 = vld [vmem:[%s2 + $0x48] sm:$0xff]
          %v1250 = vld [vmem:[%s2 + $0x50] sm:$0xff]
          %v1251 = vld [vmem:[%s2 + $0x58] sm:$0xff]
          %v1252 = vld [vmem:[%s2 + $0x60] sm:$0xff]
          %v1253 = vld [vmem:[%s2 + $0x68] sm:$0xff]
          %v1254 = vld [vmem:[%s2 + $0x70] sm:$0xff]
          %v1255 = vld [vmem:[%s2 + $0x78] sm:$0xff]
          %v1256 = vld [vmem:[%s2 + $0x80] sm:$0xff]
          %v1257 = vld [vmem:[%s2 + $0x88] sm:$0xff]
          %v1258 = vld [vmem:[%s2 + $0x90] sm:$0xff]
          %v1259 = vld [vmem:[%s2 + $0x98] sm:$0xff]
          %v1260 = vld [vmem:[%s2 + $0xa0] sm:$0xff]
          %v1261 = vld [vmem:[%s2 + $0xa8] sm:$0xff]
          %v1262 = vld [vmem:[%s2 + $0xb0] sm:$0xff]
          %v1263 = vld [vmem:[%s2 + $0xb8] sm:$0xff]
          %v1264 = vld [vmem:[%s2 + $0xc0] sm:$0xff]
          %v1265 = vld [vmem:[%s2 + $0xc8] sm:$0xff]
          %v1266 = vld [vmem:[%s2 + $0xd0] sm:$0xff]
          %v1267 = vld [vmem:[%s2 + $0xd8] sm:$0xff]
          %v1268 = vld [vmem:[%s2 + $0xe0] sm:$0xff]
          %v1269 = vld [vmem:[%s2 + $0xe8] sm:$0xff]
          %v1270 = vld [vmem:[%s2 + $0xf0] sm:$0xff]
          %v1271 = vld [vmem:[%s2 + $0xf8] sm:$0xff]
          %v1272 = vld [vmem:[%s2 + $0x100] sm:$0xff]
          %v1273 = vld [vmem:[%s2 + $0x108] sm:$0xff]
          %v1274 = vld [vmem:[%s2 + $0x110] sm:$0xff]
          %v1275 = vld [vmem:[%s2 + $0x118] sm:$0xff]
          %v1276 = vld [vmem:[%s2 + $0x120] sm:$0xff]
          %v1277 = vld [vmem:[%s2 + $0x128] sm:$0xff]
          %v1278 = vld [vmem:[%s2 + $0x130] sm:$0xff]
          %v1279 = vld [vmem:[%s2 + $0x138] sm:$0xff]
          %v1280 = vld [vmem:[%s2 + $0x140] sm:$0xff]
          %v1281 = vld [vmem:[%s2 + $0x148] sm:$0xff]
          %v1282 = vld [vmem:[%s2 + $0x150] sm:$0xff]
          %v1283 = vld [vmem:[%s2 + $0x158] sm:$0xff]
          %v1284 = vld [vmem:[%s2 + $0x160] sm:$0xff]
          %v1285 = vld [vmem:[%s2 + $0x168] sm:$0xff]
          %v1286 = vld [vmem:[%s2 + $0x170] sm:$0xff]
          %v1287 = vld [vmem:[%s2 + $0x178] sm:$0xff]
          %v1288 = vld [vmem:[%s2 + $0x180] sm:$0xff]
          %v1289 = vld [vmem:[%s2 + $0x188] sm:$0xff]
          %v1290 = vld [vmem:[%s2 + $0x190] sm:$0xff]
          %v1291 = vld [vmem:[%s2 + $0x198] sm:$0xff]
          %v1292 = vld [vmem:[%s2 + $0x1a0] sm:$0xff]
          %v1293 = vld [vmem:[%s2 + $0x1a8] sm:$0xff]
          %v1294 = vld [vmem:[%s2 + $0x1b0] sm:$0xff]
          %v1295 = vld [vmem:[%s2 + $0x1b8] sm:$0xff]
          %v1296 = vld [vmem:[%s2 + $0x1c0] sm:$0xff]
          %v1297 = vld [vmem:[%s2 + $0x1c8] sm:$0xff]
          %v1298 = vld [vmem:[%s2 + $0x1d0] sm:$0xff]
          %v1299 = vld [vmem:[%s2 + $0x1d8] sm:$0xff]
          %v1300 = vld [vmem:[%s2 + $0x1e0] sm:$0xff]
          %v1301 = vld [vmem:[%s2 + $0x1e8] sm:$0xff]
          %v1302 = vld [vmem:[%s2 + $0x1f0] sm:$0xff]
          %v1303 = vld [vmem:[%s2 + $0x1f8] sm:$0xff]
          %v1304 = vld [vmem:[%s3] sm:$0x1]
          %v1306 = vlaneseq
          %v1307 = vshrl.u32 %v1306, 7
          %v1308 = vsub.s32 0, %v1307
          %v1309 = vrot.slane %v1304, %v1308
          %v1311 = vsel %vm1230, %v1161, %v1133
          %v1312 = vsel %vm1230, %v1168, %v1140
          %v1313 = vsel %vm1230, %v1175, %v1147
          %v1314 = vsel %vm1230, %v1182, %v1154
          %1319 = vmatprep.subr.mxu0 0.0
          %1320 = vmatpush1.msra.mxu0 %v1240
          %1321 = vmatprep.subr.mxu0 0.0
          %1322 = vmatpush1.msra.mxu0 %v1241
          %1323 = vmatprep.subr.mxu0 0.0
          %1324 = vmatpush1.msra.mxu0 %v1242
          %1325 = vmatprep.subr.mxu0 0.0
          %1326 = vmatpush1.msra.mxu0 %v1243
          %1327 = vmatprep.subr.mxu0 0.0
          %1328 = vmatpush1.msra.mxu0 %v1244
          %1329 = vmatprep.subr.mxu0 0.0
          %1330 = vmatpush1.msra.mxu0 %v1245
          %1331 = vmatprep.subr.mxu0 0.0
          %1332 = vmatpush1.msra.mxu0 %v1246
          %1333 = vmatprep.subr.mxu0 0.0
          %1334 = vmatpush1.msra.mxu0 %v1247
          %1335 = vmatprep.subr.mxu0 0.0
          %1336 = vmatpush1.msra.mxu0 %v1248
          %1337 = vmatprep.subr.mxu0 0.0
          %1338 = vmatpush1.msra.mxu0 %v1249
          %1339 = vmatprep.subr.mxu0 0.0
          %1340 = vmatpush1.msra.mxu0 %v1250
          %1341 = vmatprep.subr.mxu0 0.0
          %1342 = vmatpush1.msra.mxu0 %v1251
          %1343 = vmatprep.subr.mxu0 0.0
          %1344 = vmatpush1.msra.mxu0 %v1252
          %1345 = vmatprep.subr.mxu0 0.0
          %1346 = vmatpush1.msra.mxu0 %v1253
          %1347 = vmatprep.subr.mxu0 0.0
          %1348 = vmatpush1.msra.mxu0 %v1254
          %1349 = vmatprep.subr.mxu0 0.0
          %1350 = vmatpush1.msra.mxu0 %v1255
          %1351 = vmatprep.subr.mxu0 0.0
          %1352 = vmatpush1.msra.mxu0 %v1256
          %1353 = vmatprep.subr.mxu0 0.0
          %1354 = vmatpush1.msra.mxu0 %v1257
          %1355 = vmatprep.subr.mxu0 0.0
          %1356 = vmatpush1.msra.mxu0 %v1258
          %1357 = vmatprep.subr.mxu0 0.0
          %1358 = vmatpush1.msra.mxu0 %v1259
          %1359 = vmatprep.subr.mxu0 0.0
          %1360 = vmatpush1.msra.mxu0 %v1260
          %1361 = vmatprep.subr.mxu0 0.0
          %1362 = vmatpush1.msra.mxu0 %v1261
          %1363 = vmatprep.subr.mxu0 0.0
          %1364 = vmatpush1.msra.mxu0 %v1262
          %1365 = vmatprep.subr.mxu0 0.0
          %1366 = vmatpush1.msra.mxu0 %v1263
          %1367 = vmatprep.subr.mxu0 0.0
          %1368 = vmatpush1.msra.mxu0 %v1264
          %1369 = vmatprep.subr.mxu0 0.0
          %1370 = vmatpush1.msra.mxu0 %v1265
          %1371 = vmatprep.subr.mxu0 0.0
          %1372 = vmatpush1.msra.mxu0 %v1266
          %1373 = vmatprep.subr.mxu0 0.0
          %1374 = vmatpush1.msra.mxu0 %v1267
          %1375 = vmatprep.subr.mxu0 0.0
          %1376 = vmatpush1.msra.mxu0 %v1268
          %1377 = vmatprep.subr.mxu0 0.0
          %1378 = vmatpush1.msra.mxu0 %v1269
          %1379 = vmatprep.subr.mxu0 0.0
          %1380 = vmatpush1.msra.mxu0 %v1270
          %1381 = vmatprep.subr.mxu0 0.0
          %1382 = vmatpush1.msra.mxu0 %v1271
          %1383 = vmatprep.mubr.f32.mxu0 %v1312
          %1384 = vmatmul.mubr.f32.gmra.mrb[0].mxu0 %v1311
          %v1385 = vpop.f32.mrb[0].mxu0
          %v1386 = vadd.f32 %v1309, %v1385
          %v1387 = vpop.f32.mrb[0].mxu0
          %1388 = vdwg.mxu0
          %1389 = vmatprep.subr.mxu0 0.0
          %1390 = vmatpush1.msra.mxu0 %v1272
          %1391 = vmatprep.subr.mxu0 0.0
          %1392 = vmatpush1.msra.mxu0 %v1273
          %1393 = vmatprep.subr.mxu0 0.0
          %1394 = vmatpush1.msra.mxu0 %v1274
          %1395 = vmatprep.subr.mxu0 0.0
          %1396 = vmatpush1.msra.mxu0 %v1275
          %1397 = vmatprep.subr.mxu0 0.0
          %1398 = vmatpush1.msra.mxu0 %v1276
          %1399 = vmatprep.subr.mxu0 0.0
          %1400 = vmatpush1.msra.mxu0 %v1277
          %1401 = vmatprep.subr.mxu0 0.0
          %1402 = vmatpush1.msra.mxu0 %v1278
          %1403 = vmatprep.subr.mxu0 0.0
          %1404 = vmatpush1.msra.mxu0 %v1279
          %1405 = vmatprep.subr.mxu0 0.0
          %1406 = vmatpush1.msra.mxu0 %v1280
          %1407 = vmatprep.subr.mxu0 0.0
          %1408 = vmatpush1.msra.mxu0 %v1281
          %1409 = vmatprep.subr.mxu0 0.0
          %1410 = vmatpush1.msra.mxu0 %v1282
          %1411 = vmatprep.subr.mxu0 0.0
          %1412 = vmatpush1.msra.mxu0 %v1283
          %1413 = vmatprep.subr.mxu0 0.0
          %1414 = vmatpush1.msra.mxu0 %v1284
          %1415 = vmatprep.subr.mxu0 0.0
          %1416 = vmatpush1.msra.mxu0 %v1285
          %1417 = vmatprep.subr.mxu0 0.0
          %1418 = vmatpush1.msra.mxu0 %v1286
          %1419 = vmatprep.subr.mxu0 0.0
          %1420 = vmatpush1.msra.mxu0 %v1287
          %1421 = vmatprep.subr.mxu0 0.0
          %1422 = vmatpush1.msra.mxu0 %v1288
          %1423 = vmatprep.subr.mxu0 0.0
          %1424 = vmatpush1.msra.mxu0 %v1289
          %1425 = vmatprep.subr.mxu0 0.0
          %1426 = vmatpush1.msra.mxu0 %v1290
          %1427 = vmatprep.subr.mxu0 0.0
          %1428 = vmatpush1.msra.mxu0 %v1291
          %1429 = vmatprep.subr.mxu0 0.0
          %1430 = vmatpush1.msra.mxu0 %v1292
          %1431 = vmatprep.subr.mxu0 0.0
          %1432 = vmatpush1.msra.mxu0 %v1293
          %1433 = vmatprep.subr.mxu0 0.0
          %1434 = vmatpush1.msra.mxu0 %v1294
          %1435 = vmatprep.subr.mxu0 0.0
          %1436 = vmatpush1.msra.mxu0 %v1295
          %1437 = vmatprep.subr.mxu0 0.0
          %1438 = vmatpush1.msra.mxu0 %v1296
          %1439 = vmatprep.subr.mxu0 0.0
          %1440 = vmatpush1.msra.mxu0 %v1297
          %1441 = vmatprep.subr.mxu0 0.0
          %1442 = vmatpush1.msra.mxu0 %v1298
          %1443 = vmatprep.subr.mxu0 0.0
          %1444 = vmatpush1.msra.mxu0 %v1299
          %1445 = vmatprep.subr.mxu0 0.0
          %1446 = vmatpush1.msra.mxu0 %v1300
          %1447 = vmatprep.subr.mxu0 0.0
          %1448 = vmatpush1.msra.mxu0 %v1301
          %1449 = vmatprep.subr.mxu0 0.0
          %1450 = vmatpush1.msra.mxu0 %v1302
          %1451 = vmatprep.subr.mxu0 0.0
          %1452 = vmatpush1.msra.mxu0 %v1303
          %1453 = vmatprep.mubr.f32.mxu0 %v1314
          %1454 = vmatmul.mubr.f32.gmra.mrb[0].mxu0 %v1313
          %v1455 = vpop.f32.mrb[0].mxu0
          %v1456 = vadd.f32 %v1386, %v1455
          %v1457 = vpop.f32.mrb[0].mxu0
          %1458 = vdwg.mxu0
          %v1459 = vmax.f32 %v1456, 0.0
          %v1460 = vld [vmem:[#allocation2] sm:$0x3]
          %v1461 = vld [vmem:[%s5] sm:$0x1]
          %v1463 = vlaneseq
          %v1464 = vshrl.u32 %v1463, 7
          %v1465 = vsub.s32 0, %v1464
          %v1466 = vrot.slane %v1461, %v1465
          %v1468 = vadd.f32 %v1460, %v1466
          %v1469 = vmax.f32 %v1468, 0.0
          %v1470 = vld [vmem:[%s6] sm:$0x1]
          %v1472 = vlaneseq
          %v1473 = vshrl.u32 %v1472, 7
          %v1474 = vsub.s32 0, %v1473
          %v1475 = vrot.slane %v1470, %v1474
          %v1477 = vmul.f32 %v1459, %v1475
          %v1478 = vsel %vm1104, %v1477, 0.0
          %1479 = vadd.xlane.f32.xlu0 %v1478
          %v1480 = vpop.xlane.xlu0 %1479
          %v1481 = vld [vmem:[%s7] sm:$0x1]
          %v1483 = vlaneseq
          %v1484 = vshrl.u32 %v1483, 7
          %v1485 = vsub.s32 0, %v1484
          %v1486 = vrot.slane %v1481, %v1485
          %v1488 = vmul.f32 %v1469, %v1486
          %v1489 = vsel %vm1104, %v1488, 0.0
          %1490 = vadd.xlane.f32.xlu0 %v1489
          %v1491 = vpop.xlane.xlu0 %1490
          %v1492 = vadd.f32 %v1480, %v1491
          %s1493 = sld [smem:[#allocation3]]
          %v1494 = vstv %s1493
          %v1495 = vadd.f32 %v1492, %v1494
          %v1496 = vmax.f32 %v1495, 0.0
          %vm1497 = vcmask 1024
          %1498 = vst.msk [vmem:[%s10] sm:$0x3] %vm1497, %v1496
        $region64: #{_lambda_.3} parent=55 // pred_fallthru
          _
        // Predicated region
        $region65: #{_lambda_.3} parent=55 // pred_check
          %p1499 = pneg %p236
        $region66: #{_lambda_.3} parent=55 // pred_check_branch
          %1501 = sbr.rel (%p1499) target = $region68
        $region67: #{_lambda_.3} parent=55 // pred_region
          %s1503 = ssub.s32 128, 128
          %1504 = vsyncadd [#allocation5], %s1503
          %s1506 = sshll.u32 [#allocation4], 4
          %s1507 = int_to_ptr.vmem [resolvable:$true] %s1506
          %1509 = dma.vmem_to_hbm [thread:$0]  %s1507, 128, %s9, [#allocation5]
        $region68: #{_lambda_.3} parent=55 // pred_fallthru
          _
        // Predicated region
        $region69: #{_lambda_.3} parent=55 // pred_check
          %p1510 = pneg %p257
        $region70: #{_lambda_.3} parent=55 // pred_check_branch
          %1512 = sbr.rel (%p1510) target = $region72
        $region71: #{_lambda_.3} parent=55 // pred_region
          _
        $region72: #{_lambda_.3} parent=55 // pred_fallthru
          _
        // Predicated region
        $region73: #{_lambda_.3} parent=55 // pred_check
          %p1513 = pneg %p236
        $region74: #{_lambda_.3} parent=55 // pred_check_branch
          %1515 = sbr.rel (%p1513) target = $region76
        $region75: #{_lambda_.3} parent=55 // pred_region
          %1516 = dma.done [#allocation5], 128
        $region76: #{_lambda_.3} parent=55 // pred_fallthru
          _
        // Predicated region
        $region77: #{_lambda_.3} parent=55 // pred_check
          %p1517 = pneg %p257
        $region78: #{_lambda_.3} parent=55 // pred_check_branch
          %1519 = sbr.rel (%p1517) target = $region80
        $region79: #{_lambda_.3} parent=55 // pred_region
          _
        $region80: #{_lambda_.3} parent=55 // pred_fallthru
          _
      $region56: #{_lambda_.3} parent=5 // pred_fallthru
        _
      %p1520 = scmp.le.s32.totalorder 2, %s19
      // Predicated region
      $region81: #{_lambda_.3} parent=5 // pred_check
        %p1521 = pneg %p1520
      $region82: #{_lambda_.3} parent=5 // pred_check_branch
        %1523 = sbr.rel (%p1521) target = $region84
      $region83: #{_lambda_.3} parent=5 // pred_region
        %s1524 = ssub.s32 %s19, 2
      $region84: #{_lambda_.3} parent=5 // pred_fallthru
        _
    $region6: #{_lambda_.3} parent=1 // loop_footer
      %s23 = sadd.s32 1, %s19
    $region7: #{_lambda_.3} parent=1 // loop_footer_branch
      %18 = sbr.rel target = $region3
    $region8: #{_lambda_.3} parent=1 // loop_exit
      _
    %1525 = vsyncpa [#allocation5], 1
    %s1526 = scalar_lea.sflag [#allocation5], 1
    %1527 = vsyncpa %s1526, 1

</llo_original>
